<compile_context>
chip_gen: v7x
topology: tpu7x:2x2x1
jax: 0.10.0
libtpu: 0.0.40
codegen_flags: <defaults>
</compile_context>

<pallas_src>
import functools

import jax
import jax.numpy as jnp
from jax import lax
from jax.experimental import pallas as pl
from jax.experimental.pallas import tpu as pltpu

LRELU = 0.2
BN_EPS = 1e-5


# ----------------------------------------------------------------------------
# Kernel 1: negative pairwise squared distance, tiled over query rows.
#   out[b, i, j] = -||x[b,i] - x[b,j]||^2 = 2 x_i.x_j - ||x_i||^2 - ||x_j||^2
# ----------------------------------------------------------------------------
def _pairwise_kernel(xq_ref, xa_ref, out_ref):
    xq = xq_ref[0]                                                    # (TM, C) f32
    xa = xa_ref[0]                                                    # (N,  C) f32
    # Contract on the channel dim directly -- no in-kernel transpose.
    inner = lax.dot_general(xq, xa, (((1,), (1,)), ((), ())),
                            preferred_element_type=jnp.float32)       # (TM, N)
    sq_q = jnp.sum(xq * xq, axis=1, keepdims=True)                    # (TM, 1)
    ones = jnp.ones((1, xa.shape[1]), jnp.float32)
    sq_a = lax.dot_general(ones, xa * xa, (((1,), (1,)), ((), ())),
                           preferred_element_type=jnp.float32)        # (1, N)
    out_ref[0] = 2.0 * inner - sq_q - sq_a


def pairwise_neg_dist(x):
    B, N, C = x.shape
    TM = 128 if N % 128 == 0 else N
    return pl.pallas_call(
        _pairwise_kernel,
        out_shape=jax.ShapeDtypeStruct((B, N, N), jnp.float32),
        grid=(B, N // TM),
        in_specs=[
            pl.BlockSpec((1, TM, C), lambda b, m: (b, m, 0)),
            pl.BlockSpec((1, N, C), lambda b, m: (b, 0, 0)),
        ],
        out_specs=pl.BlockSpec((1, TM, N), lambda b, m: (b, m, 0)),
        compiler_params=pltpu.CompilerParams(
            dimension_semantics=("parallel", "parallel")),
    )(x, x)


# ----------------------------------------------------------------------------
# Kernel 2: EdgeConv core with K as a grid reduction axis.
#   z_k = neigh_k @ w_n + (x @ w_c + shift)      (scale folded into w_n / w_c)
#   out = max_k LeakyReLU(z_k)
# ----------------------------------------------------------------------------
def _edge_conv_kernel(neigh_ref, x_ref, wn_ref, wc_ref, shift_ref,
                      out_ref, base_ref):
    kk = pl.program_id(1)

    @pl.when(kk == 0)
    def _init_base():
        base_ref[...] = (
            jnp.dot(x_ref[0], wc_ref[...], preferred_element_type=jnp.float32)
            + shift_ref[...]
        )

    z = jnp.dot(neigh_ref[0, 0], wn_ref[...],
                preferred_element_type=jnp.float32)                   # (N, O)
    z = z + base_ref[...]
    z = jnp.where(z > 0, z, LRELU * z)

    @pl.when(kk == 0)
    def _first():
        out_ref[0] = z

    @pl.when(kk > 0)
    def _rest():
        out_ref[0] = jnp.maximum(out_ref[0], z)


def edge_conv_core(neigh, x_bf, w_n, w_c, shift):
    B, K, N, C = neigh.shape
    O = w_n.shape[1]
    return pl.pallas_call(
        _edge_conv_kernel,
        out_shape=jax.ShapeDtypeStruct((B, N, O), jnp.float32),
        grid=(B, K),
        in_specs=[
            pl.BlockSpec((1, 1, N, C), lambda b, k: (b, k, 0, 0)),
            pl.BlockSpec((1, N, C), lambda b, k: (b, 0, 0)),
            pl.BlockSpec((C, O), lambda b, k: (0, 0)),
            pl.BlockSpec((C, O), lambda b, k: (0, 0)),
            pl.BlockSpec((1, O), lambda b, k: (0, 0)),
        ],
        out_specs=pl.BlockSpec((1, N, O), lambda b, k: (b, 0, 0)),
        scratch_shapes=[pltpu.VMEM((N, O), jnp.float32)],
        compiler_params=pltpu.CompilerParams(
            dimension_semantics=("parallel", "arbitrary")),
    )(neigh, x_bf, w_n, w_c, shift)


# ----------------------------------------------------------------------------
# Kernel 3: head part A -- Conv1d(192->1024,1x1)+BN+LeakyReLU, max over points.
#   Tiled over N with the pooled max accumulated in the resident output block.
# ----------------------------------------------------------------------------
def _pointwise_max_kernel(h_ref, w_ref, s_ref, b_ref, out_ref):
    n = pl.program_id(1)
    z = jnp.dot(h_ref[0], w_ref[...], preferred_element_type=jnp.float32)  # (TN, 1024)
    z = z * s_ref[...] + b_ref[...]
    z = jnp.where(z > 0, z, LRELU * z)
    zmax = jnp.max(z, axis=0, keepdims=True)                                # (1, 1024)

    @pl.when(n == 0)
    def _first():
        out_ref[0] = zmax

    @pl.when(n > 0)
    def _rest():
        out_ref[0] = jnp.maximum(out_ref[0], zmax)


def head_pool(h_bf, wc, s, b):
    B, N, Cin = h_bf.shape
    H1 = wc.shape[1]
    TN = 128 if N % 128 == 0 else N
    pooled = pl.pallas_call(
        _pointwise_max_kernel,
        out_shape=jax.ShapeDtypeStruct((B, 1, H1), jnp.float32),
        grid=(B, N // TN),
        in_specs=[
            pl.BlockSpec((1, TN, Cin), lambda bb, n: (bb, n, 0)),
            pl.BlockSpec((Cin, H1), lambda bb, n: (0, 0)),
            pl.BlockSpec((1, H1), lambda bb, n: (0, 0)),
            pl.BlockSpec((1, H1), lambda bb, n: (0, 0)),
        ],
        out_specs=pl.BlockSpec((1, 1, H1), lambda bb, n: (bb, 0, 0)),
        compiler_params=pltpu.CompilerParams(
            dimension_semantics=("parallel", "arbitrary")),
    )(h_bf, wc, s, b)
    return pooled.reshape(B, H1)


# ----------------------------------------------------------------------------
# Kernel 4: head part B -- batched FC layers (Linear+BN+LeakyReLU, Linear).
#   Single call with M=B rows (pulled out of the per-batch grid).
# ----------------------------------------------------------------------------
def _fc_kernel(g_ref, w1_ref, b1_ref, s1_ref, sh1_ref, w2_ref, b2_ref, out_ref):
    g = g_ref[...].astype(jnp.bfloat16)                               # (B, 1024)
    u = jnp.dot(g, w1_ref[...], preferred_element_type=jnp.float32) + b1_ref[...]
    u = u * s1_ref[...] + sh1_ref[...]
    u = jnp.where(u > 0, u, LRELU * u)
    # Dropout(0.5): eval-mode identity.
    v = jnp.dot(u.astype(jnp.bfloat16), w2_ref[...],
                preferred_element_type=jnp.float32) + b2_ref[...]
    out_ref[...] = v


def fc_head(g, w1, b1, s1, sh1, w2, b2):
    B = g.shape[0]
    Dout = w2.shape[1]
    return pl.pallas_call(
        _fc_kernel,
        out_shape=jax.ShapeDtypeStruct((B, Dout), jnp.float32),
    )(g, w1, b1, s1, sh1, w2, b2)


# ----------------------------------------------------------------------------
# Glue: kNN selection + neighbor gather.
# ----------------------------------------------------------------------------
def knn_idx(x, k):
    pd = pairwise_neg_dist(x)                       # (B, N, N) neg sq dists (f32)
    return lax.top_k(pd, k)[1]                      # (B, N, k) nearest incl. self


def edge_conv(x, k, p):
    # x: (B, N, C) f32
    idx = knn_idx(x, k)                             # (B, N, k)
    x_bf = x.astype(jnp.bfloat16)
    # TODO(synk): data-dependent neighbor gather stays in XLA glue; fusing it into
    # the kernel (scalar-prefetched idx + in-kernel gather) would remove this
    # (B, k, N, C) HBM round trip entirely.
    neigh = jax.vmap(lambda xb, ib: xb[ib])(x_bf, jnp.swapaxes(idx, 1, 2))  # (B,k,N,C)
    return edge_conv_core(neigh, x_bf, p["w_n"], p["w_c"], p["shift"])


# ----------------------------------------------------------------------------
# Parameter construction (deterministic, synthetic). BN folded, scale folded
# into bf16 weights; EdgeConv weight split into neighbor / center halves.
# ----------------------------------------------------------------------------
def _bn_fold(key, c):
    k1, k2, k3, k4 = jax.random.split(key, 4)
    gamma = 1.0 + 0.1 * jax.random.normal(k1, (c,), jnp.float32)
    beta = 0.1 * jax.random.normal(k2, (c,), jnp.float32)
    mean = 0.1 * jax.random.normal(k3, (c,), jnp.float32)
    var = jnp.abs(jax.random.normal(k4, (c,), jnp.float32)) + 0.5
    scale = gamma / jnp.sqrt(var + BN_EPS)
    shift = beta - mean * scale
    return scale, shift


def _edge_conv_params(key, c_in, c_out):
    kw, kb = jax.random.split(key)
    w = 0.1 * jax.random.normal(kw, (2 * c_in, c_out), jnp.float32)   # (2C, O)
    scale, shift = _bn_fold(kb, c_out)
    w_top, w_bot = w[:c_in], w[c_in:]                                 # diff / center halves
    return {
        "w_n": (w_top * scale[None, :]).astype(jnp.bfloat16),
        "w_c": ((w_bot - w_top) * scale[None, :]).astype(jnp.bfloat16),
        "shift": shift[None, :].astype(jnp.float32),
    }


def init_params(key, input_dim=3, output_dim=256):
    ks = jax.random.split(key, 9)
    p = {}
    p["ec1"] = _edge_conv_params(ks[0], input_dim, 64)
    p["ec2"] = _edge_conv_params(ks[1], 64, 64)
    p["ec3"] = _edge_conv_params(ks[2], 64, 64)

    p["conv1_w"] = (0.05 * jax.random.normal(ks[3], (192, 1024), jnp.float32)
                    ).astype(jnp.bfloat16)
    s, b = _bn_fold(ks[4], 1024)
    p["bn1_s"], p["bn1_b"] = s[None, :], b[None, :]

    p["lin1_w"] = (0.03 * jax.random.normal(ks[5], (1024, 512), jnp.float32)
                   ).astype(jnp.bfloat16)
    p["lin1_b"] = 0.05 * jax.random.normal(ks[6], (1, 512), jnp.float32)
    s1, b1 = _bn_fold(ks[7], 512)
    p["lin1_bn_s"], p["lin1_bn_b"] = s1[None, :], b1[None, :]

    kA, kB = jax.random.split(ks[8])
    p["lin2_w"] = (0.03 * jax.random.normal(kA, (512, output_dim), jnp.float32)
                   ).astype(jnp.bfloat16)
    p["lin2_b"] = 0.05 * jax.random.normal(kB, (1, output_dim), jnp.float32)
    return p


# ----------------------------------------------------------------------------
# Full DGCNN forward
# ----------------------------------------------------------------------------
@functools.partial(jax.jit, static_argnames=("k",))
def dgcnn_forward(params, x, k):
    # x: (B, N, 3) points, channels-last (matches the module's transpose check).
    x1 = edge_conv(x, k, params["ec1"])                               # (B, N, 64)
    x2 = edge_conv(x1, k, params["ec2"])                              # (B, N, 64)
    x3 = edge_conv(x2, k, params["ec3"])                              # (B, N, 64)
    h = jnp.concatenate([x1, x2, x3], axis=-1).astype(jnp.bfloat16)   # (B, N, 192)
    g = head_pool(h, params["conv1_w"], params["bn1_s"], params["bn1_b"])  # (B, 1024)
    return fc_head(g, params["lin1_w"], params["lin1_b"],
                   params["lin1_bn_s"], params["lin1_bn_b"],
                   params["lin2_w"], params["lin2_b"])                # (B, Dout)


if __name__ == "__main__":
    B, N, IN_DIM, K, OUT_DIM = 2, 16, 3, 4, 256
    key = jax.random.PRNGKey(0)
    kx, kp = jax.random.split(key)
    x = jax.random.normal(kx, (B, N, IN_DIM), jnp.float32)
    params = init_params(kp, input_dim=IN_DIM, output_dim=OUT_DIM)

    out = dgcnn_forward(params, x, K)
    out = jax.block_until_ready(out)

    assert out.shape == (B, OUT_DIM), out.shape
    assert bool(jnp.all(jnp.isfinite(out)))
    print("KERNEL_OK")
</pallas_src>

<mosaic_0001>
module attributes {stable_mosaic.version = 11 : i64} {
  func.func @_pairwise_kernel(%arg0: i32, %arg1: i32, %arg2: memref<1x16x3xf32, #tpu.memory_space<vmem>>, %arg3: memref<1x16x3xf32, #tpu.memory_space<vmem>>, %arg4: memref<1x16x16xf32, #tpu.memory_space<vmem>>) attributes {dimension_semantics = [#tpu.dimension_semantics<parallel>, #tpu.dimension_semantics<parallel>], iteration_bounds = array<i64: 2, 1>, scalar_prefetch = 0 : i64, scratch_operands = 0 : i64, tpu.core_type = #tpu.core_type<tc>, window_params = [{transform_indices = @transform_0, window_bounds = array<i64: 1, 16, 3>}, {transform_indices = @transform_1, window_bounds = array<i64: 1, 16, 3>}, {transform_indices = @transform_2, window_bounds = array<i64: 1, 16, 16>}]} {
    %c0 = arith.constant 0 : index
    %c0_0 = arith.constant 0 : index
    %c0_1 = arith.constant 0 : index
    %0 = vector.load %arg2[%c0, %c0_0, %c0_1] : memref<1x16x3xf32, #tpu.memory_space<vmem>>, vector<1x16x3xf32>
    %1 = vector.shape_cast %0 : vector<1x16x3xf32> to vector<16x3xf32>
    %c0_2 = arith.constant 0 : index
    %c0_3 = arith.constant 0 : index
    %c0_4 = arith.constant 0 : index
    %2 = vector.load %arg3[%c0_2, %c0_3, %c0_4] : memref<1x16x3xf32, #tpu.memory_space<vmem>>, vector<1x16x3xf32>
    %3 = vector.shape_cast %2 : vector<1x16x3xf32> to vector<16x3xf32>
    %cst = arith.constant dense<0.000000e+00> : vector<16x16xf32>
    %4 = tpu.matmul %1, %3, %cst {dimension_numbers = #tpu.dot_dimension_numbers<[1], [1], [0], [0], [0, 0, 1, 0], [], []>} : vector<16x3xf32>, vector<16x3xf32>, vector<16x16xf32> -> vector<16x16xf32>
    %5 = arith.mulf %1, %1 : vector<16x3xf32>
    %cst_5 = arith.constant dense<0.000000e+00> : vector<16xf32>
    %6 = vector.multi_reduction <add>, %5, %cst_5 [1] : vector<16x3xf32> to vector<16xf32>
    %7 = vector.shape_cast %6 : vector<16xf32> to vector<16x1xf32>
    %cst_6 = arith.constant 1.000000e+00 : f32
    %8 = vector.broadcast %cst_6 : f32 to vector<1x3xf32>
    %9 = arith.mulf %3, %3 : vector<16x3xf32>
    %cst_7 = arith.constant dense<0.000000e+00> : vector<1x16xf32>
    %10 = tpu.matmul %8, %9, %cst_7 {dimension_numbers = #tpu.dot_dimension_numbers<[1], [1], [0], [0], [0, 0, 1, 0], [], []>} : vector<1x3xf32>, vector<16x3xf32>, vector<1x16xf32> -> vector<1x16xf32>
    %cst_8 = arith.constant 2.000000e+00 : f32
    %11 = vector.broadcast %cst_8 : f32 to vector<16x16xf32>
    %12 = arith.mulf %11, %4 : vector<16x16xf32>
    %13 = vector.broadcast %7 : vector<16x1xf32> to vector<16x16xf32>
    %14 = arith.subf %12, %13 : vector<16x16xf32>
    %15 = vector.broadcast %10 : vector<1x16xf32> to vector<16x16xf32>
    %16 = arith.subf %14, %15 : vector<16x16xf32>
    %c0_9 = arith.constant 0 : index
    %c0_10 = arith.constant 0 : index
    %c0_11 = arith.constant 0 : index
    %17 = vector.load %arg4[%c0_9, %c0_10, %c0_11] : memref<1x16x16xf32, #tpu.memory_space<vmem>>, vector<1x16x16xf32>
    %18 = vector.shape_cast %17 : vector<1x16x16xf32> to vector<16x16xf32>
    %19 = vector.shape_cast %16 : vector<16x16xf32> to vector<1x16x16xf32>
    tpu.vector_store %arg4[%c0_9, %c0_10, %c0_11], %19 {strides = array<i32>} : memref<1x16x16xf32, #tpu.memory_space<vmem>>, vector<1x16x16xf32>,
    return
  }
  func.func @transform_0(%arg0: i32, %arg1: i32) -> (i32, i32, i32) {
    %c0_i32 = arith.constant 0 : i32
    %c0_i32_0 = arith.constant 0 : i32
    return %arg0, %arg1, %c0_i32 : i32, i32, i32
  }
  func.func @transform_1(%arg0: i32, %arg1: i32) -> (i32, i32, i32) {
    %c0_i32 = arith.constant 0 : i32
    %c0_i32_0 = arith.constant 0 : i32
    %c0_i32_1 = arith.constant 0 : i32
    return %arg0, %c0_i32, %c0_i32_0 : i32, i32, i32
  }
  func.func @transform_2(%arg0: i32, %arg1: i32) -> (i32, i32, i32) {
    %c0_i32 = arith.constant 0 : i32
    %c0_i32_0 = arith.constant 0 : i32
    return %arg0, %arg1, %c0_i32 : i32, i32, i32
  }
}

module attributes {stable_mosaic.version = 11 : i64} {
  func.func @_edge_conv_kernel(%arg0: i32, %arg1: i32, %arg2: memref<1x1x16x3xbf16, #tpu.memory_space<vmem>>, %arg3: memref<1x16x3xbf16, #tpu.memory_space<vmem>>, %arg4: memref<3x64xbf16, #tpu.memory_space<vmem>>, %arg5: memref<3x64xbf16, #tpu.memory_space<vmem>>, %arg6: memref<1x64xf32, #tpu.memory_space<vmem>>, %arg7: memref<1x16x64xf32, #tpu.memory_space<vmem>>, %arg8: memref<16x64xf32, #tpu.memory_space<vmem>>) attributes {dimension_semantics = [#tpu.dimension_semantics<parallel>, #tpu.dimension_semantics<arbitrary>], iteration_bounds = array<i64: 2, 4>, scalar_prefetch = 0 : i64, scratch_operands = 1 : i64, tpu.core_type = #tpu.core_type<tc>, window_params = [{transform_indices = @transform_0, window_bounds = array<i64: 1, 1, 16, 3>}, {transform_indices = @transform_1, window_bounds = array<i64: 1, 16, 3>}, {pipeline_mode = #tpu.pipeline_mode<synchronous>, transform_indices = @transform_2, window_bounds = array<i64: 3, 64>}, {pipeline_mode = #tpu.pipeline_mode<synchronous>, transform_indices = @transform_3, window_bounds = array<i64: 3, 64>}, {pipeline_mode = #tpu.pipeline_mode<synchronous>, transform_indices = @transform_4, window_bounds = array<i64: 1, 64>}, {transform_indices = @transform_5, window_bounds = array<i64: 1, 16, 64>}]} {
    %c0_i32 = arith.constant 0 : i32
    %0 = arith.cmpi eq, %arg1, %c0_i32 : i32
    %1 = arith.extui %0 : i1 to i32
    %c0_i32_0 = arith.constant 0 : i32
    %2 = arith.cmpi ne, %1, %c0_i32_0 : i32
    scf.if %2 {
      %c0_14 = arith.constant 0 : index
      %c0_15 = arith.constant 0 : index
      %c0_16 = arith.constant 0 : index
      %20 = vector.load %arg3[%c0_14, %c0_15, %c0_16] : memref<1x16x3xbf16, #tpu.memory_space<vmem>>, vector<1x16x3xbf16>
      %21 = vector.shape_cast %20 : vector<1x16x3xbf16> to vector<16x3xbf16>
      %c0_17 = arith.constant 0 : index
      %c0_18 = arith.constant 0 : index
      %22 = vector.load %arg5[%c0_17, %c0_18] : memref<3x64xbf16, #tpu.memory_space<vmem>>, vector<3x64xbf16>
      %cst_19 = arith.constant dense<0.000000e+00> : vector<16x64xf32>
      %23 = tpu.matmul %21, %22, %cst_19 {dimension_numbers = #tpu.dot_dimension_numbers<[1], [0], [0], [1], [0, 0, 1, 1], [], []>} : vector<16x3xbf16>, vector<3x64xbf16>, vector<16x64xf32> -> vector<16x64xf32>
      %c0_20 = arith.constant 0 : index
      %c0_21 = arith.constant 0 : index
      %24 = vector.load %arg6[%c0_20, %c0_21] : memref<1x64xf32, #tpu.memory_space<vmem>>, vector<1x64xf32>
      %25 = vector.broadcast %24 : vector<1x64xf32> to vector<16x64xf32>
      %26 = arith.addf %23, %25 : vector<16x64xf32>
      %c0_22 = arith.constant 0 : index
      %c0_23 = arith.constant 0 : index
      %27 = vector.load %arg8[%c0_22, %c0_23] : memref<16x64xf32, #tpu.memory_space<vmem>>, vector<16x64xf32>
      tpu.vector_store %arg8[%c0_22, %c0_23], %26 {strides = array<i32>} : memref<16x64xf32, #tpu.memory_space<vmem>>, vector<16x64xf32>,
    } else {
    }
    %c0 = arith.constant 0 : index
    %c0_1 = arith.constant 0 : index
    %c0_2 = arith.constant 0 : index
    %c0_3 = arith.constant 0 : index
    %3 = vector.load %arg2[%c0, %c0_1, %c0_2, %c0_3] : memref<1x1x16x3xbf16, #tpu.memory_space<vmem>>, vector<1x1x16x3xbf16>
    %4 = vector.shape_cast %3 : vector<1x1x16x3xbf16> to vector<16x3xbf16>
    %c0_4 = arith.constant 0 : index
    %c0_5 = arith.constant 0 : index
    %5 = vector.load %arg4[%c0_4, %c0_5] : memref<3x64xbf16, #tpu.memory_space<vmem>>, vector<3x64xbf16>
    %cst = arith.constant dense<0.000000e+00> : vector<16x64xf32>
    %6 = tpu.matmul %4, %5, %cst {dimension_numbers = #tpu.dot_dimension_numbers<[1], [0], [0], [1], [0, 0, 1, 1], [], []>} : vector<16x3xbf16>, vector<3x64xbf16>, vector<16x64xf32> -> vector<16x64xf32>
    %c0_6 = arith.constant 0 : index
    %c0_7 = arith.constant 0 : index
    %7 = vector.load %arg8[%c0_6, %c0_7] : memref<16x64xf32, #tpu.memory_space<vmem>>, vector<16x64xf32>
    %8 = arith.addf %6, %7 : vector<16x64xf32>
    %cst_8 = arith.constant 0.000000e+00 : f32
    %9 = vector.broadcast %cst_8 : f32 to vector<16x64xf32>
    %10 = arith.cmpf ogt, %8, %9 : vector<16x64xf32>
    %cst_9 = arith.constant 2.000000e-01 : f32
    %11 = vector.broadcast %cst_9 : f32 to vector<16x64xf32>
    %12 = arith.mulf %11, %8 : vector<16x64xf32>
    %13 = arith.select %10, %8, %12 : vector<16x64xi1>, vector<16x64xf32>
    %c0_i32_10 = arith.constant 0 : i32
    %14 = arith.cmpi eq, %arg1, %c0_i32_10 : i32
    %15 = arith.extui %14 : i1 to i32
    %c0_i32_11 = arith.constant 0 : i32
    %16 = arith.cmpi ne, %15, %c0_i32_11 : i32
    scf.if %16 {
      %c0_14 = arith.constant 0 : index
      %c0_15 = arith.constant 0 : index
      %c0_16 = arith.constant 0 : index
      %20 = vector.load %arg7[%c0_14, %c0_15, %c0_16] : memref<1x16x64xf32, #tpu.memory_space<vmem>>, vector<1x16x64xf32>
      %21 = vector.shape_cast %20 : vector<1x16x64xf32> to vector<16x64xf32>
      %22 = vector.shape_cast %13 : vector<16x64xf32> to vector<1x16x64xf32>
      tpu.vector_store %arg7[%c0_14, %c0_15, %c0_16], %22 {strides = array<i32>} : memref<1x16x64xf32, #tpu.memory_space<vmem>>, vector<1x16x64xf32>,
    } else {
    }
    %c0_i32_12 = arith.constant 0 : i32
    %17 = arith.cmpi sgt, %arg1, %c0_i32_12 : i32
    %18 = arith.extui %17 : i1 to i32
    %c0_i32_13 = arith.constant 0 : i32
    %19 = arith.cmpi ne, %18, %c0_i32_13 : i32
    scf.if %19 {
      %c0_14 = arith.constant 0 : index
      %c0_15 = arith.constant 0 : index
      %c0_16 = arith.constant 0 : index
      %20 = vector.load %arg7[%c0_14, %c0_15, %c0_16] : memref<1x16x64xf32, #tpu.memory_space<vmem>>, vector<1x16x64xf32>
      %21 = vector.shape_cast %20 : vector<1x16x64xf32> to vector<16x64xf32>
      %22 = arith.maximumf %21, %13 : vector<16x64xf32>
      %c0_17 = arith.constant 0 : index
      %c0_18 = arith.constant 0 : index
      %c0_19 = arith.constant 0 : index
      %23 = vector.load %arg7[%c0_17, %c0_18, %c0_19] : memref<1x16x64xf32, #tpu.memory_space<vmem>>, vector<1x16x64xf32>
      %24 = vector.shape_cast %23 : vector<1x16x64xf32> to vector<16x64xf32>
      %25 = vector.shape_cast %22 : vector<16x64xf32> to vector<1x16x64xf32>
      tpu.vector_store %arg7[%c0_17, %c0_18, %c0_19], %25 {strides = array<i32>} : memref<1x16x64xf32, #tpu.memory_space<vmem>>, vector<1x16x64xf32>,
    } else {
    }
    return
  }
  func.func @transform_0(%arg0: i32, %arg1: i32) -> (i32, i32, i32, i32) {
    %c0_i32 = arith.constant 0 : i32
    %c0_i32_0 = arith.constant 0 : i32
    %c0_i32_1 = arith.constant 0 : i32
    return %arg0, %arg1, %c0_i32, %c0_i32_0 : i32, i32, i32, i32
  }
  func.func @transform_1(%arg0: i32, %arg1: i32) -> (i32, i32, i32) {
    %c0_i32 = arith.constant 0 : i32
    %c0_i32_0 = arith.constant 0 : i32
    %c0_i32_1 = arith.constant 0 : i32
    return %arg0, %c0_i32, %c0_i32_0 : i32, i32, i32
  }
  func.func @transform_2(%arg0: i32, %arg1: i32) -> (i32, i32) {
    %c0_i32 = arith.constant 0 : i32
    %c0_i32_0 = arith.constant 0 : i32
    %c0_i32_1 = arith.constant 0 : i32
    return %c0_i32, %c0_i32_0 : i32, i32
  }
  func.func @transform_3(%arg0: i32, %arg1: i32) -> (i32, i32) {
    %c0_i32 = arith.constant 0 : i32
    %c0_i32_0 = arith.constant 0 : i32
    %c0_i32_1 = arith.constant 0 : i32
    return %c0_i32, %c0_i32_0 : i32, i32
  }
  func.func @transform_4(%arg0: i32, %arg1: i32) -> (i32, i32) {
    %c0_i32 = arith.constant 0 : i32
    %c0_i32_0 = arith.constant 0 : i32
    %c0_i32_1 = arith.constant 0 : i32
    return %c0_i32, %c0_i32_0 : i32, i32
  }
  func.func @transform_5(%arg0: i32, %arg1: i32) -> (i32, i32, i32) {
    %c0_i32 = arith.constant 0 : i32
    %c0_i32_0 = arith.constant 0 : i32
    %c0_i32_1 = arith.constant 0 : i32
    return %arg0, %c0_i32, %c0_i32_0 : i32, i32, i32
  }
}

module attributes {stable_mosaic.version = 11 : i64} {
  func.func @_pairwise_kernel(%arg0: i32, %arg1: i32, %arg2: memref<1x16x64xf32, #tpu.memory_space<vmem>>, %arg3: memref<1x16x64xf32, #tpu.memory_space<vmem>>, %arg4: memref<1x16x16xf32, #tpu.memory_space<vmem>>) attributes {dimension_semantics = [#tpu.dimension_semantics<parallel>, #tpu.dimension_semantics<parallel>], iteration_bounds = array<i64: 2, 1>, scalar_prefetch = 0 : i64, scratch_operands = 0 : i64, tpu.core_type = #tpu.core_type<tc>, window_params = [{transform_indices = @transform_0, window_bounds = array<i64: 1, 16, 64>}, {transform_indices = @transform_1, window_bounds = array<i64: 1, 16, 64>}, {transform_indices = @transform_2, window_bounds = array<i64: 1, 16, 16>}]} {
    %c0 = arith.constant 0 : index
    %c0_0 = arith.constant 0 : index
    %c0_1 = arith.constant 0 : index
    %0 = vector.load %arg2[%c0, %c0_0, %c0_1] : memref<1x16x64xf32, #tpu.memory_space<vmem>>, vector<1x16x64xf32>
    %1 = vector.shape_cast %0 : vector<1x16x64xf32> to vector<16x64xf32>
    %c0_2 = arith.constant 0 : index
    %c0_3 = arith.constant 0 : index
    %c0_4 = arith.constant 0 : index
    %2 = vector.load %arg3[%c0_2, %c0_3, %c0_4] : memref<1x16x64xf32, #tpu.memory_space<vmem>>, vector<1x16x64xf32>
    %3 = vector.shape_cast %2 : vector<1x16x64xf32> to vector<16x64xf32>
    %cst = arith.constant dense<0.000000e+00> : vector<16x16xf32>
    %4 = tpu.matmul %1, %3, %cst {dimension_numbers = #tpu.dot_dimension_numbers<[1], [1], [0], [0], [0, 0, 1, 0], [], []>} : vector<16x64xf32>, vector<16x64xf32>, vector<16x16xf32> -> vector<16x16xf32>
    %5 = arith.mulf %1, %1 : vector<16x64xf32>
    %cst_5 = arith.constant dense<0.000000e+00> : vector<16xf32>
    %6 = vector.multi_reduction <add>, %5, %cst_5 [1] : vector<16x64xf32> to vector<16xf32>
    %7 = vector.shape_cast %6 : vector<16xf32> to vector<16x1xf32>
    %cst_6 = arith.constant 1.000000e+00 : f32
    %8 = vector.broadcast %cst_6 : f32 to vector<1x64xf32>
    %9 = arith.mulf %3, %3 : vector<16x64xf32>
    %cst_7 = arith.constant dense<0.000000e+00> : vector<1x16xf32>
    %10 = tpu.matmul %8, %9, %cst_7 {dimension_numbers = #tpu.dot_dimension_numbers<[1], [1], [0], [0], [0, 0, 1, 0], [], []>} : vector<1x64xf32>, vector<16x64xf32>, vector<1x16xf32> -> vector<1x16xf32>
    %cst_8 = arith.constant 2.000000e+00 : f32
    %11 = vector.broadcast %cst_8 : f32 to vector<16x16xf32>
    %12 = arith.mulf %11, %4 : vector<16x16xf32>
    %13 = vector.broadcast %7 : vector<16x1xf32> to vector<16x16xf32>
    %14 = arith.subf %12, %13 : vector<16x16xf32>
    %15 = vector.broadcast %10 : vector<1x16xf32> to vector<16x16xf32>
    %16 = arith.subf %14, %15 : vector<16x16xf32>
    %c0_9 = arith.constant 0 : index
    %c0_10 = arith.constant 0 : index
    %c0_11 = arith.constant 0 : index
    %17 = vector.load %arg4[%c0_9, %c0_10, %c0_11] : memref<1x16x16xf32, #tpu.memory_space<vmem>>, vector<1x16x16xf32>
    %18 = vector.shape_cast %17 : vector<1x16x16xf32> to vector<16x16xf32>
    %19 = vector.shape_cast %16 : vector<16x16xf32> to vector<1x16x16xf32>
    tpu.vector_store %arg4[%c0_9, %c0_10, %c0_11], %19 {strides = array<i32>} : memref<1x16x16xf32, #tpu.memory_space<vmem>>, vector<1x16x16xf32>,
    return
  }
  func.func @transform_0(%arg0: i32, %arg1: i32) -> (i32, i32, i32) {
    %c0_i32 = arith.constant 0 : i32
    %c0_i32_0 = arith.constant 0 : i32
    return %arg0, %arg1, %c0_i32 : i32, i32, i32
  }
  func.func @transform_1(%arg0: i32, %arg1: i32) -> (i32, i32, i32) {
    %c0_i32 = arith.constant 0 : i32
    %c0_i32_0 = arith.constant 0 : i32
    %c0_i32_1 = arith.constant 0 : i32
    return %arg0, %c0_i32, %c0_i32_0 : i32, i32, i32
  }
  func.func @transform_2(%arg0: i32, %arg1: i32) -> (i32, i32, i32) {
    %c0_i32 = arith.constant 0 : i32
    %c0_i32_0 = arith.constant 0 : i32
    return %arg0, %arg1, %c0_i32 : i32, i32, i32
  }
}

module attributes {stable_mosaic.version = 11 : i64} {
  func.func @_edge_conv_kernel(%arg0: i32, %arg1: i32, %arg2: memref<1x1x16x64xbf16, #tpu.memory_space<vmem>>, %arg3: memref<1x16x64xbf16, #tpu.memory_space<vmem>>, %arg4: memref<64x64xbf16, #tpu.memory_space<vmem>>, %arg5: memref<64x64xbf16, #tpu.memory_space<vmem>>, %arg6: memref<1x64xf32, #tpu.memory_space<vmem>>, %arg7: memref<1x16x64xf32, #tpu.memory_space<vmem>>, %arg8: memref<16x64xf32, #tpu.memory_space<vmem>>) attributes {dimension_semantics = [#tpu.dimension_semantics<parallel>, #tpu.dimension_semantics<arbitrary>], iteration_bounds = array<i64: 2, 4>, scalar_prefetch = 0 : i64, scratch_operands = 1 : i64, tpu.core_type = #tpu.core_type<tc>, window_params = [{transform_indices = @transform_0, window_bounds = array<i64: 1, 1, 16, 64>}, {transform_indices = @transform_1, window_bounds = array<i64: 1, 16, 64>}, {pipeline_mode = #tpu.pipeline_mode<synchronous>, transform_indices = @transform_2, window_bounds = array<i64: 64, 64>}, {pipeline_mode = #tpu.pipeline_mode<synchronous>, transform_indices = @transform_3, window_bounds = array<i64: 64, 64>}, {pipeline_mode = #tpu.pipeline_mode<synchronous>, transform_indices = @transform_4, window_bounds = array<i64: 1, 64>}, {transform_indices = @transform_5, window_bounds = array<i64: 1, 16, 64>}]} {
    %c0_i32 = arith.constant 0 : i32
    %0 = arith.cmpi eq, %arg1, %c0_i32 : i32
    %1 = arith.extui %0 : i1 to i32
    %c0_i32_0 = arith.constant 0 : i32
    %2 = arith.cmpi ne, %1, %c0_i32_0 : i32
    scf.if %2 {
      %c0_14 = arith.constant 0 : index
      %c0_15 = arith.constant 0 : index
      %c0_16 = arith.constant 0 : index
      %20 = vector.load %arg3[%c0_14, %c0_15, %c0_16] : memref<1x16x64xbf16, #tpu.memory_space<vmem>>, vector<1x16x64xbf16>
      %21 = vector.shape_cast %20 : vector<1x16x64xbf16> to vector<16x64xbf16>
      %c0_17 = arith.constant 0 : index
      %c0_18 = arith.constant 0 : index
      %22 = vector.load %arg5[%c0_17, %c0_18] : memref<64x64xbf16, #tpu.memory_space<vmem>>, vector<64x64xbf16>
      %cst_19 = arith.constant dense<0.000000e+00> : vector<16x64xf32>
      %23 = tpu.matmul %21, %22, %cst_19 {dimension_numbers = #tpu.dot_dimension_numbers<[1], [0], [0], [1], [0, 0, 1, 1], [], []>} : vector<16x64xbf16>, vector<64x64xbf16>, vector<16x64xf32> -> vector<16x64xf32>
      %c0_20 = arith.constant 0 : index
      %c0_21 = arith.constant 0 : index
      %24 = vector.load %arg6[%c0_20, %c0_21] : memref<1x64xf32, #tpu.memory_space<vmem>>, vector<1x64xf32>
      %25 = vector.broadcast %24 : vector<1x64xf32> to vector<16x64xf32>
      %26 = arith.addf %23, %25 : vector<16x64xf32>
      %c0_22 = arith.constant 0 : index
      %c0_23 = arith.constant 0 : index
      %27 = vector.load %arg8[%c0_22, %c0_23] : memref<16x64xf32, #tpu.memory_space<vmem>>, vector<16x64xf32>
      tpu.vector_store %arg8[%c0_22, %c0_23], %26 {strides = array<i32>} : memref<16x64xf32, #tpu.memory_space<vmem>>, vector<16x64xf32>,
    } else {
    }
    %c0 = arith.constant 0 : index
    %c0_1 = arith.constant 0 : index
    %c0_2 = arith.constant 0 : index
    %c0_3 = arith.constant 0 : index
    %3 = vector.load %arg2[%c0, %c0_1, %c0_2, %c0_3] : memref<1x1x16x64xbf16, #tpu.memory_space<vmem>>, vector<1x1x16x64xbf16>
    %4 = vector.shape_cast %3 : vector<1x1x16x64xbf16> to vector<16x64xbf16>
    %c0_4 = arith.constant 0 : index
    %c0_5 = arith.constant 0 : index
    %5 = vector.load %arg4[%c0_4, %c0_5] : memref<64x64xbf16, #tpu.memory_space<vmem>>, vector<64x64xbf16>
    %cst = arith.constant dense<0.000000e+00> : vector<16x64xf32>
    %6 = tpu.matmul %4, %5, %cst {dimension_numbers = #tpu.dot_dimension_numbers<[1], [0], [0], [1], [0, 0, 1, 1], [], []>} : vector<16x64xbf16>, vector<64x64xbf16>, vector<16x64xf32> -> vector<16x64xf32>
    %c0_6 = arith.constant 0 : index
    %c0_7 = arith.constant 0 : index
    %7 = vector.load %arg8[%c0_6, %c0_7] : memref<16x64xf32, #tpu.memory_space<vmem>>, vector<16x64xf32>
    %8 = arith.addf %6, %7 : vector<16x64xf32>
    %cst_8 = arith.constant 0.000000e+00 : f32
    %9 = vector.broadcast %cst_8 : f32 to vector<16x64xf32>
    %10 = arith.cmpf ogt, %8, %9 : vector<16x64xf32>
    %cst_9 = arith.constant 2.000000e-01 : f32
    %11 = vector.broadcast %cst_9 : f32 to vector<16x64xf32>
    %12 = arith.mulf %11, %8 : vector<16x64xf32>
    %13 = arith.select %10, %8, %12 : vector<16x64xi1>, vector<16x64xf32>
    %c0_i32_10 = arith.constant 0 : i32
    %14 = arith.cmpi eq, %arg1, %c0_i32_10 : i32
    %15 = arith.extui %14 : i1 to i32
    %c0_i32_11 = arith.constant 0 : i32
    %16 = arith.cmpi ne, %15, %c0_i32_11 : i32
    scf.if %16 {
      %c0_14 = arith.constant 0 : index
      %c0_15 = arith.constant 0 : index
      %c0_16 = arith.constant 0 : index
      %20 = vector.load %arg7[%c0_14, %c0_15, %c0_16] : memref<1x16x64xf32, #tpu.memory_space<vmem>>, vector<1x16x64xf32>
      %21 = vector.shape_cast %20 : vector<1x16x64xf32> to vector<16x64xf32>
      %22 = vector.shape_cast %13 : vector<16x64xf32> to vector<1x16x64xf32>
      tpu.vector_store %arg7[%c0_14, %c0_15, %c0_16], %22 {strides = array<i32>} : memref<1x16x64xf32, #tpu.memory_space<vmem>>, vector<1x16x64xf32>,
    } else {
    }
    %c0_i32_12 = arith.constant 0 : i32
    %17 = arith.cmpi sgt, %arg1, %c0_i32_12 : i32
    %18 = arith.extui %17 : i1 to i32
    %c0_i32_13 = arith.constant 0 : i32
    %19 = arith.cmpi ne, %18, %c0_i32_13 : i32
    scf.if %19 {
      %c0_14 = arith.constant 0 : index
      %c0_15 = arith.constant 0 : index
      %c0_16 = arith.constant 0 : index
      %20 = vector.load %arg7[%c0_14, %c0_15, %c0_16] : memref<1x16x64xf32, #tpu.memory_space<vmem>>, vector<1x16x64xf32>
      %21 = vector.shape_cast %20 : vector<1x16x64xf32> to vector<16x64xf32>
      %22 = arith.maximumf %21, %13 : vector<16x64xf32>
      %c0_17 = arith.constant 0 : index
      %c0_18 = arith.constant 0 : index
      %c0_19 = arith.constant 0 : index
      %23 = vector.load %arg7[%c0_17, %c0_18, %c0_19] : memref<1x16x64xf32, #tpu.memory_space<vmem>>, vector<1x16x64xf32>
      %24 = vector.shape_cast %23 : vector<1x16x64xf32> to vector<16x64xf32>
      %25 = vector.shape_cast %22 : vector<16x64xf32> to vector<1x16x64xf32>
      tpu.vector_store %arg7[%c0_17, %c0_18, %c0_19], %25 {strides = array<i32>} : memref<1x16x64xf32, #tpu.memory_space<vmem>>, vector<1x16x64xf32>,
    } else {
    }
    return
  }
  func.func @transform_0(%arg0: i32, %arg1: i32) -> (i32, i32, i32, i32) {
    %c0_i32 = arith.constant 0 : i32
    %c0_i32_0 = arith.constant 0 : i32
    %c0_i32_1 = arith.constant 0 : i32
    return %arg0, %arg1, %c0_i32, %c0_i32_0 : i32, i32, i32, i32
  }
  func.func @transform_1(%arg0: i32, %arg1: i32) -> (i32, i32, i32) {
    %c0_i32 = arith.constant 0 : i32
    %c0_i32_0 = arith.constant 0 : i32
    %c0_i32_1 = arith.constant 0 : i32
    return %arg0, %c0_i32, %c0_i32_0 : i32, i32, i32
  }
  func.func @transform_2(%arg0: i32, %arg1: i32) -> (i32, i32) {
    %c0_i32 = arith.constant 0 : i32
    %c0_i32_0 = arith.constant 0 : i32
    %c0_i32_1 = arith.constant 0 : i32
    return %c0_i32, %c0_i32_0 : i32, i32
  }
  func.func @transform_3(%arg0: i32, %arg1: i32) -> (i32, i32) {
    %c0_i32 = arith.constant 0 : i32
    %c0_i32_0 = arith.constant 0 : i32
    %c0_i32_1 = arith.constant 0 : i32
    return %c0_i32, %c0_i32_0 : i32, i32
  }
  func.func @transform_4(%arg0: i32, %arg1: i32) -> (i32, i32) {
    %c0_i32 = arith.constant 0 : i32
    %c0_i32_0 = arith.constant 0 : i32
    %c0_i32_1 = arith.constant 0 : i32
    return %c0_i32, %c0_i32_0 : i32, i32
  }
  func.func @transform_5(%arg0: i32, %arg1: i32) -> (i32, i32, i32) {
    %c0_i32 = arith.constant 0 : i32
    %c0_i32_0 = arith.constant 0 : i32
    %c0_i32_1 = arith.constant 0 : i32
    return %arg0, %c0_i32, %c0_i32_0 : i32, i32, i32
  }
}

module attributes {stable_mosaic.version = 11 : i64} {
  func.func @_pointwise_max_kernel(%arg0: i32, %arg1: i32, %arg2: memref<1x16x192xbf16, #tpu.memory_space<vmem>>, %arg3: memref<192x1024xbf16, #tpu.memory_space<vmem>>, %arg4: memref<1x1024xf32, #tpu.memory_space<vmem>>, %arg5: memref<1x1024xf32, #tpu.memory_space<vmem>>, %arg6: memref<1x1x1024xf32, #tpu.memory_space<vmem>>) attributes {dimension_semantics = [#tpu.dimension_semantics<parallel>, #tpu.dimension_semantics<arbitrary>], iteration_bounds = array<i64: 2, 1>, scalar_prefetch = 0 : i64, scratch_operands = 0 : i64, tpu.core_type = #tpu.core_type<tc>, window_params = [{transform_indices = @transform_0, window_bounds = array<i64: 1, 16, 192>}, {pipeline_mode = #tpu.pipeline_mode<synchronous>, transform_indices = @transform_1, window_bounds = array<i64: 192, 1024>}, {pipeline_mode = #tpu.pipeline_mode<synchronous>, transform_indices = @transform_2, window_bounds = array<i64: 1, 1024>}, {pipeline_mode = #tpu.pipeline_mode<synchronous>, transform_indices = @transform_3, window_bounds = array<i64: 1, 1024>}, {transform_indices = @transform_4, window_bounds = array<i64: 1, 1, 1024>}]} {
    %c0 = arith.constant 0 : index
    %c0_0 = arith.constant 0 : index
    %c0_1 = arith.constant 0 : index
    %0 = vector.load %arg2[%c0, %c0_0, %c0_1] : memref<1x16x192xbf16, #tpu.memory_space<vmem>>, vector<1x16x192xbf16>
    %1 = vector.shape_cast %0 : vector<1x16x192xbf16> to vector<16x192xbf16>
    %c0_2 = arith.constant 0 : index
    %c0_3 = arith.constant 0 : index
    %2 = vector.load %arg3[%c0_2, %c0_3] : memref<192x1024xbf16, #tpu.memory_space<vmem>>, vector<192x1024xbf16>
    %cst = arith.constant dense<0.000000e+00> : vector<16x1024xf32>
    %3 = tpu.matmul %1, %2, %cst {dimension_numbers = #tpu.dot_dimension_numbers<[1], [0], [0], [1], [0, 0, 1, 1], [], []>} : vector<16x192xbf16>, vector<192x1024xbf16>, vector<16x1024xf32> -> vector<16x1024xf32>
    %c0_4 = arith.constant 0 : index
    %c0_5 = arith.constant 0 : index
    %4 = vector.load %arg4[%c0_4, %c0_5] : memref<1x1024xf32, #tpu.memory_space<vmem>>, vector<1x1024xf32>
    %5 = vector.broadcast %4 : vector<1x1024xf32> to vector<16x1024xf32>
    %6 = arith.mulf %3, %5 : vector<16x1024xf32>
    %c0_6 = arith.constant 0 : index
    %c0_7 = arith.constant 0 : index
    %7 = vector.load %arg5[%c0_6, %c0_7] : memref<1x1024xf32, #tpu.memory_space<vmem>>, vector<1x1024xf32>
    %8 = vector.broadcast %7 : vector<1x1024xf32> to vector<16x1024xf32>
    %9 = arith.addf %6, %8 : vector<16x1024xf32>
    %cst_8 = arith.constant 0.000000e+00 : f32
    %10 = vector.broadcast %cst_8 : f32 to vector<16x1024xf32>
    %11 = arith.cmpf ogt, %9, %10 : vector<16x1024xf32>
    %cst_9 = arith.constant 2.000000e-01 : f32
    %12 = vector.broadcast %cst_9 : f32 to vector<16x1024xf32>
    %13 = arith.mulf %12, %9 : vector<16x1024xf32>
    %14 = arith.select %11, %9, %13 : vector<16x1024xi1>, vector<16x1024xf32>
    %cst_10 = arith.constant dense<0xFF800000> : vector<1024xf32>
    %15 = vector.multi_reduction <maximumf>, %14, %cst_10 [0] : vector<16x1024xf32> to vector<1024xf32>
    %16 = vector.shape_cast %15 : vector<1024xf32> to vector<1x1024xf32>
    %c0_i32 = arith.constant 0 : i32
    %17 = arith.cmpi eq, %arg1, %c0_i32 : i32
    %18 = arith.extui %17 : i1 to i32
    %c0_i32_11 = arith.constant 0 : i32
    %19 = arith.cmpi ne, %18, %c0_i32_11 : i32
    scf.if %19 {
      %c0_14 = arith.constant 0 : index
      %c0_15 = arith.constant 0 : index
      %c0_16 = arith.constant 0 : index
      %23 = vector.load %arg6[%c0_14, %c0_15, %c0_16] : memref<1x1x1024xf32, #tpu.memory_space<vmem>>, vector<1x1x1024xf32>
      %24 = vector.shape_cast %23 : vector<1x1x1024xf32> to vector<1x1024xf32>
      %25 = vector.shape_cast %16 : vector<1x1024xf32> to vector<1x1x1024xf32>
      tpu.vector_store %arg6[%c0_14, %c0_15, %c0_16], %25 {strides = array<i32>} : memref<1x1x1024xf32, #tpu.memory_space<vmem>>, vector<1x1x1024xf32>,
    } else {
    }
    %c0_i32_12 = arith.constant 0 : i32
    %20 = arith.cmpi sgt, %arg1, %c0_i32_12 : i32
    %21 = arith.extui %20 : i1 to i32
    %c0_i32_13 = arith.constant 0 : i32
    %22 = arith.cmpi ne, %21, %c0_i32_13 : i32
    scf.if %22 {
      %c0_14 = arith.constant 0 : index
      %c0_15 = arith.constant 0 : index
      %c0_16 = arith.constant 0 : index
      %23 = vector.load %arg6[%c0_14, %c0_15, %c0_16] : memref<1x1x1024xf32, #tpu.memory_space<vmem>>, vector<1x1x1024xf32>
      %24 = vector.shape_cast %23 : vector<1x1x1024xf32> to vector<1x1024xf32>
      %25 = arith.maximumf %24, %16 : vector<1x1024xf32>
      %c0_17 = arith.constant 0 : index
      %c0_18 = arith.constant 0 : index
      %c0_19 = arith.constant 0 : index
      %26 = vector.load %arg6[%c0_17, %c0_18, %c0_19] : memref<1x1x1024xf32, #tpu.memory_space<vmem>>, vector<1x1x1024xf32>
      %27 = vector.shape_cast %26 : vector<1x1x1024xf32> to vector<1x1024xf32>
      %28 = vector.shape_cast %25 : vector<1x1024xf32> to vector<1x1x1024xf32>
      tpu.vector_store %arg6[%c0_17, %c0_18, %c0_19], %28 {strides = array<i32>} : memref<1x1x1024xf32, #tpu.memory_space<vmem>>, vector<1x1x1024xf32>,
    } else {
    }
    return
  }
  func.func @transform_0(%arg0: i32, %arg1: i32) -> (i32, i32, i32) {
    %c0_i32 = arith.constant 0 : i32
    %c0_i32_0 = arith.constant 0 : i32
    return %arg0, %arg1, %c0_i32 : i32, i32, i32
  }
  func.func @transform_1(%arg0: i32, %arg1: i32) -> (i32, i32) {
    %c0_i32 = arith.constant 0 : i32
    %c0_i32_0 = arith.constant 0 : i32
    %c0_i32_1 = arith.constant 0 : i32
    return %c0_i32, %c0_i32_0 : i32, i32
  }
  func.func @transform_2(%arg0: i32, %arg1: i32) -> (i32, i32) {
    %c0_i32 = arith.constant 0 : i32
    %c0_i32_0 = arith.constant 0 : i32
    %c0_i32_1 = arith.constant 0 : i32
    return %c0_i32, %c0_i32_0 : i32, i32
  }
  func.func @transform_3(%arg0: i32, %arg1: i32) -> (i32, i32) {
    %c0_i32 = arith.constant 0 : i32
    %c0_i32_0 = arith.constant 0 : i32
    %c0_i32_1 = arith.constant 0 : i32
    return %c0_i32, %c0_i32_0 : i32, i32
  }
  func.func @transform_4(%arg0: i32, %arg1: i32) -> (i32, i32, i32) {
    %c0_i32 = arith.constant 0 : i32
    %c0_i32_0 = arith.constant 0 : i32
    %c0_i32_1 = arith.constant 0 : i32
    return %arg0, %c0_i32, %c0_i32_0 : i32, i32, i32
  }
}

module attributes {stable_mosaic.version = 11 : i64} {
  func.func @_fc_kernel(%arg0: memref<2x1024xf32, #tpu.memory_space<vmem>>, %arg1: memref<1024x512xbf16, #tpu.memory_space<vmem>>, %arg2: memref<1x512xf32, #tpu.memory_space<vmem>>, %arg3: memref<1x512xf32, #tpu.memory_space<vmem>>, %arg4: memref<1x512xf32, #tpu.memory_space<vmem>>, %arg5: memref<512x256xbf16, #tpu.memory_space<vmem>>, %arg6: memref<1x256xf32, #tpu.memory_space<vmem>>, %arg7: memref<2x256xf32, #tpu.memory_space<vmem>>) attributes {dimension_semantics = [], scalar_prefetch = 0 : i64, scratch_operands = 0 : i64, tpu.core_type = #tpu.core_type<tc>} {
    %c0 = arith.constant 0 : index
    %c0_0 = arith.constant 0 : index
    %0 = vector.load %arg0[%c0, %c0_0] : memref<2x1024xf32, #tpu.memory_space<vmem>>, vector<2x1024xf32>
    %1 = arith.truncf %0 : vector<2x1024xf32> to vector<2x1024xbf16>
    %c0_1 = arith.constant 0 : index
    %c0_2 = arith.constant 0 : index
    %2 = vector.load %arg1[%c0_1, %c0_2] : memref<1024x512xbf16, #tpu.memory_space<vmem>>, vector<1024x512xbf16>
    %cst = arith.constant dense<0.000000e+00> : vector<2x512xf32>
    %3 = tpu.matmul %1, %2, %cst {dimension_numbers = #tpu.dot_dimension_numbers<[1], [0], [0], [1], [0, 0, 1, 1], [], []>} : vector<2x1024xbf16>, vector<1024x512xbf16>, vector<2x512xf32> -> vector<2x512xf32>
    %c0_3 = arith.constant 0 : index
    %c0_4 = arith.constant 0 : index
    %4 = vector.load %arg2[%c0_3, %c0_4] : memref<1x512xf32, #tpu.memory_space<vmem>>, vector<1x512xf32>
    %5 = vector.broadcast %4 : vector<1x512xf32> to vector<2x512xf32>
    %6 = arith.addf %3, %5 : vector<2x512xf32>
    %c0_5 = arith.constant 0 : index
    %c0_6 = arith.constant 0 : index
    %7 = vector.load %arg3[%c0_5, %c0_6] : memref<1x512xf32, #tpu.memory_space<vmem>>, vector<1x512xf32>
    %8 = vector.broadcast %7 : vector<1x512xf32> to vector<2x512xf32>
    %9 = arith.mulf %6, %8 : vector<2x512xf32>
    %c0_7 = arith.constant 0 : index
    %c0_8 = arith.constant 0 : index
    %10 = vector.load %arg4[%c0_7, %c0_8] : memref<1x512xf32, #tpu.memory_space<vmem>>, vector<1x512xf32>
    %11 = vector.broadcast %10 : vector<1x512xf32> to vector<2x512xf32>
    %12 = arith.addf %9, %11 : vector<2x512xf32>
    %cst_9 = arith.constant 0.000000e+00 : f32
    %13 = vector.broadcast %cst_9 : f32 to vector<2x512xf32>
    %14 = arith.cmpf ogt, %12, %13 : vector<2x512xf32>
    %cst_10 = arith.constant 2.000000e-01 : f32
    %15 = vector.broadcast %cst_10 : f32 to vector<2x512xf32>
    %16 = arith.mulf %15, %12 : vector<2x512xf32>
    %17 = arith.select %14, %12, %16 : vector<2x512xi1>, vector<2x512xf32>
    %18 = arith.truncf %17 : vector<2x512xf32> to vector<2x512xbf16>
    %c0_11 = arith.constant 0 : index
    %c0_12 = arith.constant 0 : index
    %19 = vector.load %arg5[%c0_11, %c0_12] : memref<512x256xbf16, #tpu.memory_space<vmem>>, vector<512x256xbf16>
    %cst_13 = arith.constant dense<0.000000e+00> : vector<2x256xf32>
    %20 = tpu.matmul %18, %19, %cst_13 {dimension_numbers = #tpu.dot_dimension_numbers<[1], [0], [0], [1], [0, 0, 1, 1], [], []>} : vector<2x512xbf16>, vector<512x256xbf16>, vector<2x256xf32> -> vector<2x256xf32>
    %c0_14 = arith.constant 0 : index
    %c0_15 = arith.constant 0 : index
    %21 = vector.load %arg6[%c0_14, %c0_15] : memref<1x256xf32, #tpu.memory_space<vmem>>, vector<1x256xf32>
    %22 = vector.broadcast %21 : vector<1x256xf32> to vector<2x256xf32>
    %23 = arith.addf %20, %22 : vector<2x256xf32>
    %c0_16 = arith.constant 0 : index
    %c0_17 = arith.constant 0 : index
    %24 = vector.load %arg7[%c0_16, %c0_17] : memref<2x256xf32, #tpu.memory_space<vmem>>, vector<2x256xf32>
    tpu.vector_store %arg7[%c0_16, %c0_17], %23 {strides = array<i32>} : memref<2x256xf32, #tpu.memory_space<vmem>>, vector<2x256xf32>,
    return
  }
}

</mosaic_0001>

<llo_original>
// kernel: dgcnn_forward.8
$region0: #{dgcnn_forward.8}
  #allocation0 [shape = 'u32[]', space=smem, size = 0x4, offset = 0x4, fixed_abs, tag = 'smem constant byte address 0x4 - core index']
  #allocation1 [shape = 'u32[144,128]{1,0:T(1,128)}', space=vmem, size = 0x12000, scoped, tag = 'internal scratch']
  %s0 = inlined_call_operand.vmem [shape: f32[2,16,3], index: 0, kind: input, shape index: {}, may-alias: {0,1}]
  %s1 = inlined_call_operand.vmem [shape: f32[2,16,3], index: 1, kind: input, shape index: {}, may-alias: {0,1}]
  %s2 = inlined_call_operand.vmem [shape: f32[2,16,16], index: 2, kind: output, shape index: {}]
  %s3 = sld [smem:[#allocation0]]
  $region41: #{dgcnn_forward.8} parent=0
    _
  %s5 = ssub.s32 1, %s3
  %s6 = scalar_select 0, %s5, %s3
  loop: start=0, step=1, limit=4
  $region2: #{dgcnn_forward.8} parent=0 // loop_pre_header
    _
  $region3: #{dgcnn_forward.8} parent=0 // loop_header
    %s8 = sphi 0, %s12
    %p9 = scmp.ge.s32.totalorder %s8, 4
    %s15 = sphi 0, %s27
    %s16 = sphi 0, %s23
    %s17 = sphi 0, %s15
    %s18 = sphi 0, %s16
    %s19 = sphi 0, %s17
    %s20 = sphi 0, %s18
    %s32 = sphi 0, %s34
    %s35 = sphi 0, %s32
    %s36 = sphi 0, %s35
    %s52 = sphi 0, %s36
    %s58 = sphi 0, %s60
    %s61 = sphi 0, %s58
    %s62 = sphi 0, %s61
    %s78 = sphi 0, %s62
    %s86 = sphi 0, %s88
    %s89 = sphi 0, %s86
    %s90 = sphi 0, %s89
    %s106 = sphi 0, %s90
  $region4: #{dgcnn_forward.8} parent=0 // loop_header_branch
    %11 = sbr.rel (%p9) target = $region8
  $region5: #{dgcnn_forward.8} parent=0 // loop_body
    %s13 = ssub.s32 %s8, 1
    %s14 = ssub.s32 %s8, 2
    %s21 = sadd.s32 1, %s16
    %p22 = scmp.ge.s32.totalorder %s21, 1
    %s23 = scalar_select %p22, 0, %s21
    %s24 = sadd.s32 1, %s15
    %s25 = scalar_select %p22, %s24, %s15
    %p26 = scmp.ge.s32.totalorder %s25, 2
    %s27 = scalar_select %p26, 0, %s25
    %s28 = ssub.s32 %s15, %s27
    %s29 = ssub.s32 %s16, %s23
    %s30 = sor.u32 %s28, %s29
    %p31 = scmp.eq.s32.totalorder %s30, 0
    %s33 = sadd.s32 %s32, 1
    %s34 = scalar_select %p31, %s32, %s33
    %p37 = pneg %p31
    %p38 = scmp.eq.s32.totalorder %s8, 1
    %p39 = por %p37, %p38
    %p40 = scmp.ne.s32.totalorder %s32, %s35
    %p41 = scmp.eq.s32.totalorder %s8, 0
    %p42 = por %p40, %p41
    %p43 = scmp.ne.s32.totalorder %s32, %s35
    %p44 = scmp.eq.s32.totalorder %s13, 1
    %p45 = por %p43, %p44
    %p46 = scmp.ne.s32.totalorder %s35, %s36
    %p47 = scmp.eq.s32.totalorder %s13, 0
    %p48 = por %p46, %p47
    %p49 = scmp.ne.s32.totalorder %s35, %s36
    %p50 = scmp.eq.s32.totalorder %s14, 1
    %p51 = por %p49, %p50
    %p53 = scmp.ne.s32.totalorder %s36, %s52
    %p54 = scmp.eq.s32.totalorder %s14, 0
    %p55 = por %p53, %p54
    %s56 = ssub.s32 %s15, %s27
    %p57 = scmp.eq.s32.totalorder %s56, 0
    %s59 = sadd.s32 %s58, 1
    %s60 = scalar_select %p57, %s58, %s59
    %p63 = pneg %p57
    %p64 = scmp.eq.s32.totalorder %s8, 1
    %p65 = por %p63, %p64
    %p66 = scmp.ne.s32.totalorder %s58, %s61
    %p67 = scmp.eq.s32.totalorder %s8, 0
    %p68 = por %p66, %p67
    %p69 = scmp.ne.s32.totalorder %s58, %s61
    %p70 = scmp.eq.s32.totalorder %s13, 1
    %p71 = por %p69, %p70
    %p72 = scmp.ne.s32.totalorder %s61, %s62
    %p73 = scmp.eq.s32.totalorder %s13, 0
    %p74 = por %p72, %p73
    %p75 = scmp.ne.s32.totalorder %s61, %s62
    %p76 = scmp.eq.s32.totalorder %s14, 1
    %p77 = por %p75, %p76
    %p79 = scmp.ne.s32.totalorder %s62, %s78
    %p80 = scmp.eq.s32.totalorder %s14, 0
    %p81 = por %p79, %p80
    %s82 = ssub.s32 %s15, %s27
    %s83 = ssub.s32 %s16, %s23
    %s84 = sor.u32 %s82, %s83
    %p85 = scmp.eq.s32.totalorder %s84, 0
    %s87 = sadd.s32 %s86, 1
    %s88 = scalar_select %p85, %s86, %s87
    %p91 = pneg %p85
    %p92 = scmp.eq.s32.totalorder %s8, 1
    %p93 = por %p91, %p92
    %p94 = scmp.ne.s32.totalorder %s86, %s89
    %p95 = scmp.eq.s32.totalorder %s8, 0
    %p96 = por %p94, %p95
    %p97 = scmp.ne.s32.totalorder %s86, %s89
    %p98 = scmp.eq.s32.totalorder %s13, 1
    %p99 = por %p97, %p98
    %p100 = scmp.ne.s32.totalorder %s89, %s90
    %p101 = scmp.eq.s32.totalorder %s13, 0
    %p102 = por %p100, %p101
    %p103 = scmp.ne.s32.totalorder %s89, %s90
    %p104 = scmp.eq.s32.totalorder %s14, 1
    %p105 = por %p103, %p104
    %p107 = scmp.ne.s32.totalorder %s90, %s106
    %p108 = scmp.eq.s32.totalorder %s14, 0
    %p109 = por %p107, %p108
    %p110 = scmp.le.s32.totalorder 1, %s8
    %p111 = scmp.lt.s32.totalorder %s8, 3
    %p112 = pnand %p110, %p111
    %p113 = pneg %p112
    // Predicated region
    $region9: #{dgcnn_forward.8} parent=5 // pred_check
      _
    $region10: #{dgcnn_forward.8} parent=5 // pred_check_branch
      %115 = sbr.rel (%p112) target = $region12
    $region11: #{dgcnn_forward.8} parent=5 // pred_region
      %s116 = ssub.s32 %s8, 1
    $region12: #{dgcnn_forward.8} parent=5 // pred_fallthru
      _
    %p117 = scmp.lt.s32.totalorder %s8, 2
    // Predicated region
    $region13: #{dgcnn_forward.8} parent=5 // pred_check
      %p118 = pneg %p117
    $region14: #{dgcnn_forward.8} parent=5 // pred_check_branch
      %120 = sbr.rel (%p118) target = $region16
    $region15: #{dgcnn_forward.8} parent=5 // pred_region
      // Predicated region
      $region17: #{dgcnn_forward.8} parent=15 // pred_check
        %p121 = pneg %p42
      $region18: #{dgcnn_forward.8} parent=15 // pred_check_branch
        %123 = sbr.rel (%p121) target = $region20
      $region19: #{dgcnn_forward.8} parent=15 // pred_region
        %s124 = smul.u32 2, %s16
        %p125 = scmp.lt.s32.totalorder %s15, 1
        %s126 = scalar_select %p125, %s15, 1
        %p127 = scmp.lt.s32.totalorder %s124, 1
        %s128 = scalar_select %p127, %s124, 1
        %s129 = smul.addr %s126, 2
        %s130 = sadd.s32 %s128, %s129
        %s131 = smul.addr %s130, 8
        %s132 = scalar_lea.vmem %s0, %s131
        %s133 = smul.u32 2, %s16
      $region20: #{dgcnn_forward.8} parent=15 // pred_fallthru
        _
      // Predicated region
      $region21: #{dgcnn_forward.8} parent=15 // pred_check
        %p134 = pneg %p68
      $region22: #{dgcnn_forward.8} parent=15 // pred_check_branch
        %136 = sbr.rel (%p134) target = $region24
      $region23: #{dgcnn_forward.8} parent=15 // pred_region
        %p137 = scmp.lt.s32.totalorder %s15, 1
        %s138 = scalar_select %p137, %s15, 1
        %s139 = smul.addr %s138, 2
        %s140 = smul.addr %s139, 8
        %s141 = scalar_lea.vmem %s1, %s140
      $region24: #{dgcnn_forward.8} parent=15 // pred_fallthru
        _
    $region16: #{dgcnn_forward.8} parent=5 // pred_fallthru
      _
    %p142 = scmp.le.s32.totalorder 1, %s8
    %p143 = scmp.lt.s32.totalorder %s8, 3
    %p144 = pnand %p142, %p143
    %p145 = pneg %p144
    // Predicated region
    $region25: #{dgcnn_forward.8} parent=5 // pred_check
      _
    $region26: #{dgcnn_forward.8} parent=5 // pred_check_branch
      %147 = sbr.rel (%p144) target = $region28
    $region27: #{dgcnn_forward.8} parent=5 // pred_region
      %s148 = ssub.s32 %s8, 1
      %s149 = smul.u32 2, %s18
      %p150 = scmp.lt.s32.totalorder %s17, 1
      %s151 = scalar_select %p150, %s17, 1
      %p152 = scmp.lt.s32.totalorder %s149, 1
      %s153 = scalar_select %p152, %s149, 1
      %s154 = smul.addr %s151, 2
      %s155 = sadd.s32 %s153, %s154
      %s156 = smul.addr %s155, 8
      %s157 = scalar_lea.vmem %s0, %s156
      %p158 = pneg %p48
      %p159 = pneg %p45
      %p160 = scmp.lt.s32.totalorder %s17, 1
      %s161 = scalar_select %p160, %s17, 1
      %s162 = smul.addr %s161, 2
      %s163 = smul.addr %s162, 8
      %s164 = scalar_lea.vmem %s1, %s163
      %p165 = pneg %p74
      %p166 = pneg %p71
      %p167 = pneg %p102
      %p168 = pneg %p99
      %s169 = smul.u32 2, %s18
      %p170 = scmp.lt.s32.totalorder %s17, 1
      %s171 = scalar_select %p170, %s17, 1
      %p172 = scmp.lt.s32.totalorder %s169, 1
      %s173 = scalar_select %p172, %s169, 1
      %s174 = smul.addr %s171, 2
      %s175 = sadd.s32 %s173, %s174
      %s176 = smul.addr %s175, 8
      %s177 = scalar_lea.vmem %s2, %s176
      %s178 = smul.u32 2, %s18
      %p179 = scmp.lt.s32.totalorder %s17, 1
      %s180 = scalar_select %p179, %s17, 1
      %p181 = scmp.lt.s32.totalorder %s178, 1
      %s182 = scalar_select %p181, %s178, 1
      %s183 = smul.addr %s180, 2
      %s184 = sadd.s32 %s182, %s183
      %s185 = smul.addr %s184, 8
      %s186 = scalar_lea.vmem %s0, %s185
      %s187 = smul.u32 2, %s18
      %p188 = scmp.lt.s32.totalorder %s17, 1
      %s189 = scalar_select %p188, %s17, 1
      %s190 = smul.addr %s189, 2
      %s191 = smul.addr %s190, 8
      %s192 = scalar_lea.vmem %s1, %s191
      %s193 = smul.u32 2, %s18
      %p194 = scmp.lt.s32.totalorder %s17, 1
      %s195 = scalar_select %p194, %s17, 1
      %p196 = scmp.lt.s32.totalorder %s193, 1
      %s197 = scalar_select %p196, %s193, 1
      %s198 = smul.addr %s195, 2
      %s199 = sadd.s32 %s197, %s198
      %s200 = smul.addr %s199, 8
      %s201 = scalar_lea.vmem %s2, %s200
      %s202 = smul.u32 2, %s18
      %v203 = vld [vmem:[%s186] sm:$0xff]
      %v204 = vld [vmem:[%s186 + $0x8] sm:$0xff]
      %v205 = vld [vmem:[%s192] sm:$0xff]
      %v206 = vld [vmem:[%s192 + $0x8] sm:$0xff]
      %vm207 = vcmask 23552
      %v209 = vsel %vm207, %v203, 0
      %v212 = vsel %vm207, %v204, 0
      %v215 = vsel %vm207, %v205, 0
      %v218 = vsel %vm207, %v206, 0
      %220 = vmatprep.subr.mxu0 0.0
      %221 = vmatpush1.xpose.msra.mxu0 %v215
      %222 = vmatprep.subr.mxu0 0.0
      %223 = vmatpush1.xpose.msra.mxu0 %v218
      %224 = vmatprep.subr.mxu0 0.0
      %225 = vmatpush1.xpose.msra.mxu0 0.0
      %226 = vmatprep.subr.mxu0 0.0
      %227 = vmatpush1.xpose.msra.mxu0 0.0
      %228 = vmatprep.subr.mxu0 0.0
      %229 = vmatpush1.xpose.msra.mxu0 0.0
      %230 = vmatprep.subr.mxu0 0.0
      %231 = vmatpush1.xpose.msra.mxu0 0.0
      %232 = vmatprep.subr.mxu0 0.0
      %233 = vmatpush1.xpose.msra.mxu0 0.0
      %234 = vmatprep.subr.mxu0 0.0
      %235 = vmatpush1.xpose.msra.mxu0 0.0
      %236 = vmatprep.subr.mxu0 0.0
      %237 = vmatpush1.xpose.msra.mxu0 0.0
      %238 = vmatprep.subr.mxu0 0.0
      %239 = vmatpush1.xpose.msra.mxu0 0.0
      %240 = vmatprep.subr.mxu0 0.0
      %241 = vmatpush1.xpose.msra.mxu0 0.0
      %242 = vmatprep.subr.mxu0 0.0
      %243 = vmatpush1.xpose.msra.mxu0 0.0
      %244 = vmatprep.subr.mxu0 0.0
      %245 = vmatpush1.xpose.msra.mxu0 0.0
      %246 = vmatprep.subr.mxu0 0.0
      %247 = vmatpush1.xpose.msra.mxu0 0.0
      %248 = vmatprep.subr.mxu0 0.0
      %249 = vmatpush1.xpose.msra.mxu0 0.0
      %250 = vmatprep.subr.mxu0 0.0
      %251 = vmatpush1.xpose.msra.mxu0 0.0
      %252 = vmatprep.subr.mxu0 0.0
      %253 = vmatpush1.xpose.msra.mxu0 0.0
      %254 = vmatprep.subr.mxu0 0.0
      %255 = vmatpush1.xpose.msra.mxu0 0.0
      %256 = vmatprep.subr.mxu0 0.0
      %257 = vmatpush1.xpose.msra.mxu0 0.0
      %258 = vmatprep.subr.mxu0 0.0
      %259 = vmatpush1.xpose.msra.mxu0 0.0
      %260 = vmatprep.subr.mxu0 0.0
      %261 = vmatpush1.xpose.msra.mxu0 0.0
      %262 = vmatprep.subr.mxu0 0.0
      %263 = vmatpush1.xpose.msra.mxu0 0.0
      %264 = vmatprep.subr.mxu0 0.0
      %265 = vmatpush1.xpose.msra.mxu0 0.0
      %266 = vmatprep.subr.mxu0 0.0
      %267 = vmatpush1.xpose.msra.mxu0 0.0
      %268 = vmatprep.subr.mxu0 0.0
      %269 = vmatpush1.xpose.msra.mxu0 0.0
      %270 = vmatprep.subr.mxu0 0.0
      %271 = vmatpush1.xpose.msra.mxu0 0.0
      %272 = vmatprep.subr.mxu0 0.0
      %273 = vmatpush1.xpose.msra.mxu0 0.0
      %274 = vmatprep.subr.mxu0 0.0
      %275 = vmatpush1.xpose.msra.mxu0 0.0
      %276 = vmatprep.subr.mxu0 0.0
      %277 = vmatpush1.xpose.msra.mxu0 0.0
      %278 = vmatprep.subr.mxu0 0.0
      %279 = vmatpush1.xpose.msra.mxu0 0.0
      %280 = vmatprep.subr.mxu0 0.0
      %281 = vmatpush1.xpose.msra.mxu0 0.0
      %282 = vmatprep.subr.mxu0 0.0
      %283 = vmatpush1.xpose.msra.mxu0 0.0
      %284 = vmatprep.mubr.f32.mxu0 0.0
      %285 = vmatmul.mubr.f32.gmra.mrb[0].mxu0 %v209
      %v286 = vpop.f32.mrb[0].mxu0
      %v287 = vadd.f32 0.0, %v286
      %v288 = vpop.f32.mrb[0].mxu0
      %289 = vmatprep.mubr.f32.mxu0 0.0
      %290 = vmatmul.mubr.f32.gmra.mrb[0].mxu0 %v212
      %v291 = vpop.f32.mrb[0].mxu0
      %v292 = vadd.f32 0.0, %v291
      %v293 = vpop.f32.mrb[0].mxu0
      %294 = vdwg.mxu0
      %v295 = vmul.f32 %v203, %v203
      %v296 = vmul.f32 %v204, %v204
      %v297 = vsel %vm207, %v295, 0.0
      %298 = vadd.xlane.f32.xlu0 %v297
      %v299 = vpop.xlane.xlu0 %298
      %v300 = vsel %vm207, %v296, 0.0
      %301 = vadd.xlane.f32.xlu0 %v300
      %v302 = vpop.xlane.xlu0 %301
      %v303 = vmul.f32 %v205, %v205
      %v304 = vmul.f32 %v206, %v206
      %v306 = vsel %vm207, 1.0, 0
      %v309 = vsel %vm207, %v303, 0
      %v312 = vsel %vm207, %v304, 0
      %314 = vmatprep.subr.mxu0 0.0
      %315 = vmatpush1.xpose.msra.mxu0 %v309
      %316 = vmatprep.subr.mxu0 0.0
      %317 = vmatpush1.xpose.msra.mxu0 %v312
      %318 = vmatprep.subr.mxu0 0.0
      %319 = vmatpush1.xpose.msra.mxu0 0.0
      %320 = vmatprep.subr.mxu0 0.0
      %321 = vmatpush1.xpose.msra.mxu0 0.0
      %322 = vmatprep.subr.mxu0 0.0
      %323 = vmatpush1.xpose.msra.mxu0 0.0
      %324 = vmatprep.subr.mxu0 0.0
      %325 = vmatpush1.xpose.msra.mxu0 0.0
      %326 = vmatprep.subr.mxu0 0.0
      %327 = vmatpush1.xpose.msra.mxu0 0.0
      %328 = vmatprep.subr.mxu0 0.0
      %329 = vmatpush1.xpose.msra.mxu0 0.0
      %330 = vmatprep.subr.mxu0 0.0
      %331 = vmatpush1.xpose.msra.mxu0 0.0
      %332 = vmatprep.subr.mxu0 0.0
      %333 = vmatpush1.xpose.msra.mxu0 0.0
      %334 = vmatprep.subr.mxu0 0.0
      %335 = vmatpush1.xpose.msra.mxu0 0.0
      %336 = vmatprep.subr.mxu0 0.0
      %337 = vmatpush1.xpose.msra.mxu0 0.0
      %338 = vmatprep.subr.mxu0 0.0
      %339 = vmatpush1.xpose.msra.mxu0 0.0
      %340 = vmatprep.subr.mxu0 0.0
      %341 = vmatpush1.xpose.msra.mxu0 0.0
      %342 = vmatprep.subr.mxu0 0.0
      %343 = vmatpush1.xpose.msra.mxu0 0.0
      %344 = vmatprep.subr.mxu0 0.0
      %345 = vmatpush1.xpose.msra.mxu0 0.0
      %346 = vmatprep.subr.mxu0 0.0
      %347 = vmatpush1.xpose.msra.mxu0 0.0
      %348 = vmatprep.subr.mxu0 0.0
      %349 = vmatpush1.xpose.msra.mxu0 0.0
      %350 = vmatprep.subr.mxu0 0.0
      %351 = vmatpush1.xpose.msra.mxu0 0.0
      %352 = vmatprep.subr.mxu0 0.0
      %353 = vmatpush1.xpose.msra.mxu0 0.0
      %354 = vmatprep.subr.mxu0 0.0
      %355 = vmatpush1.xpose.msra.mxu0 0.0
      %356 = vmatprep.subr.mxu0 0.0
      %357 = vmatpush1.xpose.msra.mxu0 0.0
      %358 = vmatprep.subr.mxu0 0.0
      %359 = vmatpush1.xpose.msra.mxu0 0.0
      %360 = vmatprep.subr.mxu0 0.0
      %361 = vmatpush1.xpose.msra.mxu0 0.0
      %362 = vmatprep.subr.mxu0 0.0
      %363 = vmatpush1.xpose.msra.mxu0 0.0
      %364 = vmatprep.subr.mxu0 0.0
      %365 = vmatpush1.xpose.msra.mxu0 0.0
      %366 = vmatprep.subr.mxu0 0.0
      %367 = vmatpush1.xpose.msra.mxu0 0.0
      %368 = vmatprep.subr.mxu0 0.0
      %369 = vmatpush1.xpose.msra.mxu0 0.0
      %370 = vmatprep.subr.mxu0 0.0
      %371 = vmatpush1.xpose.msra.mxu0 0.0
      %372 = vmatprep.subr.mxu0 0.0
      %373 = vmatpush1.xpose.msra.mxu0 0.0
      %374 = vmatprep.subr.mxu0 0.0
      %375 = vmatpush1.xpose.msra.mxu0 0.0
      %376 = vmatprep.subr.mxu0 0.0
      %377 = vmatpush1.xpose.msra.mxu0 0.0
      %378 = vmatprep.mubr.f32.mxu0 0.0
      %379 = vmatmul.mubr.f32.gmra.mrb[0].mxu0 %v306
      %v380 = vpop.f32.mrb[0].mxu0
      %v381 = vadd.f32 0.0, %v380
      %v382 = vpop.f32.mrb[0].mxu0
      %383 = vdwg.mxu0
      %v384 = vmul.f32 %v287, 2.0
      %v385 = vmul.f32 %v292, 2.0
      %v386 = vsub.f32 %v384, %v299
      %v387 = vsub.f32 %v385, %v302
      %v388 = vlaneseq
      %v389 = vshrl.u32 %v388, 7
      %v390 = vsub.s32 0, %v389
      %v391 = vrot.slane %v381, %v390
      %v392 = vsub.f32 %v386, %v391
      %v393 = vsub.f32 %v387, %v391
      %vm394 = vcmask 130048
      %395 = vst.msk [vmem:[%s201] sm:$0xff] %vm394, %v392
      %396 = vst.msk [vmem:[%s201 + $0x8] sm:$0xff] %vm394, %v393
      %s397 = smul.u32 2, %s18
      %p398 = scmp.lt.s32.totalorder %s17, 1
      %s399 = scalar_select %p398, %s17, 1
      %p400 = scmp.lt.s32.totalorder %s397, 1
      %s401 = scalar_select %p400, %s397, 1
      %s402 = smul.addr %s399, 2
      %s403 = sadd.s32 %s401, %s402
      %s404 = smul.addr %s403, 8
      %s405 = scalar_lea.vmem %s2, %s404
      // Predicated region
      $region29: #{dgcnn_forward.8} parent=27 // pred_check
        %p406 = pneg %p99
      $region30: #{dgcnn_forward.8} parent=27 // pred_check_branch
        %408 = sbr.rel (%p406) target = $region32
      $region31: #{dgcnn_forward.8} parent=27 // pred_region
        %s409 = smul.u32 2, %s18
      $region32: #{dgcnn_forward.8} parent=27 // pred_fallthru
        _
    $region28: #{dgcnn_forward.8} parent=5 // pred_fallthru
      _
    %p410 = scmp.le.s32.totalorder 2, %s8
    // Predicated region
    $region33: #{dgcnn_forward.8} parent=5 // pred_check
      %p411 = pneg %p410
    $region34: #{dgcnn_forward.8} parent=5 // pred_check_branch
      %413 = sbr.rel (%p411) target = $region36
    $region35: #{dgcnn_forward.8} parent=5 // pred_region
      %s414 = ssub.s32 %s8, 2
      // Predicated region
      $region37: #{dgcnn_forward.8} parent=35 // pred_check
        %p415 = pneg %p105
      $region38: #{dgcnn_forward.8} parent=35 // pred_check_branch
        %417 = sbr.rel (%p415) target = $region40
      $region39: #{dgcnn_forward.8} parent=35 // pred_region
        %s418 = smul.u32 2, %s20
        %p419 = scmp.lt.s32.totalorder %s19, 1
        %s420 = scalar_select %p419, %s19, 1
        %p421 = scmp.lt.s32.totalorder %s418, 1
        %s422 = scalar_select %p421, %s418, 1
        %s423 = smul.addr %s420, 2
        %s424 = sadd.s32 %s422, %s423
        %s425 = smul.addr %s424, 8
        %s426 = scalar_lea.vmem %s2, %s425
      $region40: #{dgcnn_forward.8} parent=35 // pred_fallthru
        _
    $region36: #{dgcnn_forward.8} parent=5 // pred_fallthru
      _
  $region6: #{dgcnn_forward.8} parent=0 // loop_footer
    %s12 = sadd.s32 1, %s8
  $region7: #{dgcnn_forward.8} parent=0 // loop_footer_branch
    %7 = sbr.rel target = $region3
  $region8: #{dgcnn_forward.8} parent=0 // loop_exit
    _

// kernel: dgcnn_forward.9
$region0: #{dgcnn_forward.9}
  #allocation0 [shape = 'u32[]', space=smem, size = 0x4, offset = 0x4, fixed_abs, tag = 'smem constant byte address 0x4 - core index']
  #allocation1 [shape = 'u32[144,128]{1,0:T(1,128)}', space=vmem, size = 0x12000, scoped, tag = 'internal scratch']
  #allocation2 [shape = 'f32[16,64]{1,0:T(8,128)}', space=vmem, size = 0x2000, scoped, tag = 'scratch operand']
  %s0 = inlined_call_operand.vmem [shape: bf16[2,4,16,3], index: 0, kind: input, shape index: {}]
  %s1 = inlined_call_operand.vmem [shape: bf16[2,16,3], index: 1, kind: input, shape index: {}]
  %s2 = inlined_call_operand.vmem [shape: bf16[3,64], index: 2, kind: input, shape index: {}]
  %s3 = inlined_call_operand.vmem [shape: bf16[3,64], index: 3, kind: input, shape index: {}]
  %s4 = inlined_call_operand.vmem [shape: f32[1,64], index: 4, kind: input, shape index: {}]
  %s5 = inlined_call_operand.vmem [shape: f32[2,16,64], index: 5, kind: output, shape index: {}]
  %s6 = sld [smem:[#allocation0]]
  $region65: #{dgcnn_forward.9} parent=0
    _
  %s8 = ssub.s32 1, %s6
  %s9 = scalar_select 0, %s8, %s6
  loop: start=0, step=1, limit=10
  $region2: #{dgcnn_forward.9} parent=0 // loop_pre_header
    _
  $region3: #{dgcnn_forward.9} parent=0 // loop_header
    %s11 = sphi 0, %s15
    %p12 = scmp.ge.s32.totalorder %s11, 10
    %s18 = sphi 0, %s30
    %s19 = sphi 0, %s26
    %s20 = sphi 0, %s18
    %s21 = sphi 0, %s19
    %s22 = sphi 0, %s20
    %s23 = sphi 0, %s21
    %s35 = sphi 0, %s37
    %s38 = sphi 0, %s35
    %s39 = sphi 0, %s38
    %s55 = sphi 0, %s39
    %s61 = sphi 0, %s63
    %s64 = sphi 0, %s61
    %s65 = sphi 0, %s64
    %s81 = sphi 0, %s65
    %s85 = sphi 0, %s85
    %s87 = sphi 0, %s85
    %s88 = sphi 0, %s87
    %s102 = sphi 0, %s88
    %s106 = sphi 0, %s106
    %s108 = sphi 0, %s106
    %s109 = sphi 0, %s108
    %s123 = sphi 0, %s109
    %s127 = sphi 0, %s127
    %s129 = sphi 0, %s127
    %s130 = sphi 0, %s129
    %s144 = sphi 0, %s130
    %s150 = sphi 0, %s152
    %s153 = sphi 0, %s150
    %s154 = sphi 0, %s153
    %s170 = sphi 0, %s154
  $region4: #{dgcnn_forward.9} parent=0 // loop_header_branch
    %14 = sbr.rel (%p12) target = $region8
  $region5: #{dgcnn_forward.9} parent=0 // loop_body
    %s16 = ssub.s32 %s11, 1
    %s17 = ssub.s32 %s11, 2
    %s24 = sadd.s32 1, %s19
    %p25 = scmp.ge.s32.totalorder %s24, 4
    %s26 = scalar_select %p25, 0, %s24
    %s27 = sadd.s32 1, %s18
    %s28 = scalar_select %p25, %s27, %s18
    %p29 = scmp.ge.s32.totalorder %s28, 2
    %s30 = scalar_select %p29, 0, %s28
    %s31 = ssub.s32 %s18, %s30
    %s32 = ssub.s32 %s19, %s26
    %s33 = sor.u32 %s31, %s32
    %p34 = scmp.eq.s32.totalorder %s33, 0
    %s36 = sadd.s32 %s35, 1
    %s37 = scalar_select %p34, %s35, %s36
    %p40 = pneg %p34
    %p41 = scmp.eq.s32.totalorder %s11, 7
    %p42 = por %p40, %p41
    %p43 = scmp.ne.s32.totalorder %s35, %s38
    %p44 = scmp.eq.s32.totalorder %s11, 0
    %p45 = por %p43, %p44
    %p46 = scmp.ne.s32.totalorder %s35, %s38
    %p47 = scmp.eq.s32.totalorder %s16, 7
    %p48 = por %p46, %p47
    %p49 = scmp.ne.s32.totalorder %s38, %s39
    %p50 = scmp.eq.s32.totalorder %s16, 0
    %p51 = por %p49, %p50
    %p52 = scmp.ne.s32.totalorder %s38, %s39
    %p53 = scmp.eq.s32.totalorder %s17, 7
    %p54 = por %p52, %p53
    %p56 = scmp.ne.s32.totalorder %s39, %s55
    %p57 = scmp.eq.s32.totalorder %s17, 0
    %p58 = por %p56, %p57
    %s59 = ssub.s32 %s18, %s30
    %p60 = scmp.eq.s32.totalorder %s59, 0
    %s62 = sadd.s32 %s61, 1
    %s63 = scalar_select %p60, %s61, %s62
    %p66 = pneg %p60
    %p67 = scmp.eq.s32.totalorder %s11, 7
    %p68 = por %p66, %p67
    %p69 = scmp.ne.s32.totalorder %s61, %s64
    %p70 = scmp.eq.s32.totalorder %s11, 0
    %p71 = por %p69, %p70
    %p72 = scmp.ne.s32.totalorder %s61, %s64
    %p73 = scmp.eq.s32.totalorder %s16, 7
    %p74 = por %p72, %p73
    %p75 = scmp.ne.s32.totalorder %s64, %s65
    %p76 = scmp.eq.s32.totalorder %s16, 0
    %p77 = por %p75, %p76
    %p78 = scmp.ne.s32.totalorder %s64, %s65
    %p79 = scmp.eq.s32.totalorder %s17, 7
    %p80 = por %p78, %p79
    %p82 = scmp.ne.s32.totalorder %s65, %s81
    %p83 = scmp.eq.s32.totalorder %s17, 0
    %p84 = por %p82, %p83
    %s86 = sadd.s32 %s85, 1
    %p89 = scmp.eq.s32.totalorder %s11, 7
    %p90 = scmp.ne.s32.totalorder %s85, %s87
    %p91 = scmp.eq.s32.totalorder %s11, 0
    %p92 = por %p90, %p91
    %p93 = scmp.ne.s32.totalorder %s85, %s87
    %p94 = scmp.eq.s32.totalorder %s16, 7
    %p95 = por %p93, %p94
    %p96 = scmp.ne.s32.totalorder %s87, %s88
    %p97 = scmp.eq.s32.totalorder %s16, 0
    %p98 = por %p96, %p97
    %p99 = scmp.ne.s32.totalorder %s87, %s88
    %p100 = scmp.eq.s32.totalorder %s17, 7
    %p101 = por %p99, %p100
    %p103 = scmp.ne.s32.totalorder %s88, %s102
    %p104 = scmp.eq.s32.totalorder %s17, 0
    %p105 = por %p103, %p104
    %s107 = sadd.s32 %s106, 1
    %p110 = scmp.eq.s32.totalorder %s11, 7
    %p111 = scmp.ne.s32.totalorder %s106, %s108
    %p112 = scmp.eq.s32.totalorder %s11, 0
    %p113 = por %p111, %p112
    %p114 = scmp.ne.s32.totalorder %s106, %s108
    %p115 = scmp.eq.s32.totalorder %s16, 7
    %p116 = por %p114, %p115
    %p117 = scmp.ne.s32.totalorder %s108, %s109
    %p118 = scmp.eq.s32.totalorder %s16, 0
    %p119 = por %p117, %p118
    %p120 = scmp.ne.s32.totalorder %s108, %s109
    %p121 = scmp.eq.s32.totalorder %s17, 7
    %p122 = por %p120, %p121
    %p124 = scmp.ne.s32.totalorder %s109, %s123
    %p125 = scmp.eq.s32.totalorder %s17, 0
    %p126 = por %p124, %p125
    %s128 = sadd.s32 %s127, 1
    %p131 = scmp.eq.s32.totalorder %s11, 7
    %p132 = scmp.ne.s32.totalorder %s127, %s129
    %p133 = scmp.eq.s32.totalorder %s11, 0
    %p134 = por %p132, %p133
    %p135 = scmp.ne.s32.totalorder %s127, %s129
    %p136 = scmp.eq.s32.totalorder %s16, 7
    %p137 = por %p135, %p136
    %p138 = scmp.ne.s32.totalorder %s129, %s130
    %p139 = scmp.eq.s32.totalorder %s16, 0
    %p140 = por %p138, %p139
    %p141 = scmp.ne.s32.totalorder %s129, %s130
    %p142 = scmp.eq.s32.totalorder %s17, 7
    %p143 = por %p141, %p142
    %p145 = scmp.ne.s32.totalorder %s130, %s144
    %p146 = scmp.eq.s32.totalorder %s17, 0
    %p147 = por %p145, %p146
    %s148 = ssub.s32 %s18, %s30
    %p149 = scmp.eq.s32.totalorder %s148, 0
    %s151 = sadd.s32 %s150, 1
    %s152 = scalar_select %p149, %s150, %s151
    %p155 = pneg %p149
    %p156 = scmp.eq.s32.totalorder %s11, 7
    %p157 = por %p155, %p156
    %p158 = scmp.ne.s32.totalorder %s150, %s153
    %p159 = scmp.eq.s32.totalorder %s11, 0
    %p160 = por %p158, %p159
    %p161 = scmp.ne.s32.totalorder %s150, %s153
    %p162 = scmp.eq.s32.totalorder %s16, 7
    %p163 = por %p161, %p162
    %p164 = scmp.ne.s32.totalorder %s153, %s154
    %p165 = scmp.eq.s32.totalorder %s16, 0
    %p166 = por %p164, %p165
    %p167 = scmp.ne.s32.totalorder %s153, %s154
    %p168 = scmp.eq.s32.totalorder %s17, 7
    %p169 = por %p167, %p168
    %p171 = scmp.ne.s32.totalorder %s154, %s170
    %p172 = scmp.eq.s32.totalorder %s17, 0
    %p173 = por %p171, %p172
    %p174 = scmp.le.s32.totalorder 1, %s11
    %p175 = scmp.lt.s32.totalorder %s11, 9
    %p176 = pnand %p174, %p175
    %p177 = pneg %p176
    // Predicated region
    $region9: #{dgcnn_forward.9} parent=5 // pred_check
      _
    $region10: #{dgcnn_forward.9} parent=5 // pred_check_branch
      %179 = sbr.rel (%p176) target = $region12
    $region11: #{dgcnn_forward.9} parent=5 // pred_region
      %s180 = ssub.s32 %s11, 1
      // Predicated region
      $region13: #{dgcnn_forward.9} parent=11 // pred_check
        %p181 = pneg %p98
      $region14: #{dgcnn_forward.9} parent=11 // pred_check_branch
        %183 = sbr.rel (%p181) target = $region16
      $region15: #{dgcnn_forward.9} parent=11 // pred_region
        _
      $region16: #{dgcnn_forward.9} parent=11 // pred_fallthru
        _
      // Predicated region
      $region17: #{dgcnn_forward.9} parent=11 // pred_check
        %p184 = pneg %p119
      $region18: #{dgcnn_forward.9} parent=11 // pred_check_branch
        %186 = sbr.rel (%p184) target = $region20
      $region19: #{dgcnn_forward.9} parent=11 // pred_region
        _
      $region20: #{dgcnn_forward.9} parent=11 // pred_fallthru
        _
      // Predicated region
      $region21: #{dgcnn_forward.9} parent=11 // pred_check
        %p187 = pneg %p140
      $region22: #{dgcnn_forward.9} parent=11 // pred_check_branch
        %189 = sbr.rel (%p187) target = $region24
      $region23: #{dgcnn_forward.9} parent=11 // pred_region
        _
      $region24: #{dgcnn_forward.9} parent=11 // pred_fallthru
        _
    $region12: #{dgcnn_forward.9} parent=5 // pred_fallthru
      _
    %p190 = scmp.lt.s32.totalorder %s11, 8
    // Predicated region
    $region25: #{dgcnn_forward.9} parent=5 // pred_check
      %p191 = pneg %p190
    $region26: #{dgcnn_forward.9} parent=5 // pred_check_branch
      %193 = sbr.rel (%p191) target = $region28
    $region27: #{dgcnn_forward.9} parent=5 // pred_region
      // Predicated region
      $region29: #{dgcnn_forward.9} parent=27 // pred_check
        %p194 = pneg %p45
      $region30: #{dgcnn_forward.9} parent=27 // pred_check_branch
        %196 = sbr.rel (%p194) target = $region32
      $region31: #{dgcnn_forward.9} parent=27 // pred_region
        %p197 = scmp.lt.s32.totalorder %s18, 1
        %s198 = scalar_select %p197, %s18, 1
        %p199 = scmp.lt.s32.totalorder %s19, 3
        %s200 = scalar_select %p199, %s19, 3
        %s201 = smul.addr %s200, 2
        %s202 = smul.addr %s198, 8
        %s203 = sadd.s32 %s201, %s202
        %s204 = smul.addr %s203, 4
        %s205 = scalar_lea.vmem %s0, %s204
      $region32: #{dgcnn_forward.9} parent=27 // pred_fallthru
        _
      // Predicated region
      $region33: #{dgcnn_forward.9} parent=27 // pred_check
        %p206 = pneg %p71
      $region34: #{dgcnn_forward.9} parent=27 // pred_check_branch
        %208 = sbr.rel (%p206) target = $region36
      $region35: #{dgcnn_forward.9} parent=27 // pred_region
        %p209 = scmp.lt.s32.totalorder %s18, 1
        %s210 = scalar_select %p209, %s18, 1
        %s211 = smul.addr %s210, 2
        %s212 = smul.addr %s211, 4
        %s213 = scalar_lea.vmem %s1, %s212
      $region36: #{dgcnn_forward.9} parent=27 // pred_fallthru
        _
    $region28: #{dgcnn_forward.9} parent=5 // pred_fallthru
      _
    %p214 = scmp.le.s32.totalorder 1, %s11
    %p215 = scmp.lt.s32.totalorder %s11, 9
    %p216 = pnand %p214, %p215
    %p217 = pneg %p216
    // Predicated region
    $region37: #{dgcnn_forward.9} parent=5 // pred_check
      _
    $region38: #{dgcnn_forward.9} parent=5 // pred_check_branch
      %219 = sbr.rel (%p216) target = $region40
    $region39: #{dgcnn_forward.9} parent=5 // pred_region
      %s220 = ssub.s32 %s11, 1
      %p221 = scmp.lt.s32.totalorder %s20, 1
      %s222 = scalar_select %p221, %s20, 1
      %p223 = scmp.lt.s32.totalorder %s21, 3
      %s224 = scalar_select %p223, %s21, 3
      %s225 = smul.addr %s224, 2
      %s226 = smul.addr %s222, 8
      %s227 = sadd.s32 %s225, %s226
      %s228 = smul.addr %s227, 4
      %s229 = scalar_lea.vmem %s0, %s228
      %p230 = pneg %p51
      %p231 = pneg %p48
      %p232 = scmp.lt.s32.totalorder %s20, 1
      %s233 = scalar_select %p232, %s20, 1
      %s234 = smul.addr %s233, 2
      %s235 = smul.addr %s234, 4
      %s236 = scalar_lea.vmem %s1, %s235
      %p237 = pneg %p77
      %p238 = pneg %p74
      %p239 = pneg %p98
      %p240 = pneg %p95
      %p241 = pneg %p119
      %p242 = pneg %p116
      %p243 = pneg %p140
      %p244 = pneg %p137
      %p245 = pneg %p166
      %p246 = pneg %p163
      %p247 = scmp.lt.s32.totalorder %s20, 1
      %s248 = scalar_select %p247, %s20, 1
      %s249 = smul.addr %s248, 2
      %s250 = smul.addr %s249, 8
      %s251 = scalar_lea.vmem %s5, %s250
      %p252 = scmp.lt.s32.totalorder %s20, 1
      %s253 = scalar_select %p252, %s20, 1
      %p254 = scmp.lt.s32.totalorder %s21, 3
      %s255 = scalar_select %p254, %s21, 3
      %s256 = smul.addr %s255, 2
      %s257 = smul.addr %s253, 8
      %s258 = sadd.s32 %s256, %s257
      %s259 = smul.addr %s258, 4
      %s260 = scalar_lea.vmem %s0, %s259
      %p261 = scmp.lt.s32.totalorder %s20, 1
      %s262 = scalar_select %p261, %s20, 1
      %s263 = smul.addr %s262, 2
      %s264 = smul.addr %s263, 4
      %s265 = scalar_lea.vmem %s1, %s264
      %p266 = scmp.lt.s32.totalorder %s20, 1
      %s267 = scalar_select %p266, %s20, 1
      %s268 = smul.addr %s267, 2
      %s269 = smul.addr %s268, 8
      %s270 = scalar_lea.vmem %s5, %s269
      %p272 = scmp.eq.s32.totalorder %s21, 0
      // Predicated region
      $region41: #{dgcnn_forward.9} parent=39 // pred_check
        %p273 = pneg %p272
      $region42: #{dgcnn_forward.9} parent=39 // pred_check_branch
        %275 = sbr.rel (%p273) target = $region44
      $region43: #{dgcnn_forward.9} parent=39 // pred_region
        %v276 = vld [vmem:[%s265] sm:$0xf]
        %v277 = vld [vmem:[%s265 + $0x4] sm:$0xf]
        %v278 = vld [vmem:[%s3] sm:$0x3]
        %v279 = vld [vmem:[%s4] sm:$0x1]
        %v281 = vlaneseq
        %v282 = vshrl.u32 %v281, 7
        %v283 = vsub.s32 0, %v282
        %v284 = vrot.slane %v279, %v283
        %v288 = vunpack.c.l.b16 %v276
        %v289 = vunpack.c.l.b16 %v277
        %v290 = vpack.c.b16 %v289, %v288
        %vm291 = vcmask 23552
        %v293 = vsel %vm291, %v290, 0
        %vm295 = vcmask 1040384
        %vm296 = vcmask 1041408
        %v297 = vsel %vm295, 4294967295, 65535
        %v298 = vsel %vm296, %v297, 0
        %v300 = vand.u32 %v278, %v298
        %302 = vmatprep.subr.bf16.mxu0 0
        %303 = vmatpush1.bf16.msra.mxu0 %v300
        %304 = vmatprep.subr.bf16.mxu0 0
        %305 = vmatpush1.bf16.msra.mxu0 0
        %306 = vmatprep.subr.bf16.mxu0 0
        %307 = vmatpush1.bf16.msra.mxu0 0
        %308 = vmatprep.subr.bf16.mxu0 0
        %309 = vmatpush1.bf16.msra.mxu0 0
        %310 = vmatprep.subr.bf16.mxu0 0
        %311 = vmatpush1.bf16.msra.mxu0 0
        %312 = vmatprep.subr.bf16.mxu0 0
        %313 = vmatpush1.bf16.msra.mxu0 0
        %314 = vmatprep.subr.bf16.mxu0 0
        %315 = vmatpush1.bf16.msra.mxu0 0
        %316 = vmatprep.subr.bf16.mxu0 0
        %317 = vmatpush1.bf16.msra.mxu0 0
        %318 = vmatprep.subr.bf16.mxu0 0
        %319 = vmatpush1.bf16.msra.mxu0 0
        %320 = vmatprep.subr.bf16.mxu0 0
        %321 = vmatpush1.bf16.msra.mxu0 0
        %322 = vmatprep.subr.bf16.mxu0 0
        %323 = vmatpush1.bf16.msra.mxu0 0
        %324 = vmatprep.subr.bf16.mxu0 0
        %325 = vmatpush1.bf16.msra.mxu0 0
        %326 = vmatprep.subr.bf16.mxu0 0
        %327 = vmatpush1.bf16.msra.mxu0 0
        %328 = vmatprep.subr.bf16.mxu0 0
        %329 = vmatpush1.bf16.msra.mxu0 0
        %330 = vmatprep.subr.bf16.mxu0 0
        %331 = vmatpush1.bf16.msra.mxu0 0
        %332 = vmatprep.subr.bf16.mxu0 0
        %333 = vmatpush1.bf16.msra.mxu0 0
        %334 = vmatprep.mubr.bf16.mxu0 0
        %335 = vmatmul.mubr.bf16.gmra.mrb[0].mxu0 %v293
        %v336 = vpop.f32.mrb[0].mxu0
        %v337 = vadd.f32 %v284, %v336
        %v338 = vpop.f32.mrb[0].mxu0
        %v339 = vpop.f32.mrb[0].mxu0
        %v340 = vadd.f32 %v284, %v339
        %v341 = vpop.f32.mrb[0].mxu0
        %342 = vdwg.mxu0
        %vm343 = vcmask 523264
        %344 = vst.msk [vmem:[#allocation2] sm:$0xff] %vm343, %v337
        %345 = vst.msk [vmem:[#allocation2 + $0x8] sm:$0xff] %vm343, %v340
      $region44: #{dgcnn_forward.9} parent=39 // pred_fallthru
        _
      %v346 = vld [vmem:[%s260] sm:$0xf]
      %v347 = vld [vmem:[%s260 + $0x4] sm:$0xf]
      %v348 = vld [vmem:[%s2] sm:$0x3]
      %v349 = vld [vmem:[#allocation2] sm:$0xff]
      %v350 = vld [vmem:[#allocation2 + $0x8] sm:$0xff]
      %v353 = vunpack.c.l.b16 %v346
      %v354 = vunpack.c.l.b16 %v347
      %v355 = vpack.c.b16 %v354, %v353
      %vm356 = vcmask 23552
      %v358 = vsel %vm356, %v355, 0
      %vm360 = vcmask 1040384
      %vm361 = vcmask 1041408
      %v362 = vsel %vm360, 4294967295, 65535
      %v363 = vsel %vm361, %v362, 0
      %v365 = vand.u32 %v348, %v363
      %367 = vmatprep.subr.bf16.mxu0 0
      %368 = vmatpush1.bf16.msra.mxu0 %v365
      %369 = vmatprep.subr.bf16.mxu0 0
      %370 = vmatpush1.bf16.msra.mxu0 0
      %371 = vmatprep.subr.bf16.mxu0 0
      %372 = vmatpush1.bf16.msra.mxu0 0
      %373 = vmatprep.subr.bf16.mxu0 0
      %374 = vmatpush1.bf16.msra.mxu0 0
      %375 = vmatprep.subr.bf16.mxu0 0
      %376 = vmatpush1.bf16.msra.mxu0 0
      %377 = vmatprep.subr.bf16.mxu0 0
      %378 = vmatpush1.bf16.msra.mxu0 0
      %379 = vmatprep.subr.bf16.mxu0 0
      %380 = vmatpush1.bf16.msra.mxu0 0
      %381 = vmatprep.subr.bf16.mxu0 0
      %382 = vmatpush1.bf16.msra.mxu0 0
      %383 = vmatprep.subr.bf16.mxu0 0
      %384 = vmatpush1.bf16.msra.mxu0 0
      %385 = vmatprep.subr.bf16.mxu0 0
      %386 = vmatpush1.bf16.msra.mxu0 0
      %387 = vmatprep.subr.bf16.mxu0 0
      %388 = vmatpush1.bf16.msra.mxu0 0
      %389 = vmatprep.subr.bf16.mxu0 0
      %390 = vmatpush1.bf16.msra.mxu0 0
      %391 = vmatprep.subr.bf16.mxu0 0
      %392 = vmatpush1.bf16.msra.mxu0 0
      %393 = vmatprep.subr.bf16.mxu0 0
      %394 = vmatpush1.bf16.msra.mxu0 0
      %395 = vmatprep.subr.bf16.mxu0 0
      %396 = vmatpush1.bf16.msra.mxu0 0
      %397 = vmatprep.subr.bf16.mxu0 0
      %398 = vmatpush1.bf16.msra.mxu0 0
      %399 = vmatprep.mubr.bf16.mxu0 0
      %400 = vmatmul.mubr.bf16.gmra.mrb[0].mxu0 %v358
      %v401 = vpop.f32.mrb[0].mxu0
      %v402 = vadd.f32 %v349, %v401
      %v403 = vpop.f32.mrb[0].mxu0
      %v404 = vpop.f32.mrb[0].mxu0
      %v405 = vadd.f32 %v350, %v404
      %v406 = vpop.f32.mrb[0].mxu0
      %407 = vdwg.mxu0
      %vm408 = vcmp.gt.f32.partialorder %v402, 0.0
      %vm409 = vcmp.gt.f32.partialorder %v405, 0.0
      %v410 = vmul.f32 %v402, 0.2
      %v411 = vmul.f32 %v405, 0.2
      %v412 = vsel %vm408, %v402, %v410
      %v413 = vsel %vm409, %v405, %v411
      // Predicated region
      $region45: #{dgcnn_forward.9} parent=39 // pred_check
        %p414 = pneg %p272
      $region46: #{dgcnn_forward.9} parent=39 // pred_check_branch
        %416 = sbr.rel (%p414) target = $region48
      $region47: #{dgcnn_forward.9} parent=39 // pred_region
        %vm417 = vcmask 523264
        %418 = vst.msk [vmem:[%s270] sm:$0xff] %vm417, %v412
        %419 = vst.msk [vmem:[%s270 + $0x8] sm:$0xff] %vm417, %v413
      $region48: #{dgcnn_forward.9} parent=39 // pred_fallthru
        _
      %p420 = scmp.gt.s32.totalorder %s21, 0
      // Predicated region
      $region49: #{dgcnn_forward.9} parent=39 // pred_check
        %p421 = pneg %p420
      $region50: #{dgcnn_forward.9} parent=39 // pred_check_branch
        %423 = sbr.rel (%p421) target = $region52
      $region51: #{dgcnn_forward.9} parent=39 // pred_region
        %v424 = vld [vmem:[%s270] sm:$0xff]
        %v425 = vld [vmem:[%s270 + $0x8] sm:$0xff]
        %v426 = vmax.f32 %v424, %v412
        %v427 = vmax.f32 %v425, %v413
        %vm428 = vcmask 523264
        %429 = vst.msk [vmem:[%s270] sm:$0xff] %vm428, %v426
        %430 = vst.msk [vmem:[%s270 + $0x8] sm:$0xff] %vm428, %v427
      $region52: #{dgcnn_forward.9} parent=39 // pred_fallthru
        _
      %p431 = scmp.lt.s32.totalorder %s20, 1
      %s432 = scalar_select %p431, %s20, 1
      %s433 = smul.addr %s432, 2
      %s434 = smul.addr %s433, 8
      %s435 = scalar_lea.vmem %s5, %s434
      // Predicated region
      $region53: #{dgcnn_forward.9} parent=39 // pred_check
        %p436 = pneg %p163
      $region54: #{dgcnn_forward.9} parent=39 // pred_check_branch
        %438 = sbr.rel (%p436) target = $region56
      $region55: #{dgcnn_forward.9} parent=39 // pred_region
        _
      $region56: #{dgcnn_forward.9} parent=39 // pred_fallthru
        _
    $region40: #{dgcnn_forward.9} parent=5 // pred_fallthru
      _
    %p439 = scmp.le.s32.totalorder 2, %s11
    // Predicated region
    $region57: #{dgcnn_forward.9} parent=5 // pred_check
      %p440 = pneg %p439
    $region58: #{dgcnn_forward.9} parent=5 // pred_check_branch
      %442 = sbr.rel (%p440) target = $region60
    $region59: #{dgcnn_forward.9} parent=5 // pred_region
      %s443 = ssub.s32 %s11, 2
      // Predicated region
      $region61: #{dgcnn_forward.9} parent=59 // pred_check
        %p444 = pneg %p169
      $region62: #{dgcnn_forward.9} parent=59 // pred_check_branch
        %446 = sbr.rel (%p444) target = $region64
      $region63: #{dgcnn_forward.9} parent=59 // pred_region
        %p447 = scmp.lt.s32.totalorder %s22, 1
        %s448 = scalar_select %p447, %s22, 1
        %s449 = smul.addr %s448, 2
        %s450 = smul.addr %s449, 8
        %s451 = scalar_lea.vmem %s5, %s450
      $region64: #{dgcnn_forward.9} parent=59 // pred_fallthru
        _
    $region60: #{dgcnn_forward.9} parent=5 // pred_fallthru
      _
  $region6: #{dgcnn_forward.9} parent=0 // loop_footer
    %s15 = sadd.s32 1, %s11
  $region7: #{dgcnn_forward.9} parent=0 // loop_footer_branch
    %10 = sbr.rel target = $region3
  $region8: #{dgcnn_forward.9} parent=0 // loop_exit
    _

// kernel: dgcnn_forward.10
$region0: #{dgcnn_forward.10}
  #allocation0 [shape = 'u32[]', space=smem, size = 0x4, offset = 0x4, fixed_abs, tag = 'smem constant byte address 0x4 - core index']
  #allocation1 [shape = 'u32[144,128]{1,0:T(1,128)}', space=vmem, size = 0x12000, scoped, tag = 'internal scratch']
  %s0 = inlined_call_operand.vmem [shape: f32[2,16,64], index: 0, kind: input, shape index: {}, may-alias: {0,1}]
  %s1 = inlined_call_operand.vmem [shape: f32[2,16,64], index: 1, kind: input, shape index: {}, may-alias: {0,1}]
  %s2 = inlined_call_operand.vmem [shape: f32[2,16,16], index: 2, kind: output, shape index: {}]
  %s3 = sld [smem:[#allocation0]]
  $region41: #{dgcnn_forward.10} parent=0
    _
  %s5 = ssub.s32 1, %s3
  %s6 = scalar_select 0, %s5, %s3
  loop: start=0, step=1, limit=4
  $region2: #{dgcnn_forward.10} parent=0 // loop_pre_header
    _
  $region3: #{dgcnn_forward.10} parent=0 // loop_header
    %s8 = sphi 0, %s12
    %p9 = scmp.ge.s32.totalorder %s8, 4
    %s15 = sphi 0, %s27
    %s16 = sphi 0, %s23
    %s17 = sphi 0, %s15
    %s18 = sphi 0, %s16
    %s19 = sphi 0, %s17
    %s20 = sphi 0, %s18
    %s32 = sphi 0, %s34
    %s35 = sphi 0, %s32
    %s36 = sphi 0, %s35
    %s52 = sphi 0, %s36
    %s58 = sphi 0, %s60
    %s61 = sphi 0, %s58
    %s62 = sphi 0, %s61
    %s78 = sphi 0, %s62
    %s86 = sphi 0, %s88
    %s89 = sphi 0, %s86
    %s90 = sphi 0, %s89
    %s106 = sphi 0, %s90
  $region4: #{dgcnn_forward.10} parent=0 // loop_header_branch
    %11 = sbr.rel (%p9) target = $region8
  $region5: #{dgcnn_forward.10} parent=0 // loop_body
    %s13 = ssub.s32 %s8, 1
    %s14 = ssub.s32 %s8, 2
    %s21 = sadd.s32 1, %s16
    %p22 = scmp.ge.s32.totalorder %s21, 1
    %s23 = scalar_select %p22, 0, %s21
    %s24 = sadd.s32 1, %s15
    %s25 = scalar_select %p22, %s24, %s15
    %p26 = scmp.ge.s32.totalorder %s25, 2
    %s27 = scalar_select %p26, 0, %s25
    %s28 = ssub.s32 %s15, %s27
    %s29 = ssub.s32 %s16, %s23
    %s30 = sor.u32 %s28, %s29
    %p31 = scmp.eq.s32.totalorder %s30, 0
    %s33 = sadd.s32 %s32, 1
    %s34 = scalar_select %p31, %s32, %s33
    %p37 = pneg %p31
    %p38 = scmp.eq.s32.totalorder %s8, 1
    %p39 = por %p37, %p38
    %p40 = scmp.ne.s32.totalorder %s32, %s35
    %p41 = scmp.eq.s32.totalorder %s8, 0
    %p42 = por %p40, %p41
    %p43 = scmp.ne.s32.totalorder %s32, %s35
    %p44 = scmp.eq.s32.totalorder %s13, 1
    %p45 = por %p43, %p44
    %p46 = scmp.ne.s32.totalorder %s35, %s36
    %p47 = scmp.eq.s32.totalorder %s13, 0
    %p48 = por %p46, %p47
    %p49 = scmp.ne.s32.totalorder %s35, %s36
    %p50 = scmp.eq.s32.totalorder %s14, 1
    %p51 = por %p49, %p50
    %p53 = scmp.ne.s32.totalorder %s36, %s52
    %p54 = scmp.eq.s32.totalorder %s14, 0
    %p55 = por %p53, %p54
    %s56 = ssub.s32 %s15, %s27
    %p57 = scmp.eq.s32.totalorder %s56, 0
    %s59 = sadd.s32 %s58, 1
    %s60 = scalar_select %p57, %s58, %s59
    %p63 = pneg %p57
    %p64 = scmp.eq.s32.totalorder %s8, 1
    %p65 = por %p63, %p64
    %p66 = scmp.ne.s32.totalorder %s58, %s61
    %p67 = scmp.eq.s32.totalorder %s8, 0
    %p68 = por %p66, %p67
    %p69 = scmp.ne.s32.totalorder %s58, %s61
    %p70 = scmp.eq.s32.totalorder %s13, 1
    %p71 = por %p69, %p70
    %p72 = scmp.ne.s32.totalorder %s61, %s62
    %p73 = scmp.eq.s32.totalorder %s13, 0
    %p74 = por %p72, %p73
    %p75 = scmp.ne.s32.totalorder %s61, %s62
    %p76 = scmp.eq.s32.totalorder %s14, 1
    %p77 = por %p75, %p76
    %p79 = scmp.ne.s32.totalorder %s62, %s78
    %p80 = scmp.eq.s32.totalorder %s14, 0
    %p81 = por %p79, %p80
    %s82 = ssub.s32 %s15, %s27
    %s83 = ssub.s32 %s16, %s23
    %s84 = sor.u32 %s82, %s83
    %p85 = scmp.eq.s32.totalorder %s84, 0
    %s87 = sadd.s32 %s86, 1
    %s88 = scalar_select %p85, %s86, %s87
    %p91 = pneg %p85
    %p92 = scmp.eq.s32.totalorder %s8, 1
    %p93 = por %p91, %p92
    %p94 = scmp.ne.s32.totalorder %s86, %s89
    %p95 = scmp.eq.s32.totalorder %s8, 0
    %p96 = por %p94, %p95
    %p97 = scmp.ne.s32.totalorder %s86, %s89
    %p98 = scmp.eq.s32.totalorder %s13, 1
    %p99 = por %p97, %p98
    %p100 = scmp.ne.s32.totalorder %s89, %s90
    %p101 = scmp.eq.s32.totalorder %s13, 0
    %p102 = por %p100, %p101
    %p103 = scmp.ne.s32.totalorder %s89, %s90
    %p104 = scmp.eq.s32.totalorder %s14, 1
    %p105 = por %p103, %p104
    %p107 = scmp.ne.s32.totalorder %s90, %s106
    %p108 = scmp.eq.s32.totalorder %s14, 0
    %p109 = por %p107, %p108
    %p110 = scmp.le.s32.totalorder 1, %s8
    %p111 = scmp.lt.s32.totalorder %s8, 3
    %p112 = pnand %p110, %p111
    %p113 = pneg %p112
    // Predicated region
    $region9: #{dgcnn_forward.10} parent=5 // pred_check
      _
    $region10: #{dgcnn_forward.10} parent=5 // pred_check_branch
      %115 = sbr.rel (%p112) target = $region12
    $region11: #{dgcnn_forward.10} parent=5 // pred_region
      %s116 = ssub.s32 %s8, 1
    $region12: #{dgcnn_forward.10} parent=5 // pred_fallthru
      _
    %p117 = scmp.lt.s32.totalorder %s8, 2
    // Predicated region
    $region13: #{dgcnn_forward.10} parent=5 // pred_check
      %p118 = pneg %p117
    $region14: #{dgcnn_forward.10} parent=5 // pred_check_branch
      %120 = sbr.rel (%p118) target = $region16
    $region15: #{dgcnn_forward.10} parent=5 // pred_region
      // Predicated region
      $region17: #{dgcnn_forward.10} parent=15 // pred_check
        %p121 = pneg %p42
      $region18: #{dgcnn_forward.10} parent=15 // pred_check_branch
        %123 = sbr.rel (%p121) target = $region20
      $region19: #{dgcnn_forward.10} parent=15 // pred_region
        %s124 = smul.u32 2, %s16
        %p125 = scmp.lt.s32.totalorder %s15, 1
        %s126 = scalar_select %p125, %s15, 1
        %p127 = scmp.lt.s32.totalorder %s124, 1
        %s128 = scalar_select %p127, %s124, 1
        %s129 = smul.addr %s126, 2
        %s130 = sadd.s32 %s128, %s129
        %s131 = smul.addr %s130, 8
        %s132 = scalar_lea.vmem %s0, %s131
        %s133 = smul.u32 2, %s16
      $region20: #{dgcnn_forward.10} parent=15 // pred_fallthru
        _
      // Predicated region
      $region21: #{dgcnn_forward.10} parent=15 // pred_check
        %p134 = pneg %p68
      $region22: #{dgcnn_forward.10} parent=15 // pred_check_branch
        %136 = sbr.rel (%p134) target = $region24
      $region23: #{dgcnn_forward.10} parent=15 // pred_region
        %p137 = scmp.lt.s32.totalorder %s15, 1
        %s138 = scalar_select %p137, %s15, 1
        %s139 = smul.addr %s138, 2
        %s140 = smul.addr %s139, 8
        %s141 = scalar_lea.vmem %s1, %s140
      $region24: #{dgcnn_forward.10} parent=15 // pred_fallthru
        _
    $region16: #{dgcnn_forward.10} parent=5 // pred_fallthru
      _
    %p142 = scmp.le.s32.totalorder 1, %s8
    %p143 = scmp.lt.s32.totalorder %s8, 3
    %p144 = pnand %p142, %p143
    %p145 = pneg %p144
    // Predicated region
    $region25: #{dgcnn_forward.10} parent=5 // pred_check
      _
    $region26: #{dgcnn_forward.10} parent=5 // pred_check_branch
      %147 = sbr.rel (%p144) target = $region28
    $region27: #{dgcnn_forward.10} parent=5 // pred_region
      %s148 = ssub.s32 %s8, 1
      %s149 = smul.u32 2, %s18
      %p150 = scmp.lt.s32.totalorder %s17, 1
      %s151 = scalar_select %p150, %s17, 1
      %p152 = scmp.lt.s32.totalorder %s149, 1
      %s153 = scalar_select %p152, %s149, 1
      %s154 = smul.addr %s151, 2
      %s155 = sadd.s32 %s153, %s154
      %s156 = smul.addr %s155, 8
      %s157 = scalar_lea.vmem %s0, %s156
      %p158 = pneg %p48
      %p159 = pneg %p45
      %p160 = scmp.lt.s32.totalorder %s17, 1
      %s161 = scalar_select %p160, %s17, 1
      %s162 = smul.addr %s161, 2
      %s163 = smul.addr %s162, 8
      %s164 = scalar_lea.vmem %s1, %s163
      %p165 = pneg %p74
      %p166 = pneg %p71
      %p167 = pneg %p102
      %p168 = pneg %p99
      %s169 = smul.u32 2, %s18
      %p170 = scmp.lt.s32.totalorder %s17, 1
      %s171 = scalar_select %p170, %s17, 1
      %p172 = scmp.lt.s32.totalorder %s169, 1
      %s173 = scalar_select %p172, %s169, 1
      %s174 = smul.addr %s171, 2
      %s175 = sadd.s32 %s173, %s174
      %s176 = smul.addr %s175, 8
      %s177 = scalar_lea.vmem %s2, %s176
      %s178 = smul.u32 2, %s18
      %p179 = scmp.lt.s32.totalorder %s17, 1
      %s180 = scalar_select %p179, %s17, 1
      %p181 = scmp.lt.s32.totalorder %s178, 1
      %s182 = scalar_select %p181, %s178, 1
      %s183 = smul.addr %s180, 2
      %s184 = sadd.s32 %s182, %s183
      %s185 = smul.addr %s184, 8
      %s186 = scalar_lea.vmem %s0, %s185
      %s187 = smul.u32 2, %s18
      %p188 = scmp.lt.s32.totalorder %s17, 1
      %s189 = scalar_select %p188, %s17, 1
      %s190 = smul.addr %s189, 2
      %s191 = smul.addr %s190, 8
      %s192 = scalar_lea.vmem %s1, %s191
      %s193 = smul.u32 2, %s18
      %p194 = scmp.lt.s32.totalorder %s17, 1
      %s195 = scalar_select %p194, %s17, 1
      %p196 = scmp.lt.s32.totalorder %s193, 1
      %s197 = scalar_select %p196, %s193, 1
      %s198 = smul.addr %s195, 2
      %s199 = sadd.s32 %s197, %s198
      %s200 = smul.addr %s199, 8
      %s201 = scalar_lea.vmem %s2, %s200
      %s202 = smul.u32 2, %s18
      %v203 = vld [vmem:[%s186] sm:$0xff]
      %v204 = vld [vmem:[%s186 + $0x8] sm:$0xff]
      %v205 = vld [vmem:[%s192] sm:$0xff]
      %v206 = vld [vmem:[%s192 + $0x8] sm:$0xff]
      %vm207 = vcmask 523264
      %v209 = vsel %vm207, %v203, 0
      %v212 = vsel %vm207, %v204, 0
      %v215 = vsel %vm207, %v205, 0
      %v218 = vsel %vm207, %v206, 0
      %220 = vmatprep.subr.mxu0 0.0
      %221 = vmatpush1.xpose.msra.mxu0 %v215
      %222 = vmatprep.subr.mxu0 0.0
      %223 = vmatpush1.xpose.msra.mxu0 %v218
      %224 = vmatprep.subr.mxu0 0.0
      %225 = vmatpush1.xpose.msra.mxu0 0.0
      %226 = vmatprep.subr.mxu0 0.0
      %227 = vmatpush1.xpose.msra.mxu0 0.0
      %228 = vmatprep.subr.mxu0 0.0
      %229 = vmatpush1.xpose.msra.mxu0 0.0
      %230 = vmatprep.subr.mxu0 0.0
      %231 = vmatpush1.xpose.msra.mxu0 0.0
      %232 = vmatprep.subr.mxu0 0.0
      %233 = vmatpush1.xpose.msra.mxu0 0.0
      %234 = vmatprep.subr.mxu0 0.0
      %235 = vmatpush1.xpose.msra.mxu0 0.0
      %236 = vmatprep.subr.mxu0 0.0
      %237 = vmatpush1.xpose.msra.mxu0 0.0
      %238 = vmatprep.subr.mxu0 0.0
      %239 = vmatpush1.xpose.msra.mxu0 0.0
      %240 = vmatprep.subr.mxu0 0.0
      %241 = vmatpush1.xpose.msra.mxu0 0.0
      %242 = vmatprep.subr.mxu0 0.0
      %243 = vmatpush1.xpose.msra.mxu0 0.0
      %244 = vmatprep.subr.mxu0 0.0
      %245 = vmatpush1.xpose.msra.mxu0 0.0
      %246 = vmatprep.subr.mxu0 0.0
      %247 = vmatpush1.xpose.msra.mxu0 0.0
      %248 = vmatprep.subr.mxu0 0.0
      %249 = vmatpush1.xpose.msra.mxu0 0.0
      %250 = vmatprep.subr.mxu0 0.0
      %251 = vmatpush1.xpose.msra.mxu0 0.0
      %252 = vmatprep.subr.mxu0 0.0
      %253 = vmatpush1.xpose.msra.mxu0 0.0
      %254 = vmatprep.subr.mxu0 0.0
      %255 = vmatpush1.xpose.msra.mxu0 0.0
      %256 = vmatprep.subr.mxu0 0.0
      %257 = vmatpush1.xpose.msra.mxu0 0.0
      %258 = vmatprep.subr.mxu0 0.0
      %259 = vmatpush1.xpose.msra.mxu0 0.0
      %260 = vmatprep.subr.mxu0 0.0
      %261 = vmatpush1.xpose.msra.mxu0 0.0
      %262 = vmatprep.subr.mxu0 0.0
      %263 = vmatpush1.xpose.msra.mxu0 0.0
      %264 = vmatprep.subr.mxu0 0.0
      %265 = vmatpush1.xpose.msra.mxu0 0.0
      %266 = vmatprep.subr.mxu0 0.0
      %267 = vmatpush1.xpose.msra.mxu0 0.0
      %268 = vmatprep.subr.mxu0 0.0
      %269 = vmatpush1.xpose.msra.mxu0 0.0
      %270 = vmatprep.subr.mxu0 0.0
      %271 = vmatpush1.xpose.msra.mxu0 0.0
      %272 = vmatprep.subr.mxu0 0.0
      %273 = vmatpush1.xpose.msra.mxu0 0.0
      %274 = vmatprep.subr.mxu0 0.0
      %275 = vmatpush1.xpose.msra.mxu0 0.0
      %276 = vmatprep.subr.mxu0 0.0
      %277 = vmatpush1.xpose.msra.mxu0 0.0
      %278 = vmatprep.subr.mxu0 0.0
      %279 = vmatpush1.xpose.msra.mxu0 0.0
      %280 = vmatprep.subr.mxu0 0.0
      %281 = vmatpush1.xpose.msra.mxu0 0.0
      %282 = vmatprep.subr.mxu0 0.0
      %283 = vmatpush1.xpose.msra.mxu0 0.0
      %284 = vmatprep.mubr.f32.mxu0 0.0
      %285 = vmatmul.mubr.f32.gmra.mrb[0].mxu0 %v209
      %v286 = vpop.f32.mrb[0].mxu0
      %v287 = vadd.f32 0.0, %v286
      %v288 = vpop.f32.mrb[0].mxu0
      %289 = vmatprep.mubr.f32.mxu0 0.0
      %290 = vmatmul.mubr.f32.gmra.mrb[0].mxu0 %v212
      %v291 = vpop.f32.mrb[0].mxu0
      %v292 = vadd.f32 0.0, %v291
      %v293 = vpop.f32.mrb[0].mxu0
      %294 = vdwg.mxu0
      %v295 = vmul.f32 %v203, %v203
      %v296 = vmul.f32 %v204, %v204
      %v297 = vsel %vm207, %v295, 0.0
      %298 = vadd.xlane.f32.xlu0 %v297
      %v299 = vpop.xlane.xlu0 %298
      %v300 = vsel %vm207, %v296, 0.0
      %301 = vadd.xlane.f32.xlu0 %v300
      %v302 = vpop.xlane.xlu0 %301
      %v303 = vmul.f32 %v205, %v205
      %v304 = vmul.f32 %v206, %v206
      %v306 = vsel %vm207, 1.0, 0
      %v309 = vsel %vm207, %v303, 0
      %v312 = vsel %vm207, %v304, 0
      %314 = vmatprep.subr.mxu0 0.0
      %315 = vmatpush1.xpose.msra.mxu0 %v309
      %316 = vmatprep.subr.mxu0 0.0
      %317 = vmatpush1.xpose.msra.mxu0 %v312
      %318 = vmatprep.subr.mxu0 0.0
      %319 = vmatpush1.xpose.msra.mxu0 0.0
      %320 = vmatprep.subr.mxu0 0.0
      %321 = vmatpush1.xpose.msra.mxu0 0.0
      %322 = vmatprep.subr.mxu0 0.0
      %323 = vmatpush1.xpose.msra.mxu0 0.0
      %324 = vmatprep.subr.mxu0 0.0
      %325 = vmatpush1.xpose.msra.mxu0 0.0
      %326 = vmatprep.subr.mxu0 0.0
      %327 = vmatpush1.xpose.msra.mxu0 0.0
      %328 = vmatprep.subr.mxu0 0.0
      %329 = vmatpush1.xpose.msra.mxu0 0.0
      %330 = vmatprep.subr.mxu0 0.0
      %331 = vmatpush1.xpose.msra.mxu0 0.0
      %332 = vmatprep.subr.mxu0 0.0
      %333 = vmatpush1.xpose.msra.mxu0 0.0
      %334 = vmatprep.subr.mxu0 0.0
      %335 = vmatpush1.xpose.msra.mxu0 0.0
      %336 = vmatprep.subr.mxu0 0.0
      %337 = vmatpush1.xpose.msra.mxu0 0.0
      %338 = vmatprep.subr.mxu0 0.0
      %339 = vmatpush1.xpose.msra.mxu0 0.0
      %340 = vmatprep.subr.mxu0 0.0
      %341 = vmatpush1.xpose.msra.mxu0 0.0
      %342 = vmatprep.subr.mxu0 0.0
      %343 = vmatpush1.xpose.msra.mxu0 0.0
      %344 = vmatprep.subr.mxu0 0.0
      %345 = vmatpush1.xpose.msra.mxu0 0.0
      %346 = vmatprep.subr.mxu0 0.0
      %347 = vmatpush1.xpose.msra.mxu0 0.0
      %348 = vmatprep.subr.mxu0 0.0
      %349 = vmatpush1.xpose.msra.mxu0 0.0
      %350 = vmatprep.subr.mxu0 0.0
      %351 = vmatpush1.xpose.msra.mxu0 0.0
      %352 = vmatprep.subr.mxu0 0.0
      %353 = vmatpush1.xpose.msra.mxu0 0.0
      %354 = vmatprep.subr.mxu0 0.0
      %355 = vmatpush1.xpose.msra.mxu0 0.0
      %356 = vmatprep.subr.mxu0 0.0
      %357 = vmatpush1.xpose.msra.mxu0 0.0
      %358 = vmatprep.subr.mxu0 0.0
      %359 = vmatpush1.xpose.msra.mxu0 0.0
      %360 = vmatprep.subr.mxu0 0.0
      %361 = vmatpush1.xpose.msra.mxu0 0.0
      %362 = vmatprep.subr.mxu0 0.0
      %363 = vmatpush1.xpose.msra.mxu0 0.0
      %364 = vmatprep.subr.mxu0 0.0
      %365 = vmatpush1.xpose.msra.mxu0 0.0
      %366 = vmatprep.subr.mxu0 0.0
      %367 = vmatpush1.xpose.msra.mxu0 0.0
      %368 = vmatprep.subr.mxu0 0.0
      %369 = vmatpush1.xpose.msra.mxu0 0.0
      %370 = vmatprep.subr.mxu0 0.0
      %371 = vmatpush1.xpose.msra.mxu0 0.0
      %372 = vmatprep.subr.mxu0 0.0
      %373 = vmatpush1.xpose.msra.mxu0 0.0
      %374 = vmatprep.subr.mxu0 0.0
      %375 = vmatpush1.xpose.msra.mxu0 0.0
      %376 = vmatprep.subr.mxu0 0.0
      %377 = vmatpush1.xpose.msra.mxu0 0.0
      %378 = vmatprep.mubr.f32.mxu0 0.0
      %379 = vmatmul.mubr.f32.gmra.mrb[0].mxu0 %v306
      %v380 = vpop.f32.mrb[0].mxu0
      %v381 = vadd.f32 0.0, %v380
      %v382 = vpop.f32.mrb[0].mxu0
      %383 = vdwg.mxu0
      %v384 = vmul.f32 %v287, 2.0
      %v385 = vmul.f32 %v292, 2.0
      %v386 = vsub.f32 %v384, %v299
      %v387 = vsub.f32 %v385, %v302
      %v388 = vlaneseq
      %v389 = vshrl.u32 %v388, 7
      %v390 = vsub.s32 0, %v389
      %v391 = vrot.slane %v381, %v390
      %v392 = vsub.f32 %v386, %v391
      %v393 = vsub.f32 %v387, %v391
      %vm394 = vcmask 130048
      %395 = vst.msk [vmem:[%s201] sm:$0xff] %vm394, %v392
      %396 = vst.msk [vmem:[%s201 + $0x8] sm:$0xff] %vm394, %v393
      %s397 = smul.u32 2, %s18
      %p398 = scmp.lt.s32.totalorder %s17, 1
      %s399 = scalar_select %p398, %s17, 1
      %p400 = scmp.lt.s32.totalorder %s397, 1
      %s401 = scalar_select %p400, %s397, 1
      %s402 = smul.addr %s399, 2
      %s403 = sadd.s32 %s401, %s402
      %s404 = smul.addr %s403, 8
      %s405 = scalar_lea.vmem %s2, %s404
      // Predicated region
      $region29: #{dgcnn_forward.10} parent=27 // pred_check
        %p406 = pneg %p99
      $region30: #{dgcnn_forward.10} parent=27 // pred_check_branch
        %408 = sbr.rel (%p406) target = $region32
      $region31: #{dgcnn_forward.10} parent=27 // pred_region
        %s409 = smul.u32 2, %s18
      $region32: #{dgcnn_forward.10} parent=27 // pred_fallthru
        _
    $region28: #{dgcnn_forward.10} parent=5 // pred_fallthru
      _
    %p410 = scmp.le.s32.totalorder 2, %s8
    // Predicated region
    $region33: #{dgcnn_forward.10} parent=5 // pred_check
      %p411 = pneg %p410
    $region34: #{dgcnn_forward.10} parent=5 // pred_check_branch
      %413 = sbr.rel (%p411) target = $region36
    $region35: #{dgcnn_forward.10} parent=5 // pred_region
      %s414 = ssub.s32 %s8, 2
      // Predicated region
      $region37: #{dgcnn_forward.10} parent=35 // pred_check
        %p415 = pneg %p105
      $region38: #{dgcnn_forward.10} parent=35 // pred_check_branch
        %417 = sbr.rel (%p415) target = $region40
      $region39: #{dgcnn_forward.10} parent=35 // pred_region
        %s418 = smul.u32 2, %s20
        %p419 = scmp.lt.s32.totalorder %s19, 1
        %s420 = scalar_select %p419, %s19, 1
        %p421 = scmp.lt.s32.totalorder %s418, 1
        %s422 = scalar_select %p421, %s418, 1
        %s423 = smul.addr %s420, 2
        %s424 = sadd.s32 %s422, %s423
        %s425 = smul.addr %s424, 8
        %s426 = scalar_lea.vmem %s2, %s425
      $region40: #{dgcnn_forward.10} parent=35 // pred_fallthru
        _
    $region36: #{dgcnn_forward.10} parent=5 // pred_fallthru
      _
  $region6: #{dgcnn_forward.10} parent=0 // loop_footer
    %s12 = sadd.s32 1, %s8
  $region7: #{dgcnn_forward.10} parent=0 // loop_footer_branch
    %7 = sbr.rel target = $region3
  $region8: #{dgcnn_forward.10} parent=0 // loop_exit
    _

// kernel: dgcnn_forward.11
$region0: #{dgcnn_forward.11}
  #allocation0 [shape = 'u32[]', space=smem, size = 0x4, offset = 0x4, fixed_abs, tag = 'smem constant byte address 0x4 - core index']
  #allocation1 [shape = 'u32[144,128]{1,0:T(1,128)}', space=vmem, size = 0x12000, scoped, tag = 'internal scratch']
  #allocation2 [shape = 'f32[16,64]{1,0:T(8,128)}', space=vmem, size = 0x2000, scoped, tag = 'scratch operand']
  %s0 = inlined_call_operand.vmem [shape: bf16[2,4,16,64], index: 0, kind: input, shape index: {}]
  %s1 = inlined_call_operand.vmem [shape: bf16[2,16,64], index: 1, kind: input, shape index: {}]
  %s2 = inlined_call_operand.vmem [shape: bf16[64,64], index: 2, kind: input, shape index: {}]
  %s3 = inlined_call_operand.vmem [shape: bf16[64,64], index: 3, kind: input, shape index: {}]
  %s4 = inlined_call_operand.vmem [shape: f32[1,64], index: 4, kind: input, shape index: {}]
  %s5 = inlined_call_operand.vmem [shape: f32[2,16,64], index: 5, kind: output, shape index: {}]
  %s6 = sld [smem:[#allocation0]]
  $region65: #{dgcnn_forward.11} parent=0
    _
  %s8 = ssub.s32 1, %s6
  %s9 = scalar_select 0, %s8, %s6
  loop: start=0, step=1, limit=10
  $region2: #{dgcnn_forward.11} parent=0 // loop_pre_header
    _
  $region3: #{dgcnn_forward.11} parent=0 // loop_header
    %s11 = sphi 0, %s15
    %p12 = scmp.ge.s32.totalorder %s11, 10
    %s18 = sphi 0, %s30
    %s19 = sphi 0, %s26
    %s20 = sphi 0, %s18
    %s21 = sphi 0, %s19
    %s22 = sphi 0, %s20
    %s23 = sphi 0, %s21
    %s35 = sphi 0, %s37
    %s38 = sphi 0, %s35
    %s39 = sphi 0, %s38
    %s55 = sphi 0, %s39
    %s61 = sphi 0, %s63
    %s64 = sphi 0, %s61
    %s65 = sphi 0, %s64
    %s81 = sphi 0, %s65
    %s85 = sphi 0, %s85
    %s87 = sphi 0, %s85
    %s88 = sphi 0, %s87
    %s102 = sphi 0, %s88
    %s106 = sphi 0, %s106
    %s108 = sphi 0, %s106
    %s109 = sphi 0, %s108
    %s123 = sphi 0, %s109
    %s127 = sphi 0, %s127
    %s129 = sphi 0, %s127
    %s130 = sphi 0, %s129
    %s144 = sphi 0, %s130
    %s150 = sphi 0, %s152
    %s153 = sphi 0, %s150
    %s154 = sphi 0, %s153
    %s170 = sphi 0, %s154
  $region4: #{dgcnn_forward.11} parent=0 // loop_header_branch
    %14 = sbr.rel (%p12) target = $region8
  $region5: #{dgcnn_forward.11} parent=0 // loop_body
    %s16 = ssub.s32 %s11, 1
    %s17 = ssub.s32 %s11, 2
    %s24 = sadd.s32 1, %s19
    %p25 = scmp.ge.s32.totalorder %s24, 4
    %s26 = scalar_select %p25, 0, %s24
    %s27 = sadd.s32 1, %s18
    %s28 = scalar_select %p25, %s27, %s18
    %p29 = scmp.ge.s32.totalorder %s28, 2
    %s30 = scalar_select %p29, 0, %s28
    %s31 = ssub.s32 %s18, %s30
    %s32 = ssub.s32 %s19, %s26
    %s33 = sor.u32 %s31, %s32
    %p34 = scmp.eq.s32.totalorder %s33, 0
    %s36 = sadd.s32 %s35, 1
    %s37 = scalar_select %p34, %s35, %s36
    %p40 = pneg %p34
    %p41 = scmp.eq.s32.totalorder %s11, 7
    %p42 = por %p40, %p41
    %p43 = scmp.ne.s32.totalorder %s35, %s38
    %p44 = scmp.eq.s32.totalorder %s11, 0
    %p45 = por %p43, %p44
    %p46 = scmp.ne.s32.totalorder %s35, %s38
    %p47 = scmp.eq.s32.totalorder %s16, 7
    %p48 = por %p46, %p47
    %p49 = scmp.ne.s32.totalorder %s38, %s39
    %p50 = scmp.eq.s32.totalorder %s16, 0
    %p51 = por %p49, %p50
    %p52 = scmp.ne.s32.totalorder %s38, %s39
    %p53 = scmp.eq.s32.totalorder %s17, 7
    %p54 = por %p52, %p53
    %p56 = scmp.ne.s32.totalorder %s39, %s55
    %p57 = scmp.eq.s32.totalorder %s17, 0
    %p58 = por %p56, %p57
    %s59 = ssub.s32 %s18, %s30
    %p60 = scmp.eq.s32.totalorder %s59, 0
    %s62 = sadd.s32 %s61, 1
    %s63 = scalar_select %p60, %s61, %s62
    %p66 = pneg %p60
    %p67 = scmp.eq.s32.totalorder %s11, 7
    %p68 = por %p66, %p67
    %p69 = scmp.ne.s32.totalorder %s61, %s64
    %p70 = scmp.eq.s32.totalorder %s11, 0
    %p71 = por %p69, %p70
    %p72 = scmp.ne.s32.totalorder %s61, %s64
    %p73 = scmp.eq.s32.totalorder %s16, 7
    %p74 = por %p72, %p73
    %p75 = scmp.ne.s32.totalorder %s64, %s65
    %p76 = scmp.eq.s32.totalorder %s16, 0
    %p77 = por %p75, %p76
    %p78 = scmp.ne.s32.totalorder %s64, %s65
    %p79 = scmp.eq.s32.totalorder %s17, 7
    %p80 = por %p78, %p79
    %p82 = scmp.ne.s32.totalorder %s65, %s81
    %p83 = scmp.eq.s32.totalorder %s17, 0
    %p84 = por %p82, %p83
    %s86 = sadd.s32 %s85, 1
    %p89 = scmp.eq.s32.totalorder %s11, 7
    %p90 = scmp.ne.s32.totalorder %s85, %s87
    %p91 = scmp.eq.s32.totalorder %s11, 0
    %p92 = por %p90, %p91
    %p93 = scmp.ne.s32.totalorder %s85, %s87
    %p94 = scmp.eq.s32.totalorder %s16, 7
    %p95 = por %p93, %p94
    %p96 = scmp.ne.s32.totalorder %s87, %s88
    %p97 = scmp.eq.s32.totalorder %s16, 0
    %p98 = por %p96, %p97
    %p99 = scmp.ne.s32.totalorder %s87, %s88
    %p100 = scmp.eq.s32.totalorder %s17, 7
    %p101 = por %p99, %p100
    %p103 = scmp.ne.s32.totalorder %s88, %s102
    %p104 = scmp.eq.s32.totalorder %s17, 0
    %p105 = por %p103, %p104
    %s107 = sadd.s32 %s106, 1
    %p110 = scmp.eq.s32.totalorder %s11, 7
    %p111 = scmp.ne.s32.totalorder %s106, %s108
    %p112 = scmp.eq.s32.totalorder %s11, 0
    %p113 = por %p111, %p112
    %p114 = scmp.ne.s32.totalorder %s106, %s108
    %p115 = scmp.eq.s32.totalorder %s16, 7
    %p116 = por %p114, %p115
    %p117 = scmp.ne.s32.totalorder %s108, %s109
    %p118 = scmp.eq.s32.totalorder %s16, 0
    %p119 = por %p117, %p118
    %p120 = scmp.ne.s32.totalorder %s108, %s109
    %p121 = scmp.eq.s32.totalorder %s17, 7
    %p122 = por %p120, %p121
    %p124 = scmp.ne.s32.totalorder %s109, %s123
    %p125 = scmp.eq.s32.totalorder %s17, 0
    %p126 = por %p124, %p125
    %s128 = sadd.s32 %s127, 1
    %p131 = scmp.eq.s32.totalorder %s11, 7
    %p132 = scmp.ne.s32.totalorder %s127, %s129
    %p133 = scmp.eq.s32.totalorder %s11, 0
    %p134 = por %p132, %p133
    %p135 = scmp.ne.s32.totalorder %s127, %s129
    %p136 = scmp.eq.s32.totalorder %s16, 7
    %p137 = por %p135, %p136
    %p138 = scmp.ne.s32.totalorder %s129, %s130
    %p139 = scmp.eq.s32.totalorder %s16, 0
    %p140 = por %p138, %p139
    %p141 = scmp.ne.s32.totalorder %s129, %s130
    %p142 = scmp.eq.s32.totalorder %s17, 7
    %p143 = por %p141, %p142
    %p145 = scmp.ne.s32.totalorder %s130, %s144
    %p146 = scmp.eq.s32.totalorder %s17, 0
    %p147 = por %p145, %p146
    %s148 = ssub.s32 %s18, %s30
    %p149 = scmp.eq.s32.totalorder %s148, 0
    %s151 = sadd.s32 %s150, 1
    %s152 = scalar_select %p149, %s150, %s151
    %p155 = pneg %p149
    %p156 = scmp.eq.s32.totalorder %s11, 7
    %p157 = por %p155, %p156
    %p158 = scmp.ne.s32.totalorder %s150, %s153
    %p159 = scmp.eq.s32.totalorder %s11, 0
    %p160 = por %p158, %p159
    %p161 = scmp.ne.s32.totalorder %s150, %s153
    %p162 = scmp.eq.s32.totalorder %s16, 7
    %p163 = por %p161, %p162
    %p164 = scmp.ne.s32.totalorder %s153, %s154
    %p165 = scmp.eq.s32.totalorder %s16, 0
    %p166 = por %p164, %p165
    %p167 = scmp.ne.s32.totalorder %s153, %s154
    %p168 = scmp.eq.s32.totalorder %s17, 7
    %p169 = por %p167, %p168
    %p171 = scmp.ne.s32.totalorder %s154, %s170
    %p172 = scmp.eq.s32.totalorder %s17, 0
    %p173 = por %p171, %p172
    %p174 = scmp.le.s32.totalorder 1, %s11
    %p175 = scmp.lt.s32.totalorder %s11, 9
    %p176 = pnand %p174, %p175
    %p177 = pneg %p176
    // Predicated region
    $region9: #{dgcnn_forward.11} parent=5 // pred_check
      _
    $region10: #{dgcnn_forward.11} parent=5 // pred_check_branch
      %179 = sbr.rel (%p176) target = $region12
    $region11: #{dgcnn_forward.11} parent=5 // pred_region
      %s180 = ssub.s32 %s11, 1
      // Predicated region
      $region13: #{dgcnn_forward.11} parent=11 // pred_check
        %p181 = pneg %p98
      $region14: #{dgcnn_forward.11} parent=11 // pred_check_branch
        %183 = sbr.rel (%p181) target = $region16
      $region15: #{dgcnn_forward.11} parent=11 // pred_region
        _
      $region16: #{dgcnn_forward.11} parent=11 // pred_fallthru
        _
      // Predicated region
      $region17: #{dgcnn_forward.11} parent=11 // pred_check
        %p184 = pneg %p119
      $region18: #{dgcnn_forward.11} parent=11 // pred_check_branch
        %186 = sbr.rel (%p184) target = $region20
      $region19: #{dgcnn_forward.11} parent=11 // pred_region
        _
      $region20: #{dgcnn_forward.11} parent=11 // pred_fallthru
        _
      // Predicated region
      $region21: #{dgcnn_forward.11} parent=11 // pred_check
        %p187 = pneg %p140
      $region22: #{dgcnn_forward.11} parent=11 // pred_check_branch
        %189 = sbr.rel (%p187) target = $region24
      $region23: #{dgcnn_forward.11} parent=11 // pred_region
        _
      $region24: #{dgcnn_forward.11} parent=11 // pred_fallthru
        _
    $region12: #{dgcnn_forward.11} parent=5 // pred_fallthru
      _
    %p190 = scmp.lt.s32.totalorder %s11, 8
    // Predicated region
    $region25: #{dgcnn_forward.11} parent=5 // pred_check
      %p191 = pneg %p190
    $region26: #{dgcnn_forward.11} parent=5 // pred_check_branch
      %193 = sbr.rel (%p191) target = $region28
    $region27: #{dgcnn_forward.11} parent=5 // pred_region
      // Predicated region
      $region29: #{dgcnn_forward.11} parent=27 // pred_check
        %p194 = pneg %p45
      $region30: #{dgcnn_forward.11} parent=27 // pred_check_branch
        %196 = sbr.rel (%p194) target = $region32
      $region31: #{dgcnn_forward.11} parent=27 // pred_region
        %p197 = scmp.lt.s32.totalorder %s18, 1
        %s198 = scalar_select %p197, %s18, 1
        %p199 = scmp.lt.s32.totalorder %s19, 3
        %s200 = scalar_select %p199, %s19, 3
        %s201 = smul.addr %s200, 2
        %s202 = smul.addr %s198, 8
        %s203 = sadd.s32 %s201, %s202
        %s204 = smul.addr %s203, 4
        %s205 = scalar_lea.vmem %s0, %s204
      $region32: #{dgcnn_forward.11} parent=27 // pred_fallthru
        _
      // Predicated region
      $region33: #{dgcnn_forward.11} parent=27 // pred_check
        %p206 = pneg %p71
      $region34: #{dgcnn_forward.11} parent=27 // pred_check_branch
        %208 = sbr.rel (%p206) target = $region36
      $region35: #{dgcnn_forward.11} parent=27 // pred_region
        %p209 = scmp.lt.s32.totalorder %s18, 1
        %s210 = scalar_select %p209, %s18, 1
        %s211 = smul.addr %s210, 2
        %s212 = smul.addr %s211, 4
        %s213 = scalar_lea.vmem %s1, %s212
      $region36: #{dgcnn_forward.11} parent=27 // pred_fallthru
        _
    $region28: #{dgcnn_forward.11} parent=5 // pred_fallthru
      _
    %p214 = scmp.le.s32.totalorder 1, %s11
    %p215 = scmp.lt.s32.totalorder %s11, 9
    %p216 = pnand %p214, %p215
    %p217 = pneg %p216
    // Predicated region
    $region37: #{dgcnn_forward.11} parent=5 // pred_check
      _
    $region38: #{dgcnn_forward.11} parent=5 // pred_check_branch
      %219 = sbr.rel (%p216) target = $region40
    $region39: #{dgcnn_forward.11} parent=5 // pred_region
      %s220 = ssub.s32 %s11, 1
      %p221 = scmp.lt.s32.totalorder %s20, 1
      %s222 = scalar_select %p221, %s20, 1
      %p223 = scmp.lt.s32.totalorder %s21, 3
      %s224 = scalar_select %p223, %s21, 3
      %s225 = smul.addr %s224, 2
      %s226 = smul.addr %s222, 8
      %s227 = sadd.s32 %s225, %s226
      %s228 = smul.addr %s227, 4
      %s229 = scalar_lea.vmem %s0, %s228
      %p230 = pneg %p51
      %p231 = pneg %p48
      %p232 = scmp.lt.s32.totalorder %s20, 1
      %s233 = scalar_select %p232, %s20, 1
      %s234 = smul.addr %s233, 2
      %s235 = smul.addr %s234, 4
      %s236 = scalar_lea.vmem %s1, %s235
      %p237 = pneg %p77
      %p238 = pneg %p74
      %p239 = pneg %p98
      %p240 = pneg %p95
      %p241 = pneg %p119
      %p242 = pneg %p116
      %p243 = pneg %p140
      %p244 = pneg %p137
      %p245 = pneg %p166
      %p246 = pneg %p163
      %p247 = scmp.lt.s32.totalorder %s20, 1
      %s248 = scalar_select %p247, %s20, 1
      %s249 = smul.addr %s248, 2
      %s250 = smul.addr %s249, 8
      %s251 = scalar_lea.vmem %s5, %s250
      %p252 = scmp.lt.s32.totalorder %s20, 1
      %s253 = scalar_select %p252, %s20, 1
      %p254 = scmp.lt.s32.totalorder %s21, 3
      %s255 = scalar_select %p254, %s21, 3
      %s256 = smul.addr %s255, 2
      %s257 = smul.addr %s253, 8
      %s258 = sadd.s32 %s256, %s257
      %s259 = smul.addr %s258, 4
      %s260 = scalar_lea.vmem %s0, %s259
      %p261 = scmp.lt.s32.totalorder %s20, 1
      %s262 = scalar_select %p261, %s20, 1
      %s263 = smul.addr %s262, 2
      %s264 = smul.addr %s263, 4
      %s265 = scalar_lea.vmem %s1, %s264
      %p266 = scmp.lt.s32.totalorder %s20, 1
      %s267 = scalar_select %p266, %s20, 1
      %s268 = smul.addr %s267, 2
      %s269 = smul.addr %s268, 8
      %s270 = scalar_lea.vmem %s5, %s269
      %p272 = scmp.eq.s32.totalorder %s21, 0
      // Predicated region
      $region41: #{dgcnn_forward.11} parent=39 // pred_check
        %p273 = pneg %p272
      $region42: #{dgcnn_forward.11} parent=39 // pred_check_branch
        %275 = sbr.rel (%p273) target = $region44
      $region43: #{dgcnn_forward.11} parent=39 // pred_region
        %v276 = vld [vmem:[%s265] sm:$0xf]
        %v277 = vld [vmem:[%s265 + $0x4] sm:$0xf]
        %v278 = vld [vmem:[%s3] sm:$0xf]
        %v279 = vld [vmem:[%s3 + $0x4] sm:$0xf]
        %v280 = vld [vmem:[%s3 + $0x8] sm:$0xf]
        %v281 = vld [vmem:[%s3 + $0xc] sm:$0xf]
        %v282 = vld [vmem:[%s3 + $0x10] sm:$0xf]
        %v283 = vld [vmem:[%s3 + $0x14] sm:$0xf]
        %v284 = vld [vmem:[%s3 + $0x18] sm:$0xf]
        %v285 = vld [vmem:[%s3 + $0x1c] sm:$0xf]
        %v286 = vld [vmem:[%s4] sm:$0x1]
        %v288 = vlaneseq
        %v289 = vshrl.u32 %v288, 7
        %v290 = vsub.s32 0, %v289
        %v291 = vrot.slane %v286, %v290
        %v295 = vunpack.c.l.b16 %v276
        %v296 = vunpack.c.l.b16 %v277
        %v297 = vpack.c.b16 %v296, %v295
        %v306 = vunpack.c.l.b16 %v278
        %v307 = vunpack.c.l.b16 %v279
        %v308 = vunpack.c.l.b16 %v280
        %v309 = vunpack.c.l.b16 %v281
        %v310 = vunpack.c.l.b16 %v282
        %v311 = vunpack.c.l.b16 %v283
        %v312 = vunpack.c.l.b16 %v284
        %v313 = vunpack.c.l.b16 %v285
        %v314 = vpack.c.b16 %v307, %v306
        %v315 = vpack.c.b16 %v309, %v308
        %v316 = vpack.c.b16 %v311, %v310
        %v317 = vpack.c.b16 %v313, %v312
        %vm322 = vcmask 523264
        %v324 = vsel %vm322, %v297, 0
        %326 = vmatprep.subr.bf16.mxu0 0
        %327 = vmatpush1.bf16.msra.mxu0 %v314
        %328 = vmatprep.subr.bf16.mxu0 0
        %329 = vmatpush1.bf16.msra.mxu0 %v315
        %330 = vmatprep.subr.bf16.mxu0 0
        %331 = vmatpush1.bf16.msra.mxu0 %v316
        %332 = vmatprep.subr.bf16.mxu0 0
        %333 = vmatpush1.bf16.msra.mxu0 %v317
        %334 = vmatprep.subr.bf16.mxu0 0
        %335 = vmatpush1.bf16.msra.mxu0 0
        %336 = vmatprep.subr.bf16.mxu0 0
        %337 = vmatpush1.bf16.msra.mxu0 0
        %338 = vmatprep.subr.bf16.mxu0 0
        %339 = vmatpush1.bf16.msra.mxu0 0
        %340 = vmatprep.subr.bf16.mxu0 0
        %341 = vmatpush1.bf16.msra.mxu0 0
        %342 = vmatprep.subr.bf16.mxu0 0
        %343 = vmatpush1.bf16.msra.mxu0 0
        %344 = vmatprep.subr.bf16.mxu0 0
        %345 = vmatpush1.bf16.msra.mxu0 0
        %346 = vmatprep.subr.bf16.mxu0 0
        %347 = vmatpush1.bf16.msra.mxu0 0
        %348 = vmatprep.subr.bf16.mxu0 0
        %349 = vmatpush1.bf16.msra.mxu0 0
        %350 = vmatprep.subr.bf16.mxu0 0
        %351 = vmatpush1.bf16.msra.mxu0 0
        %352 = vmatprep.subr.bf16.mxu0 0
        %353 = vmatpush1.bf16.msra.mxu0 0
        %354 = vmatprep.subr.bf16.mxu0 0
        %355 = vmatpush1.bf16.msra.mxu0 0
        %356 = vmatprep.subr.bf16.mxu0 0
        %357 = vmatpush1.bf16.msra.mxu0 0
        %358 = vmatprep.mubr.bf16.mxu0 0
        %359 = vmatmul.mubr.bf16.gmra.mrb[0].mxu0 %v324
        %v360 = vpop.f32.mrb[0].mxu0
        %v361 = vadd.f32 %v291, %v360
        %v362 = vpop.f32.mrb[0].mxu0
        %v363 = vpop.f32.mrb[0].mxu0
        %v364 = vadd.f32 %v291, %v363
        %v365 = vpop.f32.mrb[0].mxu0
        %366 = vdwg.mxu0
        %367 = vst.msk [vmem:[#allocation2] sm:$0xff] %vm322, %v361
        %368 = vst.msk [vmem:[#allocation2 + $0x8] sm:$0xff] %vm322, %v364
      $region44: #{dgcnn_forward.11} parent=39 // pred_fallthru
        _
      %v369 = vld [vmem:[%s260] sm:$0xf]
      %v370 = vld [vmem:[%s260 + $0x4] sm:$0xf]
      %v371 = vld [vmem:[%s2] sm:$0xf]
      %v372 = vld [vmem:[%s2 + $0x4] sm:$0xf]
      %v373 = vld [vmem:[%s2 + $0x8] sm:$0xf]
      %v374 = vld [vmem:[%s2 + $0xc] sm:$0xf]
      %v375 = vld [vmem:[%s2 + $0x10] sm:$0xf]
      %v376 = vld [vmem:[%s2 + $0x14] sm:$0xf]
      %v377 = vld [vmem:[%s2 + $0x18] sm:$0xf]
      %v378 = vld [vmem:[%s2 + $0x1c] sm:$0xf]
      %v379 = vld [vmem:[#allocation2] sm:$0xff]
      %v380 = vld [vmem:[#allocation2 + $0x8] sm:$0xff]
      %v383 = vunpack.c.l.b16 %v369
      %v384 = vunpack.c.l.b16 %v370
      %v385 = vpack.c.b16 %v384, %v383
      %v394 = vunpack.c.l.b16 %v371
      %v395 = vunpack.c.l.b16 %v372
      %v396 = vunpack.c.l.b16 %v373
      %v397 = vunpack.c.l.b16 %v374
      %v398 = vunpack.c.l.b16 %v375
      %v399 = vunpack.c.l.b16 %v376
      %v400 = vunpack.c.l.b16 %v377
      %v401 = vunpack.c.l.b16 %v378
      %v402 = vpack.c.b16 %v395, %v394
      %v403 = vpack.c.b16 %v397, %v396
      %v404 = vpack.c.b16 %v399, %v398
      %v405 = vpack.c.b16 %v401, %v400
      %vm410 = vcmask 523264
      %v412 = vsel %vm410, %v385, 0
      %414 = vmatprep.subr.bf16.mxu0 0
      %415 = vmatpush1.bf16.msra.mxu0 %v402
      %416 = vmatprep.subr.bf16.mxu0 0
      %417 = vmatpush1.bf16.msra.mxu0 %v403
      %418 = vmatprep.subr.bf16.mxu0 0
      %419 = vmatpush1.bf16.msra.mxu0 %v404
      %420 = vmatprep.subr.bf16.mxu0 0
      %421 = vmatpush1.bf16.msra.mxu0 %v405
      %422 = vmatprep.subr.bf16.mxu0 0
      %423 = vmatpush1.bf16.msra.mxu0 0
      %424 = vmatprep.subr.bf16.mxu0 0
      %425 = vmatpush1.bf16.msra.mxu0 0
      %426 = vmatprep.subr.bf16.mxu0 0
      %427 = vmatpush1.bf16.msra.mxu0 0
      %428 = vmatprep.subr.bf16.mxu0 0
      %429 = vmatpush1.bf16.msra.mxu0 0
      %430 = vmatprep.subr.bf16.mxu0 0
      %431 = vmatpush1.bf16.msra.mxu0 0
      %432 = vmatprep.subr.bf16.mxu0 0
      %433 = vmatpush1.bf16.msra.mxu0 0
      %434 = vmatprep.subr.bf16.mxu0 0
      %435 = vmatpush1.bf16.msra.mxu0 0
      %436 = vmatprep.subr.bf16.mxu0 0
      %437 = vmatpush1.bf16.msra.mxu0 0
      %438 = vmatprep.subr.bf16.mxu0 0
      %439 = vmatpush1.bf16.msra.mxu0 0
      %440 = vmatprep.subr.bf16.mxu0 0
      %441 = vmatpush1.bf16.msra.mxu0 0
      %442 = vmatprep.subr.bf16.mxu0 0
      %443 = vmatpush1.bf16.msra.mxu0 0
      %444 = vmatprep.subr.bf16.mxu0 0
      %445 = vmatpush1.bf16.msra.mxu0 0
      %446 = vmatprep.mubr.bf16.mxu0 0
      %447 = vmatmul.mubr.bf16.gmra.mrb[0].mxu0 %v412
      %v448 = vpop.f32.mrb[0].mxu0
      %v449 = vadd.f32 %v379, %v448
      %v450 = vpop.f32.mrb[0].mxu0
      %v451 = vpop.f32.mrb[0].mxu0
      %v452 = vadd.f32 %v380, %v451
      %v453 = vpop.f32.mrb[0].mxu0
      %454 = vdwg.mxu0
      %vm455 = vcmp.gt.f32.partialorder %v449, 0.0
      %vm456 = vcmp.gt.f32.partialorder %v452, 0.0
      %v457 = vmul.f32 %v449, 0.2
      %v458 = vmul.f32 %v452, 0.2
      %v459 = vsel %vm455, %v449, %v457
      %v460 = vsel %vm456, %v452, %v458
      // Predicated region
      $region45: #{dgcnn_forward.11} parent=39 // pred_check
        %p461 = pneg %p272
      $region46: #{dgcnn_forward.11} parent=39 // pred_check_branch
        %463 = sbr.rel (%p461) target = $region48
      $region47: #{dgcnn_forward.11} parent=39 // pred_region
        %464 = vst.msk [vmem:[%s270] sm:$0xff] %vm410, %v459
        %465 = vst.msk [vmem:[%s270 + $0x8] sm:$0xff] %vm410, %v460
      $region48: #{dgcnn_forward.11} parent=39 // pred_fallthru
        _
      %p466 = scmp.gt.s32.totalorder %s21, 0
      // Predicated region
      $region49: #{dgcnn_forward.11} parent=39 // pred_check
        %p467 = pneg %p466
      $region50: #{dgcnn_forward.11} parent=39 // pred_check_branch
        %469 = sbr.rel (%p467) target = $region52
      $region51: #{dgcnn_forward.11} parent=39 // pred_region
        %v470 = vld [vmem:[%s270] sm:$0xff]
        %v471 = vld [vmem:[%s270 + $0x8] sm:$0xff]
        %v472 = vmax.f32 %v470, %v459
        %v473 = vmax.f32 %v471, %v460
        %474 = vst.msk [vmem:[%s270] sm:$0xff] %vm410, %v472
        %475 = vst.msk [vmem:[%s270 + $0x8] sm:$0xff] %vm410, %v473
      $region52: #{dgcnn_forward.11} parent=39 // pred_fallthru
        _
      %p476 = scmp.lt.s32.totalorder %s20, 1
      %s477 = scalar_select %p476, %s20, 1
      %s478 = smul.addr %s477, 2
      %s479 = smul.addr %s478, 8
      %s480 = scalar_lea.vmem %s5, %s479
      // Predicated region
      $region53: #{dgcnn_forward.11} parent=39 // pred_check
        %p481 = pneg %p163
      $region54: #{dgcnn_forward.11} parent=39 // pred_check_branch
        %483 = sbr.rel (%p481) target = $region56
      $region55: #{dgcnn_forward.11} parent=39 // pred_region
        _
      $region56: #{dgcnn_forward.11} parent=39 // pred_fallthru
        _
    $region40: #{dgcnn_forward.11} parent=5 // pred_fallthru
      _
    %p484 = scmp.le.s32.totalorder 2, %s11
    // Predicated region
    $region57: #{dgcnn_forward.11} parent=5 // pred_check
      %p485 = pneg %p484
    $region58: #{dgcnn_forward.11} parent=5 // pred_check_branch
      %487 = sbr.rel (%p485) target = $region60
    $region59: #{dgcnn_forward.11} parent=5 // pred_region
      %s488 = ssub.s32 %s11, 2
      // Predicated region
      $region61: #{dgcnn_forward.11} parent=59 // pred_check
        %p489 = pneg %p169
      $region62: #{dgcnn_forward.11} parent=59 // pred_check_branch
        %491 = sbr.rel (%p489) target = $region64
      $region63: #{dgcnn_forward.11} parent=59 // pred_region
        %p492 = scmp.lt.s32.totalorder %s22, 1
        %s493 = scalar_select %p492, %s22, 1
        %s494 = smul.addr %s493, 2
        %s495 = smul.addr %s494, 8
        %s496 = scalar_lea.vmem %s5, %s495
      $region64: #{dgcnn_forward.11} parent=59 // pred_fallthru
        _
    $region60: #{dgcnn_forward.11} parent=5 // pred_fallthru
      _
  $region6: #{dgcnn_forward.11} parent=0 // loop_footer
    %s15 = sadd.s32 1, %s11
  $region7: #{dgcnn_forward.11} parent=0 // loop_footer_branch
    %10 = sbr.rel target = $region3
  $region8: #{dgcnn_forward.11} parent=0 // loop_exit
    _

// kernel: dgcnn_forward.14
$region0: #{dgcnn_forward.14}
  #allocation0 [shape = 'u32[]', space=smem, size = 0x4, offset = 0x4, fixed_abs, tag = 'smem constant byte address 0x4 - core index']
  #allocation1 [shape = 'u32[144,128]{1,0:T(1,128)}', space=vmem, size = 0x12000, scoped, tag = 'internal scratch']
  %s0 = inlined_call_operand.vmem [shape: bf16[2,16,192], index: 0, kind: input, shape index: {}]
  %s1 = inlined_call_operand.vmem [shape: bf16[192,1024], index: 1, kind: input, shape index: {}]
  %s2 = inlined_call_operand.vmem [shape: f32[1,1024], index: 2, kind: input, shape index: {}]
  %s3 = inlined_call_operand.vmem [shape: f32[1,1024], index: 3, kind: input, shape index: {}]
  %s4 = inlined_call_operand.vmem [shape: f32[2,1,1024], index: 4, kind: output, shape index: {}]
  %s5 = sld [smem:[#allocation0]]
  $region57: #{dgcnn_forward.14} parent=0
    _
  %s7 = ssub.s32 1, %s5
  %s8 = scalar_select 0, %s7, %s5
  loop: start=0, step=1, limit=4
  $region2: #{dgcnn_forward.14} parent=0 // loop_pre_header
    _
  $region3: #{dgcnn_forward.14} parent=0 // loop_header
    %s10 = sphi 0, %s14
    %p11 = scmp.ge.s32.totalorder %s10, 4
    %s17 = sphi 0, %s29
    %s18 = sphi 0, %s25
    %s19 = sphi 0, %s17
    %s20 = sphi 0, %s18
    %s21 = sphi 0, %s19
    %s22 = sphi 0, %s20
    %s34 = sphi 0, %s36
    %s37 = sphi 0, %s34
    %s38 = sphi 0, %s37
    %s54 = sphi 0, %s38
    %s58 = sphi 0, %s58
    %s60 = sphi 0, %s58
    %s61 = sphi 0, %s60
    %s75 = sphi 0, %s61
    %s79 = sphi 0, %s79
    %s81 = sphi 0, %s79
    %s82 = sphi 0, %s81
    %s96 = sphi 0, %s82
    %s100 = sphi 0, %s100
    %s102 = sphi 0, %s100
    %s103 = sphi 0, %s102
    %s117 = sphi 0, %s103
    %s123 = sphi 0, %s125
    %s126 = sphi 0, %s123
    %s127 = sphi 0, %s126
    %s143 = sphi 0, %s127
  $region4: #{dgcnn_forward.14} parent=0 // loop_header_branch
    %13 = sbr.rel (%p11) target = $region8
  $region5: #{dgcnn_forward.14} parent=0 // loop_body
    %s15 = ssub.s32 %s10, 1
    %s16 = ssub.s32 %s10, 2
    %s23 = sadd.s32 1, %s18
    %p24 = scmp.ge.s32.totalorder %s23, 1
    %s25 = scalar_select %p24, 0, %s23
    %s26 = sadd.s32 1, %s17
    %s27 = scalar_select %p24, %s26, %s17
    %p28 = scmp.ge.s32.totalorder %s27, 2
    %s29 = scalar_select %p28, 0, %s27
    %s30 = ssub.s32 %s17, %s29
    %s31 = ssub.s32 %s18, %s25
    %s32 = sor.u32 %s30, %s31
    %p33 = scmp.eq.s32.totalorder %s32, 0
    %s35 = sadd.s32 %s34, 1
    %s36 = scalar_select %p33, %s34, %s35
    %p39 = pneg %p33
    %p40 = scmp.eq.s32.totalorder %s10, 1
    %p41 = por %p39, %p40
    %p42 = scmp.ne.s32.totalorder %s34, %s37
    %p43 = scmp.eq.s32.totalorder %s10, 0
    %p44 = por %p42, %p43
    %p45 = scmp.ne.s32.totalorder %s34, %s37
    %p46 = scmp.eq.s32.totalorder %s15, 1
    %p47 = por %p45, %p46
    %p48 = scmp.ne.s32.totalorder %s37, %s38
    %p49 = scmp.eq.s32.totalorder %s15, 0
    %p50 = por %p48, %p49
    %p51 = scmp.ne.s32.totalorder %s37, %s38
    %p52 = scmp.eq.s32.totalorder %s16, 1
    %p53 = por %p51, %p52
    %p55 = scmp.ne.s32.totalorder %s38, %s54
    %p56 = scmp.eq.s32.totalorder %s16, 0
    %p57 = por %p55, %p56
    %s59 = sadd.s32 %s58, 1
    %p62 = scmp.eq.s32.totalorder %s10, 1
    %p63 = scmp.ne.s32.totalorder %s58, %s60
    %p64 = scmp.eq.s32.totalorder %s10, 0
    %p65 = por %p63, %p64
    %p66 = scmp.ne.s32.totalorder %s58, %s60
    %p67 = scmp.eq.s32.totalorder %s15, 1
    %p68 = por %p66, %p67
    %p69 = scmp.ne.s32.totalorder %s60, %s61
    %p70 = scmp.eq.s32.totalorder %s15, 0
    %p71 = por %p69, %p70
    %p72 = scmp.ne.s32.totalorder %s60, %s61
    %p73 = scmp.eq.s32.totalorder %s16, 1
    %p74 = por %p72, %p73
    %p76 = scmp.ne.s32.totalorder %s61, %s75
    %p77 = scmp.eq.s32.totalorder %s16, 0
    %p78 = por %p76, %p77
    %s80 = sadd.s32 %s79, 1
    %p83 = scmp.eq.s32.totalorder %s10, 1
    %p84 = scmp.ne.s32.totalorder %s79, %s81
    %p85 = scmp.eq.s32.totalorder %s10, 0
    %p86 = por %p84, %p85
    %p87 = scmp.ne.s32.totalorder %s79, %s81
    %p88 = scmp.eq.s32.totalorder %s15, 1
    %p89 = por %p87, %p88
    %p90 = scmp.ne.s32.totalorder %s81, %s82
    %p91 = scmp.eq.s32.totalorder %s15, 0
    %p92 = por %p90, %p91
    %p93 = scmp.ne.s32.totalorder %s81, %s82
    %p94 = scmp.eq.s32.totalorder %s16, 1
    %p95 = por %p93, %p94
    %p97 = scmp.ne.s32.totalorder %s82, %s96
    %p98 = scmp.eq.s32.totalorder %s16, 0
    %p99 = por %p97, %p98
    %s101 = sadd.s32 %s100, 1
    %p104 = scmp.eq.s32.totalorder %s10, 1
    %p105 = scmp.ne.s32.totalorder %s100, %s102
    %p106 = scmp.eq.s32.totalorder %s10, 0
    %p107 = por %p105, %p106
    %p108 = scmp.ne.s32.totalorder %s100, %s102
    %p109 = scmp.eq.s32.totalorder %s15, 1
    %p110 = por %p108, %p109
    %p111 = scmp.ne.s32.totalorder %s102, %s103
    %p112 = scmp.eq.s32.totalorder %s15, 0
    %p113 = por %p111, %p112
    %p114 = scmp.ne.s32.totalorder %s102, %s103
    %p115 = scmp.eq.s32.totalorder %s16, 1
    %p116 = por %p114, %p115
    %p118 = scmp.ne.s32.totalorder %s103, %s117
    %p119 = scmp.eq.s32.totalorder %s16, 0
    %p120 = por %p118, %p119
    %s121 = ssub.s32 %s17, %s29
    %p122 = scmp.eq.s32.totalorder %s121, 0
    %s124 = sadd.s32 %s123, 1
    %s125 = scalar_select %p122, %s123, %s124
    %p128 = pneg %p122
    %p129 = scmp.eq.s32.totalorder %s10, 1
    %p130 = por %p128, %p129
    %p131 = scmp.ne.s32.totalorder %s123, %s126
    %p132 = scmp.eq.s32.totalorder %s10, 0
    %p133 = por %p131, %p132
    %p134 = scmp.ne.s32.totalorder %s123, %s126
    %p135 = scmp.eq.s32.totalorder %s15, 1
    %p136 = por %p134, %p135
    %p137 = scmp.ne.s32.totalorder %s126, %s127
    %p138 = scmp.eq.s32.totalorder %s15, 0
    %p139 = por %p137, %p138
    %p140 = scmp.ne.s32.totalorder %s126, %s127
    %p141 = scmp.eq.s32.totalorder %s16, 1
    %p142 = por %p140, %p141
    %p144 = scmp.ne.s32.totalorder %s127, %s143
    %p145 = scmp.eq.s32.totalorder %s16, 0
    %p146 = por %p144, %p145
    %p147 = scmp.le.s32.totalorder 1, %s10
    %p148 = scmp.lt.s32.totalorder %s10, 3
    %p149 = pnand %p147, %p148
    %p150 = pneg %p149
    // Predicated region
    $region9: #{dgcnn_forward.14} parent=5 // pred_check
      _
    $region10: #{dgcnn_forward.14} parent=5 // pred_check_branch
      %152 = sbr.rel (%p149) target = $region12
    $region11: #{dgcnn_forward.14} parent=5 // pred_region
      %s153 = ssub.s32 %s10, 1
      // Predicated region
      $region13: #{dgcnn_forward.14} parent=11 // pred_check
        %p154 = pneg %p71
      $region14: #{dgcnn_forward.14} parent=11 // pred_check_branch
        %156 = sbr.rel (%p154) target = $region16
      $region15: #{dgcnn_forward.14} parent=11 // pred_region
        _
      $region16: #{dgcnn_forward.14} parent=11 // pred_fallthru
        _
      // Predicated region
      $region17: #{dgcnn_forward.14} parent=11 // pred_check
        %p157 = pneg %p92
      $region18: #{dgcnn_forward.14} parent=11 // pred_check_branch
        %159 = sbr.rel (%p157) target = $region20
      $region19: #{dgcnn_forward.14} parent=11 // pred_region
        _
      $region20: #{dgcnn_forward.14} parent=11 // pred_fallthru
        _
      // Predicated region
      $region21: #{dgcnn_forward.14} parent=11 // pred_check
        %p160 = pneg %p113
      $region22: #{dgcnn_forward.14} parent=11 // pred_check_branch
        %162 = sbr.rel (%p160) target = $region24
      $region23: #{dgcnn_forward.14} parent=11 // pred_region
        _
      $region24: #{dgcnn_forward.14} parent=11 // pred_fallthru
        _
    $region12: #{dgcnn_forward.14} parent=5 // pred_fallthru
      _
    %p163 = scmp.lt.s32.totalorder %s10, 2
    // Predicated region
    $region25: #{dgcnn_forward.14} parent=5 // pred_check
      %p164 = pneg %p163
    $region26: #{dgcnn_forward.14} parent=5 // pred_check_branch
      %166 = sbr.rel (%p164) target = $region28
    $region27: #{dgcnn_forward.14} parent=5 // pred_region
      // Predicated region
      $region29: #{dgcnn_forward.14} parent=27 // pred_check
        %p167 = pneg %p44
      $region30: #{dgcnn_forward.14} parent=27 // pred_check_branch
        %169 = sbr.rel (%p167) target = $region32
      $region31: #{dgcnn_forward.14} parent=27 // pred_region
        %s170 = smul.u32 2, %s18
        %p171 = scmp.lt.s32.totalorder %s17, 1
        %s172 = scalar_select %p171, %s17, 1
        %p173 = scmp.lt.s32.totalorder %s170, 1
        %s174 = scalar_select %p173, %s170, 1
        %s175 = smul.addr %s174, 2
        %s176 = smul.addr %s172, 4
        %s177 = sadd.s32 %s175, %s176
        %s178 = smul.addr %s177, 4
        %s179 = scalar_lea.vmem %s0, %s178
        %s180 = smul.u32 2, %s18
      $region32: #{dgcnn_forward.14} parent=27 // pred_fallthru
        _
    $region28: #{dgcnn_forward.14} parent=5 // pred_fallthru
      _
    %p181 = scmp.le.s32.totalorder 1, %s10
    %p182 = scmp.lt.s32.totalorder %s10, 3
    %p183 = pnand %p181, %p182
    %p184 = pneg %p183
    // Predicated region
    $region33: #{dgcnn_forward.14} parent=5 // pred_check
      _
    $region34: #{dgcnn_forward.14} parent=5 // pred_check_branch
      %186 = sbr.rel (%p183) target = $region36
    $region35: #{dgcnn_forward.14} parent=5 // pred_region
      %s187 = ssub.s32 %s10, 1
      %s188 = smul.u32 2, %s20
      %p189 = scmp.lt.s32.totalorder %s19, 1
      %s190 = scalar_select %p189, %s19, 1
      %p191 = scmp.lt.s32.totalorder %s188, 1
      %s192 = scalar_select %p191, %s188, 1
      %s193 = smul.addr %s192, 2
      %s194 = smul.addr %s190, 4
      %s195 = sadd.s32 %s193, %s194
      %s196 = smul.addr %s195, 4
      %s197 = scalar_lea.vmem %s0, %s196
      %p198 = pneg %p50
      %p199 = pneg %p47
      %p200 = pneg %p71
      %p201 = pneg %p68
      %p202 = pneg %p92
      %p203 = pneg %p89
      %p204 = pneg %p113
      %p205 = pneg %p110
      %p206 = pneg %p139
      %p207 = pneg %p136
      %p208 = scmp.lt.s32.totalorder %s19, 1
      %s209 = scalar_select %p208, %s19, 1
      %s210 = smul.addr %s209, 8
      %s211 = scalar_lea.vmem %s4, %s210
      %s212 = smul.u32 2, %s20
      %p213 = scmp.lt.s32.totalorder %s19, 1
      %s214 = scalar_select %p213, %s19, 1
      %p215 = scmp.lt.s32.totalorder %s212, 1
      %s216 = scalar_select %p215, %s212, 1
      %s217 = smul.addr %s216, 2
      %s218 = smul.addr %s214, 4
      %s219 = sadd.s32 %s217, %s218
      %s220 = smul.addr %s219, 4
      %s221 = scalar_lea.vmem %s0, %s220
      %s222 = smul.u32 2, %s20
      %p223 = scmp.lt.s32.totalorder %s19, 1
      %s224 = scalar_select %p223, %s19, 1
      %s225 = smul.addr %s224, 8
      %s226 = scalar_lea.vmem %s4, %s225
      %v228 = vld [vmem:[%s221] sm:$0xff]
      %v229 = vld [vmem:[%s221 + $0x8] sm:$0xff]
      %v230 = vld [vmem:[%s1] sm:$0xff]
      %v231 = vld [vmem:[%s1 + $0x8] sm:$0xff]
      %v232 = vld [vmem:[%s1 + $0x10] sm:$0xff]
      %v233 = vld [vmem:[%s1 + $0x18] sm:$0xff]
      %v234 = vld [vmem:[%s1 + $0x20] sm:$0xff]
      %v235 = vld [vmem:[%s1 + $0x28] sm:$0xff]
      %v236 = vld [vmem:[%s1 + $0x30] sm:$0xff]
      %v237 = vld [vmem:[%s1 + $0x38] sm:$0xff]
      %v238 = vld [vmem:[%s1 + $0x40] sm:$0xff]
      %v239 = vld [vmem:[%s1 + $0x48] sm:$0xff]
      %v240 = vld [vmem:[%s1 + $0x50] sm:$0xff]
      %v241 = vld [vmem:[%s1 + $0x58] sm:$0xff]
      %v242 = vld [vmem:[%s1 + $0x60] sm:$0xff]
      %v243 = vld [vmem:[%s1 + $0x68] sm:$0xff]
      %v244 = vld [vmem:[%s1 + $0x70] sm:$0xff]
      %v245 = vld [vmem:[%s1 + $0x78] sm:$0xff]
      %v246 = vld [vmem:[%s1 + $0x80] sm:$0xff]
      %v247 = vld [vmem:[%s1 + $0x88] sm:$0xff]
      %v248 = vld [vmem:[%s1 + $0x90] sm:$0xff]
      %v249 = vld [vmem:[%s1 + $0x98] sm:$0xff]
      %v250 = vld [vmem:[%s1 + $0xa0] sm:$0xff]
      %v251 = vld [vmem:[%s1 + $0xa8] sm:$0xff]
      %v252 = vld [vmem:[%s1 + $0xb0] sm:$0xff]
      %v253 = vld [vmem:[%s1 + $0xb8] sm:$0xff]
      %v254 = vld [vmem:[%s1 + $0xc0] sm:$0xff]
      %v255 = vld [vmem:[%s1 + $0xc8] sm:$0xff]
      %v256 = vld [vmem:[%s1 + $0xd0] sm:$0xff]
      %v257 = vld [vmem:[%s1 + $0xd8] sm:$0xff]
      %v258 = vld [vmem:[%s1 + $0xe0] sm:$0xff]
      %v259 = vld [vmem:[%s1 + $0xe8] sm:$0xff]
      %v260 = vld [vmem:[%s1 + $0xf0] sm:$0xff]
      %v261 = vld [vmem:[%s1 + $0xf8] sm:$0xff]
      %v262 = vld [vmem:[%s1 + $0x100] sm:$0xff]
      %v263 = vld [vmem:[%s1 + $0x108] sm:$0xff]
      %v264 = vld [vmem:[%s1 + $0x110] sm:$0xff]
      %v265 = vld [vmem:[%s1 + $0x118] sm:$0xff]
      %v266 = vld [vmem:[%s1 + $0x120] sm:$0xff]
      %v267 = vld [vmem:[%s1 + $0x128] sm:$0xff]
      %v268 = vld [vmem:[%s1 + $0x130] sm:$0xff]
      %v269 = vld [vmem:[%s1 + $0x138] sm:$0xff]
      %v270 = vld [vmem:[%s1 + $0x140] sm:$0xff]
      %v271 = vld [vmem:[%s1 + $0x148] sm:$0xff]
      %v272 = vld [vmem:[%s1 + $0x150] sm:$0xff]
      %v273 = vld [vmem:[%s1 + $0x158] sm:$0xff]
      %v274 = vld [vmem:[%s1 + $0x160] sm:$0xff]
      %v275 = vld [vmem:[%s1 + $0x168] sm:$0xff]
      %v276 = vld [vmem:[%s1 + $0x170] sm:$0xff]
      %v277 = vld [vmem:[%s1 + $0x178] sm:$0xff]
      %v278 = vld [vmem:[%s1 + $0x180] sm:$0xff]
      %v279 = vld [vmem:[%s1 + $0x188] sm:$0xff]
      %v280 = vld [vmem:[%s1 + $0x190] sm:$0xff]
      %v281 = vld [vmem:[%s1 + $0x198] sm:$0xff]
      %v282 = vld [vmem:[%s1 + $0x1a0] sm:$0xff]
      %v283 = vld [vmem:[%s1 + $0x1a8] sm:$0xff]
      %v284 = vld [vmem:[%s1 + $0x1b0] sm:$0xff]
      %v285 = vld [vmem:[%s1 + $0x1b8] sm:$0xff]
      %v286 = vld [vmem:[%s1 + $0x1c0] sm:$0xff]
      %v287 = vld [vmem:[%s1 + $0x1c8] sm:$0xff]
      %v288 = vld [vmem:[%s1 + $0x1d0] sm:$0xff]
      %v289 = vld [vmem:[%s1 + $0x1d8] sm:$0xff]
      %v290 = vld [vmem:[%s1 + $0x1e0] sm:$0xff]
      %v291 = vld [vmem:[%s1 + $0x1e8] sm:$0xff]
      %v292 = vld [vmem:[%s1 + $0x1f0] sm:$0xff]
      %v293 = vld [vmem:[%s1 + $0x1f8] sm:$0xff]
      %v294 = vld [vmem:[%s1 + $0x200] sm:$0xff]
      %v295 = vld [vmem:[%s1 + $0x208] sm:$0xff]
      %v296 = vld [vmem:[%s1 + $0x210] sm:$0xff]
      %v297 = vld [vmem:[%s1 + $0x218] sm:$0xff]
      %v298 = vld [vmem:[%s1 + $0x220] sm:$0xff]
      %v299 = vld [vmem:[%s1 + $0x228] sm:$0xff]
      %v300 = vld [vmem:[%s1 + $0x230] sm:$0xff]
      %v301 = vld [vmem:[%s1 + $0x238] sm:$0xff]
      %v302 = vld [vmem:[%s1 + $0x240] sm:$0xff]
      %v303 = vld [vmem:[%s1 + $0x248] sm:$0xff]
      %v304 = vld [vmem:[%s1 + $0x250] sm:$0xff]
      %v305 = vld [vmem:[%s1 + $0x258] sm:$0xff]
      %v306 = vld [vmem:[%s1 + $0x260] sm:$0xff]
      %v307 = vld [vmem:[%s1 + $0x268] sm:$0xff]
      %v308 = vld [vmem:[%s1 + $0x270] sm:$0xff]
      %v309 = vld [vmem:[%s1 + $0x278] sm:$0xff]
      %v310 = vld [vmem:[%s1 + $0x280] sm:$0xff]
      %v311 = vld [vmem:[%s1 + $0x288] sm:$0xff]
      %v312 = vld [vmem:[%s1 + $0x290] sm:$0xff]
      %v313 = vld [vmem:[%s1 + $0x298] sm:$0xff]
      %v314 = vld [vmem:[%s1 + $0x2a0] sm:$0xff]
      %v315 = vld [vmem:[%s1 + $0x2a8] sm:$0xff]
      %v316 = vld [vmem:[%s1 + $0x2b0] sm:$0xff]
      %v317 = vld [vmem:[%s1 + $0x2b8] sm:$0xff]
      %v318 = vld [vmem:[%s1 + $0x2c0] sm:$0xff]
      %v319 = vld [vmem:[%s1 + $0x2c8] sm:$0xff]
      %v320 = vld [vmem:[%s1 + $0x2d0] sm:$0xff]
      %v321 = vld [vmem:[%s1 + $0x2d8] sm:$0xff]
      %v322 = vld [vmem:[%s1 + $0x2e0] sm:$0xff]
      %v323 = vld [vmem:[%s1 + $0x2e8] sm:$0xff]
      %v324 = vld [vmem:[%s1 + $0x2f0] sm:$0xff]
      %v325 = vld [vmem:[%s1 + $0x2f8] sm:$0xff]
      %v328 = vunpack.c.l.b16 %v228
      %v329 = vunpack.c.h.b16 %v228
      %v330 = vunpack.c.l.b16 %v229
      %v331 = vunpack.c.h.b16 %v229
      %v332 = vpack.c.b16 %v330, %v328
      %v333 = vpack.c.b16 %v331, %v329
      %v431 = vunpack.c.l.b16 %v230
      %v432 = vunpack.c.h.b16 %v230
      %v433 = vunpack.c.l.b16 %v231
      %v434 = vunpack.c.h.b16 %v231
      %v435 = vunpack.c.l.b16 %v232
      %v436 = vunpack.c.h.b16 %v232
      %v437 = vunpack.c.l.b16 %v233
      %v438 = vunpack.c.h.b16 %v233
      %v439 = vunpack.c.l.b16 %v234
      %v440 = vunpack.c.h.b16 %v234
      %v441 = vunpack.c.l.b16 %v235
      %v442 = vunpack.c.h.b16 %v235
      %v443 = vunpack.c.l.b16 %v236
      %v444 = vunpack.c.h.b16 %v236
      %v445 = vunpack.c.l.b16 %v237
      %v446 = vunpack.c.h.b16 %v237
      %v447 = vunpack.c.l.b16 %v238
      %v448 = vunpack.c.h.b16 %v238
      %v449 = vunpack.c.l.b16 %v239
      %v450 = vunpack.c.h.b16 %v239
      %v451 = vunpack.c.l.b16 %v240
      %v452 = vunpack.c.h.b16 %v240
      %v453 = vunpack.c.l.b16 %v241
      %v454 = vunpack.c.h.b16 %v241
      %v455 = vunpack.c.l.b16 %v242
      %v456 = vunpack.c.h.b16 %v242
      %v457 = vunpack.c.l.b16 %v243
      %v458 = vunpack.c.h.b16 %v243
      %v459 = vunpack.c.l.b16 %v244
      %v460 = vunpack.c.h.b16 %v244
      %v461 = vunpack.c.l.b16 %v245
      %v462 = vunpack.c.h.b16 %v245
      %v463 = vunpack.c.l.b16 %v246
      %v464 = vunpack.c.h.b16 %v246
      %v465 = vunpack.c.l.b16 %v247
      %v466 = vunpack.c.h.b16 %v247
      %v467 = vunpack.c.l.b16 %v248
      %v468 = vunpack.c.h.b16 %v248
      %v469 = vunpack.c.l.b16 %v249
      %v470 = vunpack.c.h.b16 %v249
      %v471 = vunpack.c.l.b16 %v250
      %v472 = vunpack.c.h.b16 %v250
      %v473 = vunpack.c.l.b16 %v251
      %v474 = vunpack.c.h.b16 %v251
      %v475 = vunpack.c.l.b16 %v252
      %v476 = vunpack.c.h.b16 %v252
      %v477 = vunpack.c.l.b16 %v253
      %v478 = vunpack.c.h.b16 %v253
      %v479 = vunpack.c.l.b16 %v254
      %v480 = vunpack.c.h.b16 %v254
      %v481 = vunpack.c.l.b16 %v255
      %v482 = vunpack.c.h.b16 %v255
      %v483 = vunpack.c.l.b16 %v256
      %v484 = vunpack.c.h.b16 %v256
      %v485 = vunpack.c.l.b16 %v257
      %v486 = vunpack.c.h.b16 %v257
      %v487 = vunpack.c.l.b16 %v258
      %v488 = vunpack.c.h.b16 %v258
      %v489 = vunpack.c.l.b16 %v259
      %v490 = vunpack.c.h.b16 %v259
      %v491 = vunpack.c.l.b16 %v260
      %v492 = vunpack.c.h.b16 %v260
      %v493 = vunpack.c.l.b16 %v261
      %v494 = vunpack.c.h.b16 %v261
      %v495 = vunpack.c.l.b16 %v262
      %v496 = vunpack.c.h.b16 %v262
      %v497 = vunpack.c.l.b16 %v263
      %v498 = vunpack.c.h.b16 %v263
      %v499 = vunpack.c.l.b16 %v264
      %v500 = vunpack.c.h.b16 %v264
      %v501 = vunpack.c.l.b16 %v265
      %v502 = vunpack.c.h.b16 %v265
      %v503 = vunpack.c.l.b16 %v266
      %v504 = vunpack.c.h.b16 %v266
      %v505 = vunpack.c.l.b16 %v267
      %v506 = vunpack.c.h.b16 %v267
      %v507 = vunpack.c.l.b16 %v268
      %v508 = vunpack.c.h.b16 %v268
      %v509 = vunpack.c.l.b16 %v269
      %v510 = vunpack.c.h.b16 %v269
      %v511 = vunpack.c.l.b16 %v270
      %v512 = vunpack.c.h.b16 %v270
      %v513 = vunpack.c.l.b16 %v271
      %v514 = vunpack.c.h.b16 %v271
      %v515 = vunpack.c.l.b16 %v272
      %v516 = vunpack.c.h.b16 %v272
      %v517 = vunpack.c.l.b16 %v273
      %v518 = vunpack.c.h.b16 %v273
      %v519 = vunpack.c.l.b16 %v274
      %v520 = vunpack.c.h.b16 %v274
      %v521 = vunpack.c.l.b16 %v275
      %v522 = vunpack.c.h.b16 %v275
      %v523 = vunpack.c.l.b16 %v276
      %v524 = vunpack.c.h.b16 %v276
      %v525 = vunpack.c.l.b16 %v277
      %v526 = vunpack.c.h.b16 %v277
      %v527 = vunpack.c.l.b16 %v278
      %v528 = vunpack.c.h.b16 %v278
      %v529 = vunpack.c.l.b16 %v279
      %v530 = vunpack.c.h.b16 %v279
      %v531 = vunpack.c.l.b16 %v280
      %v532 = vunpack.c.h.b16 %v280
      %v533 = vunpack.c.l.b16 %v281
      %v534 = vunpack.c.h.b16 %v281
      %v535 = vunpack.c.l.b16 %v282
      %v536 = vunpack.c.h.b16 %v282
      %v537 = vunpack.c.l.b16 %v283
      %v538 = vunpack.c.h.b16 %v283
      %v539 = vunpack.c.l.b16 %v284
      %v540 = vunpack.c.h.b16 %v284
      %v541 = vunpack.c.l.b16 %v285
      %v542 = vunpack.c.h.b16 %v285
      %v543 = vunpack.c.l.b16 %v286
      %v544 = vunpack.c.h.b16 %v286
      %v545 = vunpack.c.l.b16 %v287
      %v546 = vunpack.c.h.b16 %v287
      %v547 = vunpack.c.l.b16 %v288
      %v548 = vunpack.c.h.b16 %v288
      %v549 = vunpack.c.l.b16 %v289
      %v550 = vunpack.c.h.b16 %v289
      %v551 = vunpack.c.l.b16 %v290
      %v552 = vunpack.c.h.b16 %v290
      %v553 = vunpack.c.l.b16 %v291
      %v554 = vunpack.c.h.b16 %v291
      %v555 = vunpack.c.l.b16 %v292
      %v556 = vunpack.c.h.b16 %v292
      %v557 = vunpack.c.l.b16 %v293
      %v558 = vunpack.c.h.b16 %v293
      %v559 = vunpack.c.l.b16 %v294
      %v560 = vunpack.c.h.b16 %v294
      %v561 = vunpack.c.l.b16 %v295
      %v562 = vunpack.c.h.b16 %v295
      %v563 = vunpack.c.l.b16 %v296
      %v564 = vunpack.c.h.b16 %v296
      %v565 = vunpack.c.l.b16 %v297
      %v566 = vunpack.c.h.b16 %v297
      %v567 = vunpack.c.l.b16 %v298
      %v568 = vunpack.c.h.b16 %v298
      %v569 = vunpack.c.l.b16 %v299
      %v570 = vunpack.c.h.b16 %v299
      %v571 = vunpack.c.l.b16 %v300
      %v572 = vunpack.c.h.b16 %v300
      %v573 = vunpack.c.l.b16 %v301
      %v574 = vunpack.c.h.b16 %v301
      %v575 = vunpack.c.l.b16 %v302
      %v576 = vunpack.c.h.b16 %v302
      %v577 = vunpack.c.l.b16 %v303
      %v578 = vunpack.c.h.b16 %v303
      %v579 = vunpack.c.l.b16 %v304
      %v580 = vunpack.c.h.b16 %v304
      %v581 = vunpack.c.l.b16 %v305
      %v582 = vunpack.c.h.b16 %v305
      %v583 = vunpack.c.l.b16 %v306
      %v584 = vunpack.c.h.b16 %v306
      %v585 = vunpack.c.l.b16 %v307
      %v586 = vunpack.c.h.b16 %v307
      %v587 = vunpack.c.l.b16 %v308
      %v588 = vunpack.c.h.b16 %v308
      %v589 = vunpack.c.l.b16 %v309
      %v590 = vunpack.c.h.b16 %v309
      %v591 = vunpack.c.l.b16 %v310
      %v592 = vunpack.c.h.b16 %v310
      %v593 = vunpack.c.l.b16 %v311
      %v594 = vunpack.c.h.b16 %v311
      %v595 = vunpack.c.l.b16 %v312
      %v596 = vunpack.c.h.b16 %v312
      %v597 = vunpack.c.l.b16 %v313
      %v598 = vunpack.c.h.b16 %v313
      %v599 = vunpack.c.l.b16 %v314
      %v600 = vunpack.c.h.b16 %v314
      %v601 = vunpack.c.l.b16 %v315
      %v602 = vunpack.c.h.b16 %v315
      %v603 = vunpack.c.l.b16 %v316
      %v604 = vunpack.c.h.b16 %v316
      %v605 = vunpack.c.l.b16 %v317
      %v606 = vunpack.c.h.b16 %v317
      %v607 = vunpack.c.l.b16 %v318
      %v608 = vunpack.c.h.b16 %v318
      %v609 = vunpack.c.l.b16 %v319
      %v610 = vunpack.c.h.b16 %v319
      %v611 = vunpack.c.l.b16 %v320
      %v612 = vunpack.c.h.b16 %v320
      %v613 = vunpack.c.l.b16 %v321
      %v614 = vunpack.c.h.b16 %v321
      %v615 = vunpack.c.l.b16 %v322
      %v616 = vunpack.c.h.b16 %v322
      %v617 = vunpack.c.l.b16 %v323
      %v618 = vunpack.c.h.b16 %v323
      %v619 = vunpack.c.l.b16 %v324
      %v620 = vunpack.c.h.b16 %v324
      %v621 = vunpack.c.l.b16 %v325
      %v622 = vunpack.c.h.b16 %v325
      %v623 = vpack.c.b16 %v439, %v431
      %v624 = vpack.c.b16 %v440, %v432
      %v625 = vpack.c.b16 %v441, %v433
      %v626 = vpack.c.b16 %v442, %v434
      %v627 = vpack.c.b16 %v443, %v435
      %v628 = vpack.c.b16 %v444, %v436
      %v629 = vpack.c.b16 %v445, %v437
      %v630 = vpack.c.b16 %v446, %v438
      %v631 = vpack.c.b16 %v455, %v447
      %v632 = vpack.c.b16 %v456, %v448
      %v633 = vpack.c.b16 %v457, %v449
      %v634 = vpack.c.b16 %v458, %v450
      %v635 = vpack.c.b16 %v459, %v451
      %v636 = vpack.c.b16 %v460, %v452
      %v637 = vpack.c.b16 %v461, %v453
      %v638 = vpack.c.b16 %v462, %v454
      %v639 = vpack.c.b16 %v471, %v463
      %v640 = vpack.c.b16 %v472, %v464
      %v641 = vpack.c.b16 %v473, %v465
      %v642 = vpack.c.b16 %v474, %v466
      %v643 = vpack.c.b16 %v475, %v467
      %v644 = vpack.c.b16 %v476, %v468
      %v645 = vpack.c.b16 %v477, %v469
      %v646 = vpack.c.b16 %v478, %v470
      %v647 = vpack.c.b16 %v487, %v479
      %v648 = vpack.c.b16 %v488, %v480
      %v649 = vpack.c.b16 %v489, %v481
      %v650 = vpack.c.b16 %v490, %v482
      %v651 = vpack.c.b16 %v491, %v483
      %v652 = vpack.c.b16 %v492, %v484
      %v653 = vpack.c.b16 %v493, %v485
      %v654 = vpack.c.b16 %v494, %v486
      %v655 = vpack.c.b16 %v503, %v495
      %v656 = vpack.c.b16 %v504, %v496
      %v657 = vpack.c.b16 %v505, %v497
      %v658 = vpack.c.b16 %v506, %v498
      %v659 = vpack.c.b16 %v507, %v499
      %v660 = vpack.c.b16 %v508, %v500
      %v661 = vpack.c.b16 %v509, %v501
      %v662 = vpack.c.b16 %v510, %v502
      %v663 = vpack.c.b16 %v519, %v511
      %v664 = vpack.c.b16 %v520, %v512
      %v665 = vpack.c.b16 %v521, %v513
      %v666 = vpack.c.b16 %v522, %v514
      %v667 = vpack.c.b16 %v523, %v515
      %v668 = vpack.c.b16 %v524, %v516
      %v669 = vpack.c.b16 %v525, %v517
      %v670 = vpack.c.b16 %v526, %v518
      %v671 = vpack.c.b16 %v535, %v527
      %v672 = vpack.c.b16 %v536, %v528
      %v673 = vpack.c.b16 %v537, %v529
      %v674 = vpack.c.b16 %v538, %v530
      %v675 = vpack.c.b16 %v539, %v531
      %v676 = vpack.c.b16 %v540, %v532
      %v677 = vpack.c.b16 %v541, %v533
      %v678 = vpack.c.b16 %v542, %v534
      %v679 = vpack.c.b16 %v551, %v543
      %v680 = vpack.c.b16 %v552, %v544
      %v681 = vpack.c.b16 %v553, %v545
      %v682 = vpack.c.b16 %v554, %v546
      %v683 = vpack.c.b16 %v555, %v547
      %v684 = vpack.c.b16 %v556, %v548
      %v685 = vpack.c.b16 %v557, %v549
      %v686 = vpack.c.b16 %v558, %v550
      %v687 = vpack.c.b16 %v567, %v559
      %v688 = vpack.c.b16 %v568, %v560
      %v689 = vpack.c.b16 %v569, %v561
      %v690 = vpack.c.b16 %v570, %v562
      %v691 = vpack.c.b16 %v571, %v563
      %v692 = vpack.c.b16 %v572, %v564
      %v693 = vpack.c.b16 %v573, %v565
      %v694 = vpack.c.b16 %v574, %v566
      %v695 = vpack.c.b16 %v583, %v575
      %v696 = vpack.c.b16 %v584, %v576
      %v697 = vpack.c.b16 %v585, %v577
      %v698 = vpack.c.b16 %v586, %v578
      %v699 = vpack.c.b16 %v587, %v579
      %v700 = vpack.c.b16 %v588, %v580
      %v701 = vpack.c.b16 %v589, %v581
      %v702 = vpack.c.b16 %v590, %v582
      %v703 = vpack.c.b16 %v599, %v591
      %v704 = vpack.c.b16 %v600, %v592
      %v705 = vpack.c.b16 %v601, %v593
      %v706 = vpack.c.b16 %v602, %v594
      %v707 = vpack.c.b16 %v603, %v595
      %v708 = vpack.c.b16 %v604, %v596
      %v709 = vpack.c.b16 %v605, %v597
      %v710 = vpack.c.b16 %v606, %v598
      %v711 = vpack.c.b16 %v615, %v607
      %v712 = vpack.c.b16 %v616, %v608
      %v713 = vpack.c.b16 %v617, %v609
      %v714 = vpack.c.b16 %v618, %v610
      %v715 = vpack.c.b16 %v619, %v611
      %v716 = vpack.c.b16 %v620, %v612
      %v717 = vpack.c.b16 %v621, %v613
      %v718 = vpack.c.b16 %v622, %v614
      %vm815 = vcmask 523264
      %v817 = vsel %vm815, %v333, 0
      %819 = vmatprep.subr.bf16.mxu0 %v624
      %820 = vmatpush1.bf16.msra.mxu0 %v623
      %821 = vmatprep.subr.bf16.mxu0 %v632
      %822 = vmatpush1.bf16.msra.mxu0 %v631
      %823 = vmatprep.subr.bf16.mxu0 %v640
      %824 = vmatpush1.bf16.msra.mxu0 %v639
      %825 = vmatprep.subr.bf16.mxu0 %v648
      %826 = vmatpush1.bf16.msra.mxu0 %v647
      %827 = vmatprep.subr.bf16.mxu0 %v656
      %828 = vmatpush1.bf16.msra.mxu0 %v655
      %829 = vmatprep.subr.bf16.mxu0 %v664
      %830 = vmatpush1.bf16.msra.mxu0 %v663
      %831 = vmatprep.subr.bf16.mxu0 %v672
      %832 = vmatpush1.bf16.msra.mxu0 %v671
      %833 = vmatprep.subr.bf16.mxu0 %v680
      %834 = vmatpush1.bf16.msra.mxu0 %v679
      %835 = vmatprep.subr.bf16.mxu0 %v688
      %836 = vmatpush1.bf16.msra.mxu0 %v687
      %837 = vmatprep.subr.bf16.mxu0 %v696
      %838 = vmatpush1.bf16.msra.mxu0 %v695
      %839 = vmatprep.subr.bf16.mxu0 %v704
      %840 = vmatpush1.bf16.msra.mxu0 %v703
      %841 = vmatprep.subr.bf16.mxu0 %v712
      %842 = vmatpush1.bf16.msra.mxu0 %v711
      %843 = vmatprep.subr.bf16.mxu0 0
      %844 = vmatpush1.bf16.msra.mxu0 0
      %845 = vmatprep.subr.bf16.mxu0 0
      %846 = vmatpush1.bf16.msra.mxu0 0
      %847 = vmatprep.subr.bf16.mxu0 0
      %848 = vmatpush1.bf16.msra.mxu0 0
      %849 = vmatprep.subr.bf16.mxu0 0
      %850 = vmatpush1.bf16.msra.mxu0 0
      %851 = vmatprep.mubr.bf16.mxu0 %v817
      %852 = vmatmul.mubr.bf16.gmra.mrb[0].mxu0 %v332
      %v853 = vpop.f32.mrb[0].mxu0
      %v854 = vadd.f32 0.0, %v853
      %v855 = vpop.f32.mrb[0].mxu0
      %v856 = vadd.f32 0.0, %v855
      %v857 = vpop.f32.mrb[0].mxu0
      %v858 = vadd.f32 0.0, %v857
      %v859 = vpop.f32.mrb[0].mxu0
      %v860 = vadd.f32 0.0, %v859
      %861 = vdwg.mxu0
      %862 = vmatprep.subr.bf16.mxu0 %v626
      %863 = vmatpush1.bf16.msra.mxu0 %v625
      %864 = vmatprep.subr.bf16.mxu0 %v634
      %865 = vmatpush1.bf16.msra.mxu0 %v633
      %866 = vmatprep.subr.bf16.mxu0 %v642
      %867 = vmatpush1.bf16.msra.mxu0 %v641
      %868 = vmatprep.subr.bf16.mxu0 %v650
      %869 = vmatpush1.bf16.msra.mxu0 %v649
      %870 = vmatprep.subr.bf16.mxu0 %v658
      %871 = vmatpush1.bf16.msra.mxu0 %v657
      %872 = vmatprep.subr.bf16.mxu0 %v666
      %873 = vmatpush1.bf16.msra.mxu0 %v665
      %874 = vmatprep.subr.bf16.mxu0 %v674
      %875 = vmatpush1.bf16.msra.mxu0 %v673
      %876 = vmatprep.subr.bf16.mxu0 %v682
      %877 = vmatpush1.bf16.msra.mxu0 %v681
      %878 = vmatprep.subr.bf16.mxu0 %v690
      %879 = vmatpush1.bf16.msra.mxu0 %v689
      %880 = vmatprep.subr.bf16.mxu0 %v698
      %881 = vmatpush1.bf16.msra.mxu0 %v697
      %882 = vmatprep.subr.bf16.mxu0 %v706
      %883 = vmatpush1.bf16.msra.mxu0 %v705
      %884 = vmatprep.subr.bf16.mxu0 %v714
      %885 = vmatpush1.bf16.msra.mxu0 %v713
      %886 = vmatprep.subr.bf16.mxu0 0
      %887 = vmatpush1.bf16.msra.mxu0 0
      %888 = vmatprep.subr.bf16.mxu0 0
      %889 = vmatpush1.bf16.msra.mxu0 0
      %890 = vmatprep.subr.bf16.mxu0 0
      %891 = vmatpush1.bf16.msra.mxu0 0
      %892 = vmatprep.subr.bf16.mxu0 0
      %893 = vmatpush1.bf16.msra.mxu0 0
      %894 = vmatprep.mubr.bf16.mxu0 %v817
      %895 = vmatmul.mubr.bf16.gmra.mrb[0].mxu0 %v332
      %v896 = vpop.f32.mrb[0].mxu0
      %v897 = vadd.f32 0.0, %v896
      %v898 = vpop.f32.mrb[0].mxu0
      %v899 = vadd.f32 0.0, %v898
      %v900 = vpop.f32.mrb[0].mxu0
      %v901 = vadd.f32 0.0, %v900
      %v902 = vpop.f32.mrb[0].mxu0
      %v903 = vadd.f32 0.0, %v902
      %904 = vdwg.mxu0
      %905 = vmatprep.subr.bf16.mxu0 %v628
      %906 = vmatpush1.bf16.msra.mxu0 %v627
      %907 = vmatprep.subr.bf16.mxu0 %v636
      %908 = vmatpush1.bf16.msra.mxu0 %v635
      %909 = vmatprep.subr.bf16.mxu0 %v644
      %910 = vmatpush1.bf16.msra.mxu0 %v643
      %911 = vmatprep.subr.bf16.mxu0 %v652
      %912 = vmatpush1.bf16.msra.mxu0 %v651
      %913 = vmatprep.subr.bf16.mxu0 %v660
      %914 = vmatpush1.bf16.msra.mxu0 %v659
      %915 = vmatprep.subr.bf16.mxu0 %v668
      %916 = vmatpush1.bf16.msra.mxu0 %v667
      %917 = vmatprep.subr.bf16.mxu0 %v676
      %918 = vmatpush1.bf16.msra.mxu0 %v675
      %919 = vmatprep.subr.bf16.mxu0 %v684
      %920 = vmatpush1.bf16.msra.mxu0 %v683
      %921 = vmatprep.subr.bf16.mxu0 %v692
      %922 = vmatpush1.bf16.msra.mxu0 %v691
      %923 = vmatprep.subr.bf16.mxu0 %v700
      %924 = vmatpush1.bf16.msra.mxu0 %v699
      %925 = vmatprep.subr.bf16.mxu0 %v708
      %926 = vmatpush1.bf16.msra.mxu0 %v707
      %927 = vmatprep.subr.bf16.mxu0 %v716
      %928 = vmatpush1.bf16.msra.mxu0 %v715
      %929 = vmatprep.subr.bf16.mxu0 0
      %930 = vmatpush1.bf16.msra.mxu0 0
      %931 = vmatprep.subr.bf16.mxu0 0
      %932 = vmatpush1.bf16.msra.mxu0 0
      %933 = vmatprep.subr.bf16.mxu0 0
      %934 = vmatpush1.bf16.msra.mxu0 0
      %935 = vmatprep.subr.bf16.mxu0 0
      %936 = vmatpush1.bf16.msra.mxu0 0
      %937 = vmatprep.mubr.bf16.mxu0 %v817
      %938 = vmatmul.mubr.bf16.gmra.mrb[0].mxu0 %v332
      %v939 = vpop.f32.mrb[0].mxu0
      %v940 = vadd.f32 0.0, %v939
      %v941 = vpop.f32.mrb[0].mxu0
      %v942 = vadd.f32 0.0, %v941
      %v943 = vpop.f32.mrb[0].mxu0
      %v944 = vadd.f32 0.0, %v943
      %v945 = vpop.f32.mrb[0].mxu0
      %v946 = vadd.f32 0.0, %v945
      %947 = vdwg.mxu0
      %948 = vmatprep.subr.bf16.mxu0 %v630
      %949 = vmatpush1.bf16.msra.mxu0 %v629
      %950 = vmatprep.subr.bf16.mxu0 %v638
      %951 = vmatpush1.bf16.msra.mxu0 %v637
      %952 = vmatprep.subr.bf16.mxu0 %v646
      %953 = vmatpush1.bf16.msra.mxu0 %v645
      %954 = vmatprep.subr.bf16.mxu0 %v654
      %955 = vmatpush1.bf16.msra.mxu0 %v653
      %956 = vmatprep.subr.bf16.mxu0 %v662
      %957 = vmatpush1.bf16.msra.mxu0 %v661
      %958 = vmatprep.subr.bf16.mxu0 %v670
      %959 = vmatpush1.bf16.msra.mxu0 %v669
      %960 = vmatprep.subr.bf16.mxu0 %v678
      %961 = vmatpush1.bf16.msra.mxu0 %v677
      %962 = vmatprep.subr.bf16.mxu0 %v686
      %963 = vmatpush1.bf16.msra.mxu0 %v685
      %964 = vmatprep.subr.bf16.mxu0 %v694
      %965 = vmatpush1.bf16.msra.mxu0 %v693
      %966 = vmatprep.subr.bf16.mxu0 %v702
      %967 = vmatpush1.bf16.msra.mxu0 %v701
      %968 = vmatprep.subr.bf16.mxu0 %v710
      %969 = vmatpush1.bf16.msra.mxu0 %v709
      %970 = vmatprep.subr.bf16.mxu0 %v718
      %971 = vmatpush1.bf16.msra.mxu0 %v717
      %972 = vmatprep.subr.bf16.mxu0 0
      %973 = vmatpush1.bf16.msra.mxu0 0
      %974 = vmatprep.subr.bf16.mxu0 0
      %975 = vmatpush1.bf16.msra.mxu0 0
      %976 = vmatprep.subr.bf16.mxu0 0
      %977 = vmatpush1.bf16.msra.mxu0 0
      %978 = vmatprep.subr.bf16.mxu0 0
      %979 = vmatpush1.bf16.msra.mxu0 0
      %980 = vmatprep.mubr.bf16.mxu0 %v817
      %981 = vmatmul.mubr.bf16.gmra.mrb[0].mxu0 %v332
      %v982 = vpop.f32.mrb[0].mxu0
      %v983 = vadd.f32 0.0, %v982
      %v984 = vpop.f32.mrb[0].mxu0
      %v985 = vadd.f32 0.0, %v984
      %v986 = vpop.f32.mrb[0].mxu0
      %v987 = vadd.f32 0.0, %v986
      %v988 = vpop.f32.mrb[0].mxu0
      %v989 = vadd.f32 0.0, %v988
      %990 = vdwg.mxu0
      %v991 = vld [vmem:[%s2] sm:$0xff]
      %v993 = vlaneseq
      %v994 = vshrl.u32 %v993, 7
      %v995 = vsub.s32 0, %v994
      %v996 = vrot.slane %v991, %v995
      %v997 = vlaneseq
      %v998 = vshrl.u32 %v997, 7
      %v999 = vsub.s32 1, %v998
      %v1000 = vrot.slane %v991, %v999
      %v1001 = vlaneseq
      %v1002 = vshrl.u32 %v1001, 7
      %v1003 = vsub.s32 2, %v1002
      %v1004 = vrot.slane %v991, %v1003
      %v1005 = vlaneseq
      %v1006 = vshrl.u32 %v1005, 7
      %v1007 = vsub.s32 3, %v1006
      %v1008 = vrot.slane %v991, %v1007
      %v1009 = vlaneseq
      %v1010 = vshrl.u32 %v1009, 7
      %v1011 = vsub.s32 4, %v1010
      %v1012 = vrot.slane %v991, %v1011
      %v1013 = vlaneseq
      %v1014 = vshrl.u32 %v1013, 7
      %v1015 = vsub.s32 5, %v1014
      %v1016 = vrot.slane %v991, %v1015
      %v1017 = vlaneseq
      %v1018 = vshrl.u32 %v1017, 7
      %v1019 = vsub.s32 6, %v1018
      %v1020 = vrot.slane %v991, %v1019
      %v1021 = vlaneseq
      %v1022 = vshrl.u32 %v1021, 7
      %v1023 = vsub.s32 7, %v1022
      %v1024 = vrot.slane %v991, %v1023
      %v1033 = vmul.f32 %v854, %v996
      %v1034 = vmul.f32 %v856, %v1000
      %v1035 = vmul.f32 %v897, %v1004
      %v1036 = vmul.f32 %v899, %v1008
      %v1037 = vmul.f32 %v940, %v1012
      %v1038 = vmul.f32 %v942, %v1016
      %v1039 = vmul.f32 %v983, %v1020
      %v1040 = vmul.f32 %v985, %v1024
      %v1041 = vmul.f32 %v858, %v996
      %v1042 = vmul.f32 %v860, %v1000
      %v1043 = vmul.f32 %v901, %v1004
      %v1044 = vmul.f32 %v903, %v1008
      %v1045 = vmul.f32 %v944, %v1012
      %v1046 = vmul.f32 %v946, %v1016
      %v1047 = vmul.f32 %v987, %v1020
      %v1048 = vmul.f32 %v989, %v1024
      %v1049 = vld [vmem:[%s3] sm:$0xff]
      %v1051 = vlaneseq
      %v1052 = vshrl.u32 %v1051, 7
      %v1053 = vsub.s32 0, %v1052
      %v1054 = vrot.slane %v1049, %v1053
      %v1055 = vlaneseq
      %v1056 = vshrl.u32 %v1055, 7
      %v1057 = vsub.s32 1, %v1056
      %v1058 = vrot.slane %v1049, %v1057
      %v1059 = vlaneseq
      %v1060 = vshrl.u32 %v1059, 7
      %v1061 = vsub.s32 2, %v1060
      %v1062 = vrot.slane %v1049, %v1061
      %v1063 = vlaneseq
      %v1064 = vshrl.u32 %v1063, 7
      %v1065 = vsub.s32 3, %v1064
      %v1066 = vrot.slane %v1049, %v1065
      %v1067 = vlaneseq
      %v1068 = vshrl.u32 %v1067, 7
      %v1069 = vsub.s32 4, %v1068
      %v1070 = vrot.slane %v1049, %v1069
      %v1071 = vlaneseq
      %v1072 = vshrl.u32 %v1071, 7
      %v1073 = vsub.s32 5, %v1072
      %v1074 = vrot.slane %v1049, %v1073
      %v1075 = vlaneseq
      %v1076 = vshrl.u32 %v1075, 7
      %v1077 = vsub.s32 6, %v1076
      %v1078 = vrot.slane %v1049, %v1077
      %v1079 = vlaneseq
      %v1080 = vshrl.u32 %v1079, 7
      %v1081 = vsub.s32 7, %v1080
      %v1082 = vrot.slane %v1049, %v1081
      %v1091 = vadd.f32 %v1033, %v1054
      %v1092 = vadd.f32 %v1034, %v1058
      %v1093 = vadd.f32 %v1035, %v1062
      %v1094 = vadd.f32 %v1036, %v1066
      %v1095 = vadd.f32 %v1037, %v1070
      %v1096 = vadd.f32 %v1038, %v1074
      %v1097 = vadd.f32 %v1039, %v1078
      %v1098 = vadd.f32 %v1040, %v1082
      %v1099 = vadd.f32 %v1041, %v1054
      %v1100 = vadd.f32 %v1042, %v1058
      %v1101 = vadd.f32 %v1043, %v1062
      %v1102 = vadd.f32 %v1044, %v1066
      %v1103 = vadd.f32 %v1045, %v1070
      %v1104 = vadd.f32 %v1046, %v1074
      %v1105 = vadd.f32 %v1047, %v1078
      %v1106 = vadd.f32 %v1048, %v1082
      %vm1107 = vcmp.gt.f32.partialorder %v1091, 0.0
      %vm1108 = vcmp.gt.f32.partialorder %v1092, 0.0
      %vm1109 = vcmp.gt.f32.partialorder %v1093, 0.0
      %vm1110 = vcmp.gt.f32.partialorder %v1094, 0.0
      %vm1111 = vcmp.gt.f32.partialorder %v1095, 0.0
      %vm1112 = vcmp.gt.f32.partialorder %v1096, 0.0
      %vm1113 = vcmp.gt.f32.partialorder %v1097, 0.0
      %vm1114 = vcmp.gt.f32.partialorder %v1098, 0.0
      %vm1115 = vcmp.gt.f32.partialorder %v1099, 0.0
      %vm1116 = vcmp.gt.f32.partialorder %v1100, 0.0
      %vm1117 = vcmp.gt.f32.partialorder %v1101, 0.0
      %vm1118 = vcmp.gt.f32.partialorder %v1102, 0.0
      %vm1119 = vcmp.gt.f32.partialorder %v1103, 0.0
      %vm1120 = vcmp.gt.f32.partialorder %v1104, 0.0
      %vm1121 = vcmp.gt.f32.partialorder %v1105, 0.0
      %vm1122 = vcmp.gt.f32.partialorder %v1106, 0.0
      %v1123 = vmul.f32 %v1091, 0.2
      %v1124 = vmul.f32 %v1092, 0.2
      %v1125 = vmul.f32 %v1093, 0.2
      %v1126 = vmul.f32 %v1094, 0.2
      %v1127 = vmul.f32 %v1095, 0.2
      %v1128 = vmul.f32 %v1096, 0.2
      %v1129 = vmul.f32 %v1097, 0.2
      %v1130 = vmul.f32 %v1098, 0.2
      %v1131 = vmul.f32 %v1099, 0.2
      %v1132 = vmul.f32 %v1100, 0.2
      %v1133 = vmul.f32 %v1101, 0.2
      %v1134 = vmul.f32 %v1102, 0.2
      %v1135 = vmul.f32 %v1103, 0.2
      %v1136 = vmul.f32 %v1104, 0.2
      %v1137 = vmul.f32 %v1105, 0.2
      %v1138 = vmul.f32 %v1106, 0.2
      %v1139 = vsel %vm1107, %v1091, %v1123
      %v1140 = vsel %vm1108, %v1092, %v1124
      %v1141 = vsel %vm1109, %v1093, %v1125
      %v1142 = vsel %vm1110, %v1094, %v1126
      %v1143 = vsel %vm1111, %v1095, %v1127
      %v1144 = vsel %vm1112, %v1096, %v1128
      %v1145 = vsel %vm1113, %v1097, %v1129
      %v1146 = vsel %vm1114, %v1098, %v1130
      %v1147 = vsel %vm1115, %v1099, %v1131
      %v1148 = vsel %vm1116, %v1100, %v1132
      %v1149 = vsel %vm1117, %v1101, %v1133
      %v1150 = vsel %vm1118, %v1102, %v1134
      %v1151 = vsel %vm1119, %v1103, %v1135
      %v1152 = vsel %vm1120, %v1104, %v1136
      %v1153 = vsel %vm1121, %v1105, %v1137
      %v1154 = vsel %vm1122, %v1106, %v1138
      %v1155 = vmax.f32 %v1139, %v1147
      %v1156 = vrot.slane %v1155, 4
      %v1157 = vmax.f32 %v1155, %v1156
      %v1158 = vrot.slane %v1157, 2
      %v1159 = vmax.f32 %v1157, %v1158
      %v1160 = vrot.slane %v1159, 1
      %v1161 = vmax.f32 %v1159, %v1160
      %v1162 = vmax.f32 %v1140, %v1148
      %v1163 = vrot.slane %v1162, 4
      %v1164 = vmax.f32 %v1162, %v1163
      %v1165 = vrot.slane %v1164, 2
      %v1166 = vmax.f32 %v1164, %v1165
      %v1167 = vrot.slane %v1166, 1
      %v1168 = vmax.f32 %v1166, %v1167
      %v1169 = vmax.f32 %v1141, %v1149
      %v1170 = vrot.slane %v1169, 4
      %v1171 = vmax.f32 %v1169, %v1170
      %v1172 = vrot.slane %v1171, 2
      %v1173 = vmax.f32 %v1171, %v1172
      %v1174 = vrot.slane %v1173, 1
      %v1175 = vmax.f32 %v1173, %v1174
      %v1176 = vmax.f32 %v1142, %v1150
      %v1177 = vrot.slane %v1176, 4
      %v1178 = vmax.f32 %v1176, %v1177
      %v1179 = vrot.slane %v1178, 2
      %v1180 = vmax.f32 %v1178, %v1179
      %v1181 = vrot.slane %v1180, 1
      %v1182 = vmax.f32 %v1180, %v1181
      %v1183 = vmax.f32 %v1143, %v1151
      %v1184 = vrot.slane %v1183, 4
      %v1185 = vmax.f32 %v1183, %v1184
      %v1186 = vrot.slane %v1185, 2
      %v1187 = vmax.f32 %v1185, %v1186
      %v1188 = vrot.slane %v1187, 1
      %v1189 = vmax.f32 %v1187, %v1188
      %v1190 = vmax.f32 %v1144, %v1152
      %v1191 = vrot.slane %v1190, 4
      %v1192 = vmax.f32 %v1190, %v1191
      %v1193 = vrot.slane %v1192, 2
      %v1194 = vmax.f32 %v1192, %v1193
      %v1195 = vrot.slane %v1194, 1
      %v1196 = vmax.f32 %v1194, %v1195
      %v1197 = vmax.f32 %v1145, %v1153
      %v1198 = vrot.slane %v1197, 4
      %v1199 = vmax.f32 %v1197, %v1198
      %v1200 = vrot.slane %v1199, 2
      %v1201 = vmax.f32 %v1199, %v1200
      %v1202 = vrot.slane %v1201, 1
      %v1203 = vmax.f32 %v1201, %v1202
      %v1204 = vmax.f32 %v1146, %v1154
      %v1205 = vrot.slane %v1204, 4
      %v1206 = vmax.f32 %v1204, %v1205
      %v1207 = vrot.slane %v1206, 2
      %v1208 = vmax.f32 %v1206, %v1207
      %v1209 = vrot.slane %v1208, 1
      %v1210 = vmax.f32 %v1208, %v1209
      %p1211 = scmp.eq.s32.totalorder %s20, 0
      // Predicated region
      $region37: #{dgcnn_forward.14} parent=35 // pred_check
        %p1212 = pneg %p1211
      $region38: #{dgcnn_forward.14} parent=35 // pred_check_branch
        %1214 = sbr.rel (%p1212) target = $region40
      $region39: #{dgcnn_forward.14} parent=35 // pred_region
        %v1223 = vcombine.low %v1161, %v1168
        %v1224 = vcombine.low %v1175, %v1182
        %v1225 = vcombine.low %v1189, %v1196
        %v1226 = vcombine.low %v1203, %v1210
        %v1228 = vunpack.c.l.s4 1966171168
        %v1229 = vunpack.c.0.s8 %v1228
        %v1230 = vlaneseq
        %v1231 = vshrl.u32 %v1230, 7
        %v1232 = vsub.s32 %v1229, %v1231
        %v1233 = vrot.slane %v1223, %v1232
        %v1235 = vunpack.c.l.s4 1966171168
        %v1236 = vunpack.c.0.s8 %v1235
        %v1237 = vlaneseq
        %v1238 = vshrl.u32 %v1237, 7
        %v1239 = vsub.s32 %v1236, %v1238
        %v1240 = vrot.slane %v1224, %v1239
        %v1242 = vunpack.c.l.s4 1966171168
        %v1243 = vunpack.c.0.s8 %v1242
        %v1244 = vlaneseq
        %v1245 = vshrl.u32 %v1244, 7
        %v1246 = vsub.s32 %v1243, %v1245
        %v1247 = vrot.slane %v1225, %v1246
        %v1249 = vunpack.c.l.s4 1966171168
        %v1250 = vunpack.c.0.s8 %v1249
        %v1251 = vlaneseq
        %v1252 = vshrl.u32 %v1251, 7
        %v1253 = vsub.s32 %v1250, %v1252
        %v1254 = vrot.slane %v1226, %v1253
        %v1255 = vcombine.low %v1233, %v1240
        %v1256 = vcombine.low %v1247, %v1254
        %v1258 = vunpack.c.l.s4 1966171168
        %v1259 = vunpack.c.0.s8 %v1258
        %v1260 = vlaneseq
        %v1261 = vshrl.u32 %v1260, 7
        %v1262 = vsub.s32 %v1259, %v1261
        %v1263 = vrot.slane %v1255, %v1262
        %v1265 = vunpack.c.l.s4 1966171168
        %v1266 = vunpack.c.0.s8 %v1265
        %v1267 = vlaneseq
        %v1268 = vshrl.u32 %v1267, 7
        %v1269 = vsub.s32 %v1266, %v1268
        %v1270 = vrot.slane %v1256, %v1269
        %v1271 = vcombine.low %v1263, %v1270
        %1273 = vst [vmem:[%s226] sm:$0xff] %v1271
      $region40: #{dgcnn_forward.14} parent=35 // pred_fallthru
        _
      %p1274 = scmp.gt.s32.totalorder %s20, 0
      // Predicated region
      $region41: #{dgcnn_forward.14} parent=35 // pred_check
        %p1275 = pneg %p1274
      $region42: #{dgcnn_forward.14} parent=35 // pred_check_branch
        %1277 = sbr.rel (%p1275) target = $region44
      $region43: #{dgcnn_forward.14} parent=35 // pred_region
        %v1278 = vld [vmem:[%s226] sm:$0xff]
        %v1287 = vcombine.low %v1161, %v1168
        %v1288 = vcombine.low %v1175, %v1182
        %v1289 = vcombine.low %v1189, %v1196
        %v1290 = vcombine.low %v1203, %v1210
        %v1292 = vunpack.c.l.s4 1966171168
        %v1293 = vunpack.c.0.s8 %v1292
        %v1294 = vlaneseq
        %v1295 = vshrl.u32 %v1294, 7
        %v1296 = vsub.s32 %v1293, %v1295
        %v1297 = vrot.slane %v1287, %v1296
        %v1299 = vunpack.c.l.s4 1966171168
        %v1300 = vunpack.c.0.s8 %v1299
        %v1301 = vlaneseq
        %v1302 = vshrl.u32 %v1301, 7
        %v1303 = vsub.s32 %v1300, %v1302
        %v1304 = vrot.slane %v1288, %v1303
        %v1306 = vunpack.c.l.s4 1966171168
        %v1307 = vunpack.c.0.s8 %v1306
        %v1308 = vlaneseq
        %v1309 = vshrl.u32 %v1308, 7
        %v1310 = vsub.s32 %v1307, %v1309
        %v1311 = vrot.slane %v1289, %v1310
        %v1313 = vunpack.c.l.s4 1966171168
        %v1314 = vunpack.c.0.s8 %v1313
        %v1315 = vlaneseq
        %v1316 = vshrl.u32 %v1315, 7
        %v1317 = vsub.s32 %v1314, %v1316
        %v1318 = vrot.slane %v1290, %v1317
        %v1319 = vcombine.low %v1297, %v1304
        %v1320 = vcombine.low %v1311, %v1318
        %v1322 = vunpack.c.l.s4 1966171168
        %v1323 = vunpack.c.0.s8 %v1322
        %v1324 = vlaneseq
        %v1325 = vshrl.u32 %v1324, 7
        %v1326 = vsub.s32 %v1323, %v1325
        %v1327 = vrot.slane %v1319, %v1326
        %v1329 = vunpack.c.l.s4 1966171168
        %v1330 = vunpack.c.0.s8 %v1329
        %v1331 = vlaneseq
        %v1332 = vshrl.u32 %v1331, 7
        %v1333 = vsub.s32 %v1330, %v1332
        %v1334 = vrot.slane %v1320, %v1333
        %v1335 = vcombine.low %v1327, %v1334
        %v1337 = vmax.f32 %v1278, %v1335
        %1338 = vst [vmem:[%s226] sm:$0xff] %v1337
      $region44: #{dgcnn_forward.14} parent=35 // pred_fallthru
        _
      %p1339 = scmp.lt.s32.totalorder %s19, 1
      %s1340 = scalar_select %p1339, %s19, 1
      %s1341 = smul.addr %s1340, 8
      %s1342 = scalar_lea.vmem %s4, %s1341
      // Predicated region
      $region45: #{dgcnn_forward.14} parent=35 // pred_check
        %p1343 = pneg %p136
      $region46: #{dgcnn_forward.14} parent=35 // pred_check_branch
        %1345 = sbr.rel (%p1343) target = $region48
      $region47: #{dgcnn_forward.14} parent=35 // pred_region
        _
      $region48: #{dgcnn_forward.14} parent=35 // pred_fallthru
        _
    $region36: #{dgcnn_forward.14} parent=5 // pred_fallthru
      _
    %p1346 = scmp.le.s32.totalorder 2, %s10
    // Predicated region
    $region49: #{dgcnn_forward.14} parent=5 // pred_check
      %p1347 = pneg %p1346
    $region50: #{dgcnn_forward.14} parent=5 // pred_check_branch
      %1349 = sbr.rel (%p1347) target = $region52
    $region51: #{dgcnn_forward.14} parent=5 // pred_region
      %s1350 = ssub.s32 %s10, 2
      // Predicated region
      $region53: #{dgcnn_forward.14} parent=51 // pred_check
        %p1351 = pneg %p142
      $region54: #{dgcnn_forward.14} parent=51 // pred_check_branch
        %1353 = sbr.rel (%p1351) target = $region56
      $region55: #{dgcnn_forward.14} parent=51 // pred_region
        %p1354 = scmp.lt.s32.totalorder %s21, 1
        %s1355 = scalar_select %p1354, %s21, 1
        %s1356 = smul.addr %s1355, 8
        %s1357 = scalar_lea.vmem %s4, %s1356
      $region56: #{dgcnn_forward.14} parent=51 // pred_fallthru
        _
    $region52: #{dgcnn_forward.14} parent=5 // pred_fallthru
      _
  $region6: #{dgcnn_forward.14} parent=0 // loop_footer
    %s14 = sadd.s32 1, %s10
  $region7: #{dgcnn_forward.14} parent=0 // loop_footer_branch
    %9 = sbr.rel target = $region3
  $region8: #{dgcnn_forward.14} parent=0 // loop_exit
    _

// kernel: dgcnn_forward.15
$region0: #{dgcnn_forward.15}
  #allocation0 [shape = 'u32[]', space=smem, size = 0x4, offset = 0x4, fixed_abs, tag = 'smem constant byte address 0x4 - core index']
  #allocation1 [shape = 'u32[144,128]{1,0:T(1,128)}', space=vmem, size = 0x12000, scoped, tag = 'internal scratch']
  %s0 = inlined_call_operand.vmem [shape: f32[2,1024], index: 0, kind: input, shape index: {}]
  %s1 = inlined_call_operand.vmem [shape: bf16[1024,512], index: 1, kind: input, shape index: {}]
  %s2 = inlined_call_operand.vmem [shape: f32[1,512], index: 2, kind: input, shape index: {}]
  %s3 = inlined_call_operand.vmem [shape: f32[1,512], index: 3, kind: input, shape index: {}]
  %s4 = inlined_call_operand.vmem [shape: f32[1,512], index: 4, kind: input, shape index: {}]
  %s5 = inlined_call_operand.vmem [shape: bf16[512,256], index: 5, kind: input, shape index: {}]
  %s6 = inlined_call_operand.vmem [shape: f32[1,256], index: 6, kind: input, shape index: {}]
  %s7 = inlined_call_operand.hbm [shape: f32[2,256], index: 7, kind: output, shape index: {}]
  %s8 = sld [smem:[#allocation0]]
  $region38: #{dgcnn_forward.15} parent=0
    _
  %s10 = ssub.s32 1, %s8
  %s11 = scalar_select 0, %s10, %s8
  $region1: #{dgcnn_forward.15} parent=0
    #allocation2 [shape = 'u8[2048]{0}', space=vmem, size = 0x800, scoped, tag = 'output window, operand 0, single buffered']
    #allocation3 [shape = 's32[1]{0}', space=sflag, size = 0x4, scoped, tag = 'scoped memory for dgcnn_forward.15']
    %12 = vsyncpa [#allocation3], 0
    // Predicated region
    $region2: #{dgcnn_forward.15} parent=1 // pred_check
      _
    $region3: #{dgcnn_forward.15} parent=1 // pred_check_branch
      %14 = sbr.rel (0) target = $region5
    $region4: #{dgcnn_forward.15} parent=1 // pred_region
      _
    $region5: #{dgcnn_forward.15} parent=1 // pred_fallthru
      _
    // Predicated region
    $region6: #{dgcnn_forward.15} parent=1 // pred_check
      _
    $region7: #{dgcnn_forward.15} parent=1 // pred_check_branch
      %16 = sbr.rel (0) target = $region9
    $region8: #{dgcnn_forward.15} parent=1 // pred_region
      _
    $region9: #{dgcnn_forward.15} parent=1 // pred_fallthru
      _
    // Predicated region
    $region10: #{dgcnn_forward.15} parent=1 // pred_check
      _
    $region11: #{dgcnn_forward.15} parent=1 // pred_check_branch
      %18 = sbr.rel (0) target = $region13
    $region12: #{dgcnn_forward.15} parent=1 // pred_region
      _
    $region13: #{dgcnn_forward.15} parent=1 // pred_fallthru
      _
    // Predicated region
    $region14: #{dgcnn_forward.15} parent=1 // pred_check
      _
    $region15: #{dgcnn_forward.15} parent=1 // pred_check_branch
      %20 = sbr.rel (0) target = $region17
    $region16: #{dgcnn_forward.15} parent=1 // pred_region
      _
    $region17: #{dgcnn_forward.15} parent=1 // pred_fallthru
      _
    // Predicated region
    $region18: #{dgcnn_forward.15} parent=1 // pred_check
      _
    $region19: #{dgcnn_forward.15} parent=1 // pred_check_branch
      %22 = sbr.rel (0) target = $region21
    $region20: #{dgcnn_forward.15} parent=1 // pred_region
      _
    $region21: #{dgcnn_forward.15} parent=1 // pred_fallthru
      _
    // Predicated region
    $region22: #{dgcnn_forward.15} parent=1 // pred_check
      _
    $region23: #{dgcnn_forward.15} parent=1 // pred_check_branch
      %24 = sbr.rel (0) target = $region25
    $region24: #{dgcnn_forward.15} parent=1 // pred_region
      _
    $region25: #{dgcnn_forward.15} parent=1 // pred_fallthru
      _
    // Predicated region
    $region26: #{dgcnn_forward.15} parent=1 // pred_check
      _
    $region27: #{dgcnn_forward.15} parent=1 // pred_check_branch
      %26 = sbr.rel (0) target = $region29
    $region28: #{dgcnn_forward.15} parent=1 // pred_region
      _
    $region29: #{dgcnn_forward.15} parent=1 // pred_fallthru
      _
    %v27 = vld [vmem:[%s0] sm:$0xff]
    %v28 = vld [vmem:[%s0 + $0x8] sm:$0xff]
    %v31 = vcombine.high %v27, %v27
    %v33 = vunpack.c.l.s4 1983009808
    %v34 = vunpack.c.0.s8 %v33
    %v35 = vlaneseq
    %v36 = vshrl.u32 %v35, 7
    %v37 = vsub.s32 %v34, %v36
    %v38 = vrot.slane %v27, %v37
    %v40 = vunpack.c.l.s4 1983009808
    %v41 = vunpack.c.0.s8 %v40
    %v42 = vlaneseq
    %v43 = vshrl.u32 %v42, 7
    %v44 = vsub.s32 %v41, %v43
    %v45 = vrot.slane %v31, %v44
    %v46 = vcombine.high %v38, %v38
    %v47 = vcombine.high %v45, %v45
    %v48 = vcombine.high %v28, %v28
    %v50 = vunpack.c.l.s4 1983009808
    %v51 = vunpack.c.0.s8 %v50
    %v52 = vlaneseq
    %v53 = vshrl.u32 %v52, 7
    %v54 = vsub.s32 %v51, %v53
    %v55 = vrot.slane %v28, %v54
    %v57 = vunpack.c.l.s4 1983009808
    %v58 = vunpack.c.0.s8 %v57
    %v59 = vlaneseq
    %v60 = vshrl.u32 %v59, 7
    %v61 = vsub.s32 %v58, %v60
    %v62 = vrot.slane %v48, %v61
    %v63 = vcombine.high %v55, %v55
    %v64 = vcombine.high %v62, %v62
    %v73 = vpack.c.bf16 %v38, %v38
    %v74 = vpack.c.bf16 %v46, %v46
    %v75 = vpack.c.bf16 %v45, %v45
    %v76 = vpack.c.bf16 %v47, %v47
    %v77 = vpack.c.bf16 %v55, %v55
    %v78 = vpack.c.bf16 %v63, %v63
    %v79 = vpack.c.bf16 %v62, %v62
    %v80 = vpack.c.bf16 %v64, %v64
    %v81 = vld [vmem:[%s1] sm:$0xff]
    %v82 = vld [vmem:[%s1 + $0x8] sm:$0xff]
    %v83 = vld [vmem:[%s1 + $0x10] sm:$0xff]
    %v84 = vld [vmem:[%s1 + $0x18] sm:$0xff]
    %v85 = vld [vmem:[%s1 + $0x20] sm:$0xff]
    %v86 = vld [vmem:[%s1 + $0x28] sm:$0xff]
    %v87 = vld [vmem:[%s1 + $0x30] sm:$0xff]
    %v88 = vld [vmem:[%s1 + $0x38] sm:$0xff]
    %v89 = vld [vmem:[%s1 + $0x40] sm:$0xff]
    %v90 = vld [vmem:[%s1 + $0x48] sm:$0xff]
    %v91 = vld [vmem:[%s1 + $0x50] sm:$0xff]
    %v92 = vld [vmem:[%s1 + $0x58] sm:$0xff]
    %v93 = vld [vmem:[%s1 + $0x60] sm:$0xff]
    %v94 = vld [vmem:[%s1 + $0x68] sm:$0xff]
    %v95 = vld [vmem:[%s1 + $0x70] sm:$0xff]
    %v96 = vld [vmem:[%s1 + $0x78] sm:$0xff]
    %v97 = vld [vmem:[%s1 + $0x80] sm:$0xff]
    %v98 = vld [vmem:[%s1 + $0x88] sm:$0xff]
    %v99 = vld [vmem:[%s1 + $0x90] sm:$0xff]
    %v100 = vld [vmem:[%s1 + $0x98] sm:$0xff]
    %v101 = vld [vmem:[%s1 + $0xa0] sm:$0xff]
    %v102 = vld [vmem:[%s1 + $0xa8] sm:$0xff]
    %v103 = vld [vmem:[%s1 + $0xb0] sm:$0xff]
    %v104 = vld [vmem:[%s1 + $0xb8] sm:$0xff]
    %v105 = vld [vmem:[%s1 + $0xc0] sm:$0xff]
    %v106 = vld [vmem:[%s1 + $0xc8] sm:$0xff]
    %v107 = vld [vmem:[%s1 + $0xd0] sm:$0xff]
    %v108 = vld [vmem:[%s1 + $0xd8] sm:$0xff]
    %v109 = vld [vmem:[%s1 + $0xe0] sm:$0xff]
    %v110 = vld [vmem:[%s1 + $0xe8] sm:$0xff]
    %v111 = vld [vmem:[%s1 + $0xf0] sm:$0xff]
    %v112 = vld [vmem:[%s1 + $0xf8] sm:$0xff]
    %v113 = vld [vmem:[%s1 + $0x100] sm:$0xff]
    %v114 = vld [vmem:[%s1 + $0x108] sm:$0xff]
    %v115 = vld [vmem:[%s1 + $0x110] sm:$0xff]
    %v116 = vld [vmem:[%s1 + $0x118] sm:$0xff]
    %v117 = vld [vmem:[%s1 + $0x120] sm:$0xff]
    %v118 = vld [vmem:[%s1 + $0x128] sm:$0xff]
    %v119 = vld [vmem:[%s1 + $0x130] sm:$0xff]
    %v120 = vld [vmem:[%s1 + $0x138] sm:$0xff]
    %v121 = vld [vmem:[%s1 + $0x140] sm:$0xff]
    %v122 = vld [vmem:[%s1 + $0x148] sm:$0xff]
    %v123 = vld [vmem:[%s1 + $0x150] sm:$0xff]
    %v124 = vld [vmem:[%s1 + $0x158] sm:$0xff]
    %v125 = vld [vmem:[%s1 + $0x160] sm:$0xff]
    %v126 = vld [vmem:[%s1 + $0x168] sm:$0xff]
    %v127 = vld [vmem:[%s1 + $0x170] sm:$0xff]
    %v128 = vld [vmem:[%s1 + $0x178] sm:$0xff]
    %v129 = vld [vmem:[%s1 + $0x180] sm:$0xff]
    %v130 = vld [vmem:[%s1 + $0x188] sm:$0xff]
    %v131 = vld [vmem:[%s1 + $0x190] sm:$0xff]
    %v132 = vld [vmem:[%s1 + $0x198] sm:$0xff]
    %v133 = vld [vmem:[%s1 + $0x1a0] sm:$0xff]
    %v134 = vld [vmem:[%s1 + $0x1a8] sm:$0xff]
    %v135 = vld [vmem:[%s1 + $0x1b0] sm:$0xff]
    %v136 = vld [vmem:[%s1 + $0x1b8] sm:$0xff]
    %v137 = vld [vmem:[%s1 + $0x1c0] sm:$0xff]
    %v138 = vld [vmem:[%s1 + $0x1c8] sm:$0xff]
    %v139 = vld [vmem:[%s1 + $0x1d0] sm:$0xff]
    %v140 = vld [vmem:[%s1 + $0x1d8] sm:$0xff]
    %v141 = vld [vmem:[%s1 + $0x1e0] sm:$0xff]
    %v142 = vld [vmem:[%s1 + $0x1e8] sm:$0xff]
    %v143 = vld [vmem:[%s1 + $0x1f0] sm:$0xff]
    %v144 = vld [vmem:[%s1 + $0x1f8] sm:$0xff]
    %v145 = vld [vmem:[%s1 + $0x200] sm:$0xff]
    %v146 = vld [vmem:[%s1 + $0x208] sm:$0xff]
    %v147 = vld [vmem:[%s1 + $0x210] sm:$0xff]
    %v148 = vld [vmem:[%s1 + $0x218] sm:$0xff]
    %v149 = vld [vmem:[%s1 + $0x220] sm:$0xff]
    %v150 = vld [vmem:[%s1 + $0x228] sm:$0xff]
    %v151 = vld [vmem:[%s1 + $0x230] sm:$0xff]
    %v152 = vld [vmem:[%s1 + $0x238] sm:$0xff]
    %v153 = vld [vmem:[%s1 + $0x240] sm:$0xff]
    %v154 = vld [vmem:[%s1 + $0x248] sm:$0xff]
    %v155 = vld [vmem:[%s1 + $0x250] sm:$0xff]
    %v156 = vld [vmem:[%s1 + $0x258] sm:$0xff]
    %v157 = vld [vmem:[%s1 + $0x260] sm:$0xff]
    %v158 = vld [vmem:[%s1 + $0x268] sm:$0xff]
    %v159 = vld [vmem:[%s1 + $0x270] sm:$0xff]
    %v160 = vld [vmem:[%s1 + $0x278] sm:$0xff]
    %v161 = vld [vmem:[%s1 + $0x280] sm:$0xff]
    %v162 = vld [vmem:[%s1 + $0x288] sm:$0xff]
    %v163 = vld [vmem:[%s1 + $0x290] sm:$0xff]
    %v164 = vld [vmem:[%s1 + $0x298] sm:$0xff]
    %v165 = vld [vmem:[%s1 + $0x2a0] sm:$0xff]
    %v166 = vld [vmem:[%s1 + $0x2a8] sm:$0xff]
    %v167 = vld [vmem:[%s1 + $0x2b0] sm:$0xff]
    %v168 = vld [vmem:[%s1 + $0x2b8] sm:$0xff]
    %v169 = vld [vmem:[%s1 + $0x2c0] sm:$0xff]
    %v170 = vld [vmem:[%s1 + $0x2c8] sm:$0xff]
    %v171 = vld [vmem:[%s1 + $0x2d0] sm:$0xff]
    %v172 = vld [vmem:[%s1 + $0x2d8] sm:$0xff]
    %v173 = vld [vmem:[%s1 + $0x2e0] sm:$0xff]
    %v174 = vld [vmem:[%s1 + $0x2e8] sm:$0xff]
    %v175 = vld [vmem:[%s1 + $0x2f0] sm:$0xff]
    %v176 = vld [vmem:[%s1 + $0x2f8] sm:$0xff]
    %v177 = vld [vmem:[%s1 + $0x300] sm:$0xff]
    %v178 = vld [vmem:[%s1 + $0x308] sm:$0xff]
    %v179 = vld [vmem:[%s1 + $0x310] sm:$0xff]
    %v180 = vld [vmem:[%s1 + $0x318] sm:$0xff]
    %v181 = vld [vmem:[%s1 + $0x320] sm:$0xff]
    %v182 = vld [vmem:[%s1 + $0x328] sm:$0xff]
    %v183 = vld [vmem:[%s1 + $0x330] sm:$0xff]
    %v184 = vld [vmem:[%s1 + $0x338] sm:$0xff]
    %v185 = vld [vmem:[%s1 + $0x340] sm:$0xff]
    %v186 = vld [vmem:[%s1 + $0x348] sm:$0xff]
    %v187 = vld [vmem:[%s1 + $0x350] sm:$0xff]
    %v188 = vld [vmem:[%s1 + $0x358] sm:$0xff]
    %v189 = vld [vmem:[%s1 + $0x360] sm:$0xff]
    %v190 = vld [vmem:[%s1 + $0x368] sm:$0xff]
    %v191 = vld [vmem:[%s1 + $0x370] sm:$0xff]
    %v192 = vld [vmem:[%s1 + $0x378] sm:$0xff]
    %v193 = vld [vmem:[%s1 + $0x380] sm:$0xff]
    %v194 = vld [vmem:[%s1 + $0x388] sm:$0xff]
    %v195 = vld [vmem:[%s1 + $0x390] sm:$0xff]
    %v196 = vld [vmem:[%s1 + $0x398] sm:$0xff]
    %v197 = vld [vmem:[%s1 + $0x3a0] sm:$0xff]
    %v198 = vld [vmem:[%s1 + $0x3a8] sm:$0xff]
    %v199 = vld [vmem:[%s1 + $0x3b0] sm:$0xff]
    %v200 = vld [vmem:[%s1 + $0x3b8] sm:$0xff]
    %v201 = vld [vmem:[%s1 + $0x3c0] sm:$0xff]
    %v202 = vld [vmem:[%s1 + $0x3c8] sm:$0xff]
    %v203 = vld [vmem:[%s1 + $0x3d0] sm:$0xff]
    %v204 = vld [vmem:[%s1 + $0x3d8] sm:$0xff]
    %v205 = vld [vmem:[%s1 + $0x3e0] sm:$0xff]
    %v206 = vld [vmem:[%s1 + $0x3e8] sm:$0xff]
    %v207 = vld [vmem:[%s1 + $0x3f0] sm:$0xff]
    %v208 = vld [vmem:[%s1 + $0x3f8] sm:$0xff]
    %v209 = vld [vmem:[%s1 + $0x400] sm:$0xff]
    %v210 = vld [vmem:[%s1 + $0x408] sm:$0xff]
    %v211 = vld [vmem:[%s1 + $0x410] sm:$0xff]
    %v212 = vld [vmem:[%s1 + $0x418] sm:$0xff]
    %v213 = vld [vmem:[%s1 + $0x420] sm:$0xff]
    %v214 = vld [vmem:[%s1 + $0x428] sm:$0xff]
    %v215 = vld [vmem:[%s1 + $0x430] sm:$0xff]
    %v216 = vld [vmem:[%s1 + $0x438] sm:$0xff]
    %v217 = vld [vmem:[%s1 + $0x440] sm:$0xff]
    %v218 = vld [vmem:[%s1 + $0x448] sm:$0xff]
    %v219 = vld [vmem:[%s1 + $0x450] sm:$0xff]
    %v220 = vld [vmem:[%s1 + $0x458] sm:$0xff]
    %v221 = vld [vmem:[%s1 + $0x460] sm:$0xff]
    %v222 = vld [vmem:[%s1 + $0x468] sm:$0xff]
    %v223 = vld [vmem:[%s1 + $0x470] sm:$0xff]
    %v224 = vld [vmem:[%s1 + $0x478] sm:$0xff]
    %v225 = vld [vmem:[%s1 + $0x480] sm:$0xff]
    %v226 = vld [vmem:[%s1 + $0x488] sm:$0xff]
    %v227 = vld [vmem:[%s1 + $0x490] sm:$0xff]
    %v228 = vld [vmem:[%s1 + $0x498] sm:$0xff]
    %v229 = vld [vmem:[%s1 + $0x4a0] sm:$0xff]
    %v230 = vld [vmem:[%s1 + $0x4a8] sm:$0xff]
    %v231 = vld [vmem:[%s1 + $0x4b0] sm:$0xff]
    %v232 = vld [vmem:[%s1 + $0x4b8] sm:$0xff]
    %v233 = vld [vmem:[%s1 + $0x4c0] sm:$0xff]
    %v234 = vld [vmem:[%s1 + $0x4c8] sm:$0xff]
    %v235 = vld [vmem:[%s1 + $0x4d0] sm:$0xff]
    %v236 = vld [vmem:[%s1 + $0x4d8] sm:$0xff]
    %v237 = vld [vmem:[%s1 + $0x4e0] sm:$0xff]
    %v238 = vld [vmem:[%s1 + $0x4e8] sm:$0xff]
    %v239 = vld [vmem:[%s1 + $0x4f0] sm:$0xff]
    %v240 = vld [vmem:[%s1 + $0x4f8] sm:$0xff]
    %v241 = vld [vmem:[%s1 + $0x500] sm:$0xff]
    %v242 = vld [vmem:[%s1 + $0x508] sm:$0xff]
    %v243 = vld [vmem:[%s1 + $0x510] sm:$0xff]
    %v244 = vld [vmem:[%s1 + $0x518] sm:$0xff]
    %v245 = vld [vmem:[%s1 + $0x520] sm:$0xff]
    %v246 = vld [vmem:[%s1 + $0x528] sm:$0xff]
    %v247 = vld [vmem:[%s1 + $0x530] sm:$0xff]
    %v248 = vld [vmem:[%s1 + $0x538] sm:$0xff]
    %v249 = vld [vmem:[%s1 + $0x540] sm:$0xff]
    %v250 = vld [vmem:[%s1 + $0x548] sm:$0xff]
    %v251 = vld [vmem:[%s1 + $0x550] sm:$0xff]
    %v252 = vld [vmem:[%s1 + $0x558] sm:$0xff]
    %v253 = vld [vmem:[%s1 + $0x560] sm:$0xff]
    %v254 = vld [vmem:[%s1 + $0x568] sm:$0xff]
    %v255 = vld [vmem:[%s1 + $0x570] sm:$0xff]
    %v256 = vld [vmem:[%s1 + $0x578] sm:$0xff]
    %v257 = vld [vmem:[%s1 + $0x580] sm:$0xff]
    %v258 = vld [vmem:[%s1 + $0x588] sm:$0xff]
    %v259 = vld [vmem:[%s1 + $0x590] sm:$0xff]
    %v260 = vld [vmem:[%s1 + $0x598] sm:$0xff]
    %v261 = vld [vmem:[%s1 + $0x5a0] sm:$0xff]
    %v262 = vld [vmem:[%s1 + $0x5a8] sm:$0xff]
    %v263 = vld [vmem:[%s1 + $0x5b0] sm:$0xff]
    %v264 = vld [vmem:[%s1 + $0x5b8] sm:$0xff]
    %v265 = vld [vmem:[%s1 + $0x5c0] sm:$0xff]
    %v266 = vld [vmem:[%s1 + $0x5c8] sm:$0xff]
    %v267 = vld [vmem:[%s1 + $0x5d0] sm:$0xff]
    %v268 = vld [vmem:[%s1 + $0x5d8] sm:$0xff]
    %v269 = vld [vmem:[%s1 + $0x5e0] sm:$0xff]
    %v270 = vld [vmem:[%s1 + $0x5e8] sm:$0xff]
    %v271 = vld [vmem:[%s1 + $0x5f0] sm:$0xff]
    %v272 = vld [vmem:[%s1 + $0x5f8] sm:$0xff]
    %v273 = vld [vmem:[%s1 + $0x600] sm:$0xff]
    %v274 = vld [vmem:[%s1 + $0x608] sm:$0xff]
    %v275 = vld [vmem:[%s1 + $0x610] sm:$0xff]
    %v276 = vld [vmem:[%s1 + $0x618] sm:$0xff]
    %v277 = vld [vmem:[%s1 + $0x620] sm:$0xff]
    %v278 = vld [vmem:[%s1 + $0x628] sm:$0xff]
    %v279 = vld [vmem:[%s1 + $0x630] sm:$0xff]
    %v280 = vld [vmem:[%s1 + $0x638] sm:$0xff]
    %v281 = vld [vmem:[%s1 + $0x640] sm:$0xff]
    %v282 = vld [vmem:[%s1 + $0x648] sm:$0xff]
    %v283 = vld [vmem:[%s1 + $0x650] sm:$0xff]
    %v284 = vld [vmem:[%s1 + $0x658] sm:$0xff]
    %v285 = vld [vmem:[%s1 + $0x660] sm:$0xff]
    %v286 = vld [vmem:[%s1 + $0x668] sm:$0xff]
    %v287 = vld [vmem:[%s1 + $0x670] sm:$0xff]
    %v288 = vld [vmem:[%s1 + $0x678] sm:$0xff]
    %v289 = vld [vmem:[%s1 + $0x680] sm:$0xff]
    %v290 = vld [vmem:[%s1 + $0x688] sm:$0xff]
    %v291 = vld [vmem:[%s1 + $0x690] sm:$0xff]
    %v292 = vld [vmem:[%s1 + $0x698] sm:$0xff]
    %v293 = vld [vmem:[%s1 + $0x6a0] sm:$0xff]
    %v294 = vld [vmem:[%s1 + $0x6a8] sm:$0xff]
    %v295 = vld [vmem:[%s1 + $0x6b0] sm:$0xff]
    %v296 = vld [vmem:[%s1 + $0x6b8] sm:$0xff]
    %v297 = vld [vmem:[%s1 + $0x6c0] sm:$0xff]
    %v298 = vld [vmem:[%s1 + $0x6c8] sm:$0xff]
    %v299 = vld [vmem:[%s1 + $0x6d0] sm:$0xff]
    %v300 = vld [vmem:[%s1 + $0x6d8] sm:$0xff]
    %v301 = vld [vmem:[%s1 + $0x6e0] sm:$0xff]
    %v302 = vld [vmem:[%s1 + $0x6e8] sm:$0xff]
    %v303 = vld [vmem:[%s1 + $0x6f0] sm:$0xff]
    %v304 = vld [vmem:[%s1 + $0x6f8] sm:$0xff]
    %v305 = vld [vmem:[%s1 + $0x700] sm:$0xff]
    %v306 = vld [vmem:[%s1 + $0x708] sm:$0xff]
    %v307 = vld [vmem:[%s1 + $0x710] sm:$0xff]
    %v308 = vld [vmem:[%s1 + $0x718] sm:$0xff]
    %v309 = vld [vmem:[%s1 + $0x720] sm:$0xff]
    %v310 = vld [vmem:[%s1 + $0x728] sm:$0xff]
    %v311 = vld [vmem:[%s1 + $0x730] sm:$0xff]
    %v312 = vld [vmem:[%s1 + $0x738] sm:$0xff]
    %v313 = vld [vmem:[%s1 + $0x740] sm:$0xff]
    %v314 = vld [vmem:[%s1 + $0x748] sm:$0xff]
    %v315 = vld [vmem:[%s1 + $0x750] sm:$0xff]
    %v316 = vld [vmem:[%s1 + $0x758] sm:$0xff]
    %v317 = vld [vmem:[%s1 + $0x760] sm:$0xff]
    %v318 = vld [vmem:[%s1 + $0x768] sm:$0xff]
    %v319 = vld [vmem:[%s1 + $0x770] sm:$0xff]
    %v320 = vld [vmem:[%s1 + $0x778] sm:$0xff]
    %v321 = vld [vmem:[%s1 + $0x780] sm:$0xff]
    %v322 = vld [vmem:[%s1 + $0x788] sm:$0xff]
    %v323 = vld [vmem:[%s1 + $0x790] sm:$0xff]
    %v324 = vld [vmem:[%s1 + $0x798] sm:$0xff]
    %v325 = vld [vmem:[%s1 + $0x7a0] sm:$0xff]
    %v326 = vld [vmem:[%s1 + $0x7a8] sm:$0xff]
    %v327 = vld [vmem:[%s1 + $0x7b0] sm:$0xff]
    %v328 = vld [vmem:[%s1 + $0x7b8] sm:$0xff]
    %v329 = vld [vmem:[%s1 + $0x7c0] sm:$0xff]
    %v330 = vld [vmem:[%s1 + $0x7c8] sm:$0xff]
    %v331 = vld [vmem:[%s1 + $0x7d0] sm:$0xff]
    %v332 = vld [vmem:[%s1 + $0x7d8] sm:$0xff]
    %v333 = vld [vmem:[%s1 + $0x7e0] sm:$0xff]
    %v334 = vld [vmem:[%s1 + $0x7e8] sm:$0xff]
    %v335 = vld [vmem:[%s1 + $0x7f0] sm:$0xff]
    %v336 = vld [vmem:[%s1 + $0x7f8] sm:$0xff]
    %v337 = vld [vmem:[%s2] sm:$0xf]
    %v339 = vlaneseq
    %v340 = vshrl.u32 %v339, 7
    %v341 = vsub.s32 0, %v340
    %v342 = vrot.slane %v337, %v341
    %v343 = vlaneseq
    %v344 = vshrl.u32 %v343, 7
    %v345 = vsub.s32 1, %v344
    %v346 = vrot.slane %v337, %v345
    %v347 = vlaneseq
    %v348 = vshrl.u32 %v347, 7
    %v349 = vsub.s32 2, %v348
    %v350 = vrot.slane %v337, %v349
    %v351 = vlaneseq
    %v352 = vshrl.u32 %v351, 7
    %v353 = vsub.s32 3, %v352
    %v354 = vrot.slane %v337, %v353
    %v615 = vunpack.c.l.b16 %v81
    %v616 = vunpack.c.h.b16 %v81
    %v617 = vunpack.c.l.b16 %v82
    %v618 = vunpack.c.h.b16 %v82
    %v619 = vunpack.c.l.b16 %v83
    %v620 = vunpack.c.h.b16 %v83
    %v621 = vunpack.c.l.b16 %v84
    %v622 = vunpack.c.h.b16 %v84
    %v623 = vunpack.c.l.b16 %v85
    %v624 = vunpack.c.h.b16 %v85
    %v625 = vunpack.c.l.b16 %v86
    %v626 = vunpack.c.h.b16 %v86
    %v627 = vunpack.c.l.b16 %v87
    %v628 = vunpack.c.h.b16 %v87
    %v629 = vunpack.c.l.b16 %v88
    %v630 = vunpack.c.h.b16 %v88
    %v631 = vunpack.c.l.b16 %v89
    %v632 = vunpack.c.h.b16 %v89
    %v633 = vunpack.c.l.b16 %v90
    %v634 = vunpack.c.h.b16 %v90
    %v635 = vunpack.c.l.b16 %v91
    %v636 = vunpack.c.h.b16 %v91
    %v637 = vunpack.c.l.b16 %v92
    %v638 = vunpack.c.h.b16 %v92
    %v639 = vunpack.c.l.b16 %v93
    %v640 = vunpack.c.h.b16 %v93
    %v641 = vunpack.c.l.b16 %v94
    %v642 = vunpack.c.h.b16 %v94
    %v643 = vunpack.c.l.b16 %v95
    %v644 = vunpack.c.h.b16 %v95
    %v645 = vunpack.c.l.b16 %v96
    %v646 = vunpack.c.h.b16 %v96
    %v647 = vunpack.c.l.b16 %v97
    %v648 = vunpack.c.h.b16 %v97
    %v649 = vunpack.c.l.b16 %v98
    %v650 = vunpack.c.h.b16 %v98
    %v651 = vunpack.c.l.b16 %v99
    %v652 = vunpack.c.h.b16 %v99
    %v653 = vunpack.c.l.b16 %v100
    %v654 = vunpack.c.h.b16 %v100
    %v655 = vunpack.c.l.b16 %v101
    %v656 = vunpack.c.h.b16 %v101
    %v657 = vunpack.c.l.b16 %v102
    %v658 = vunpack.c.h.b16 %v102
    %v659 = vunpack.c.l.b16 %v103
    %v660 = vunpack.c.h.b16 %v103
    %v661 = vunpack.c.l.b16 %v104
    %v662 = vunpack.c.h.b16 %v104
    %v663 = vunpack.c.l.b16 %v105
    %v664 = vunpack.c.h.b16 %v105
    %v665 = vunpack.c.l.b16 %v106
    %v666 = vunpack.c.h.b16 %v106
    %v667 = vunpack.c.l.b16 %v107
    %v668 = vunpack.c.h.b16 %v107
    %v669 = vunpack.c.l.b16 %v108
    %v670 = vunpack.c.h.b16 %v108
    %v671 = vunpack.c.l.b16 %v109
    %v672 = vunpack.c.h.b16 %v109
    %v673 = vunpack.c.l.b16 %v110
    %v674 = vunpack.c.h.b16 %v110
    %v675 = vunpack.c.l.b16 %v111
    %v676 = vunpack.c.h.b16 %v111
    %v677 = vunpack.c.l.b16 %v112
    %v678 = vunpack.c.h.b16 %v112
    %v679 = vunpack.c.l.b16 %v113
    %v680 = vunpack.c.h.b16 %v113
    %v681 = vunpack.c.l.b16 %v114
    %v682 = vunpack.c.h.b16 %v114
    %v683 = vunpack.c.l.b16 %v115
    %v684 = vunpack.c.h.b16 %v115
    %v685 = vunpack.c.l.b16 %v116
    %v686 = vunpack.c.h.b16 %v116
    %v687 = vunpack.c.l.b16 %v117
    %v688 = vunpack.c.h.b16 %v117
    %v689 = vunpack.c.l.b16 %v118
    %v690 = vunpack.c.h.b16 %v118
    %v691 = vunpack.c.l.b16 %v119
    %v692 = vunpack.c.h.b16 %v119
    %v693 = vunpack.c.l.b16 %v120
    %v694 = vunpack.c.h.b16 %v120
    %v695 = vunpack.c.l.b16 %v121
    %v696 = vunpack.c.h.b16 %v121
    %v697 = vunpack.c.l.b16 %v122
    %v698 = vunpack.c.h.b16 %v122
    %v699 = vunpack.c.l.b16 %v123
    %v700 = vunpack.c.h.b16 %v123
    %v701 = vunpack.c.l.b16 %v124
    %v702 = vunpack.c.h.b16 %v124
    %v703 = vunpack.c.l.b16 %v125
    %v704 = vunpack.c.h.b16 %v125
    %v705 = vunpack.c.l.b16 %v126
    %v706 = vunpack.c.h.b16 %v126
    %v707 = vunpack.c.l.b16 %v127
    %v708 = vunpack.c.h.b16 %v127
    %v709 = vunpack.c.l.b16 %v128
    %v710 = vunpack.c.h.b16 %v128
    %v711 = vunpack.c.l.b16 %v129
    %v712 = vunpack.c.h.b16 %v129
    %v713 = vunpack.c.l.b16 %v130
    %v714 = vunpack.c.h.b16 %v130
    %v715 = vunpack.c.l.b16 %v131
    %v716 = vunpack.c.h.b16 %v131
    %v717 = vunpack.c.l.b16 %v132
    %v718 = vunpack.c.h.b16 %v132
    %v719 = vunpack.c.l.b16 %v133
    %v720 = vunpack.c.h.b16 %v133
    %v721 = vunpack.c.l.b16 %v134
    %v722 = vunpack.c.h.b16 %v134
    %v723 = vunpack.c.l.b16 %v135
    %v724 = vunpack.c.h.b16 %v135
    %v725 = vunpack.c.l.b16 %v136
    %v726 = vunpack.c.h.b16 %v136
    %v727 = vunpack.c.l.b16 %v137
    %v728 = vunpack.c.h.b16 %v137
    %v729 = vunpack.c.l.b16 %v138
    %v730 = vunpack.c.h.b16 %v138
    %v731 = vunpack.c.l.b16 %v139
    %v732 = vunpack.c.h.b16 %v139
    %v733 = vunpack.c.l.b16 %v140
    %v734 = vunpack.c.h.b16 %v140
    %v735 = vunpack.c.l.b16 %v141
    %v736 = vunpack.c.h.b16 %v141
    %v737 = vunpack.c.l.b16 %v142
    %v738 = vunpack.c.h.b16 %v142
    %v739 = vunpack.c.l.b16 %v143
    %v740 = vunpack.c.h.b16 %v143
    %v741 = vunpack.c.l.b16 %v144
    %v742 = vunpack.c.h.b16 %v144
    %v743 = vunpack.c.l.b16 %v145
    %v744 = vunpack.c.h.b16 %v145
    %v745 = vunpack.c.l.b16 %v146
    %v746 = vunpack.c.h.b16 %v146
    %v747 = vunpack.c.l.b16 %v147
    %v748 = vunpack.c.h.b16 %v147
    %v749 = vunpack.c.l.b16 %v148
    %v750 = vunpack.c.h.b16 %v148
    %v751 = vunpack.c.l.b16 %v149
    %v752 = vunpack.c.h.b16 %v149
    %v753 = vunpack.c.l.b16 %v150
    %v754 = vunpack.c.h.b16 %v150
    %v755 = vunpack.c.l.b16 %v151
    %v756 = vunpack.c.h.b16 %v151
    %v757 = vunpack.c.l.b16 %v152
    %v758 = vunpack.c.h.b16 %v152
    %v759 = vunpack.c.l.b16 %v153
    %v760 = vunpack.c.h.b16 %v153
    %v761 = vunpack.c.l.b16 %v154
    %v762 = vunpack.c.h.b16 %v154
    %v763 = vunpack.c.l.b16 %v155
    %v764 = vunpack.c.h.b16 %v155
    %v765 = vunpack.c.l.b16 %v156
    %v766 = vunpack.c.h.b16 %v156
    %v767 = vunpack.c.l.b16 %v157
    %v768 = vunpack.c.h.b16 %v157
    %v769 = vunpack.c.l.b16 %v158
    %v770 = vunpack.c.h.b16 %v158
    %v771 = vunpack.c.l.b16 %v159
    %v772 = vunpack.c.h.b16 %v159
    %v773 = vunpack.c.l.b16 %v160
    %v774 = vunpack.c.h.b16 %v160
    %v775 = vunpack.c.l.b16 %v161
    %v776 = vunpack.c.h.b16 %v161
    %v777 = vunpack.c.l.b16 %v162
    %v778 = vunpack.c.h.b16 %v162
    %v779 = vunpack.c.l.b16 %v163
    %v780 = vunpack.c.h.b16 %v163
    %v781 = vunpack.c.l.b16 %v164
    %v782 = vunpack.c.h.b16 %v164
    %v783 = vunpack.c.l.b16 %v165
    %v784 = vunpack.c.h.b16 %v165
    %v785 = vunpack.c.l.b16 %v166
    %v786 = vunpack.c.h.b16 %v166
    %v787 = vunpack.c.l.b16 %v167
    %v788 = vunpack.c.h.b16 %v167
    %v789 = vunpack.c.l.b16 %v168
    %v790 = vunpack.c.h.b16 %v168
    %v791 = vunpack.c.l.b16 %v169
    %v792 = vunpack.c.h.b16 %v169
    %v793 = vunpack.c.l.b16 %v170
    %v794 = vunpack.c.h.b16 %v170
    %v795 = vunpack.c.l.b16 %v171
    %v796 = vunpack.c.h.b16 %v171
    %v797 = vunpack.c.l.b16 %v172
    %v798 = vunpack.c.h.b16 %v172
    %v799 = vunpack.c.l.b16 %v173
    %v800 = vunpack.c.h.b16 %v173
    %v801 = vunpack.c.l.b16 %v174
    %v802 = vunpack.c.h.b16 %v174
    %v803 = vunpack.c.l.b16 %v175
    %v804 = vunpack.c.h.b16 %v175
    %v805 = vunpack.c.l.b16 %v176
    %v806 = vunpack.c.h.b16 %v176
    %v807 = vunpack.c.l.b16 %v177
    %v808 = vunpack.c.h.b16 %v177
    %v809 = vunpack.c.l.b16 %v178
    %v810 = vunpack.c.h.b16 %v178
    %v811 = vunpack.c.l.b16 %v179
    %v812 = vunpack.c.h.b16 %v179
    %v813 = vunpack.c.l.b16 %v180
    %v814 = vunpack.c.h.b16 %v180
    %v815 = vunpack.c.l.b16 %v181
    %v816 = vunpack.c.h.b16 %v181
    %v817 = vunpack.c.l.b16 %v182
    %v818 = vunpack.c.h.b16 %v182
    %v819 = vunpack.c.l.b16 %v183
    %v820 = vunpack.c.h.b16 %v183
    %v821 = vunpack.c.l.b16 %v184
    %v822 = vunpack.c.h.b16 %v184
    %v823 = vunpack.c.l.b16 %v185
    %v824 = vunpack.c.h.b16 %v185
    %v825 = vunpack.c.l.b16 %v186
    %v826 = vunpack.c.h.b16 %v186
    %v827 = vunpack.c.l.b16 %v187
    %v828 = vunpack.c.h.b16 %v187
    %v829 = vunpack.c.l.b16 %v188
    %v830 = vunpack.c.h.b16 %v188
    %v831 = vunpack.c.l.b16 %v189
    %v832 = vunpack.c.h.b16 %v189
    %v833 = vunpack.c.l.b16 %v190
    %v834 = vunpack.c.h.b16 %v190
    %v835 = vunpack.c.l.b16 %v191
    %v836 = vunpack.c.h.b16 %v191
    %v837 = vunpack.c.l.b16 %v192
    %v838 = vunpack.c.h.b16 %v192
    %v839 = vunpack.c.l.b16 %v193
    %v840 = vunpack.c.h.b16 %v193
    %v841 = vunpack.c.l.b16 %v194
    %v842 = vunpack.c.h.b16 %v194
    %v843 = vunpack.c.l.b16 %v195
    %v844 = vunpack.c.h.b16 %v195
    %v845 = vunpack.c.l.b16 %v196
    %v846 = vunpack.c.h.b16 %v196
    %v847 = vunpack.c.l.b16 %v197
    %v848 = vunpack.c.h.b16 %v197
    %v849 = vunpack.c.l.b16 %v198
    %v850 = vunpack.c.h.b16 %v198
    %v851 = vunpack.c.l.b16 %v199
    %v852 = vunpack.c.h.b16 %v199
    %v853 = vunpack.c.l.b16 %v200
    %v854 = vunpack.c.h.b16 %v200
    %v855 = vunpack.c.l.b16 %v201
    %v856 = vunpack.c.h.b16 %v201
    %v857 = vunpack.c.l.b16 %v202
    %v858 = vunpack.c.h.b16 %v202
    %v859 = vunpack.c.l.b16 %v203
    %v860 = vunpack.c.h.b16 %v203
    %v861 = vunpack.c.l.b16 %v204
    %v862 = vunpack.c.h.b16 %v204
    %v863 = vunpack.c.l.b16 %v205
    %v864 = vunpack.c.h.b16 %v205
    %v865 = vunpack.c.l.b16 %v206
    %v866 = vunpack.c.h.b16 %v206
    %v867 = vunpack.c.l.b16 %v207
    %v868 = vunpack.c.h.b16 %v207
    %v869 = vunpack.c.l.b16 %v208
    %v870 = vunpack.c.h.b16 %v208
    %v871 = vunpack.c.l.b16 %v209
    %v872 = vunpack.c.h.b16 %v209
    %v873 = vunpack.c.l.b16 %v210
    %v874 = vunpack.c.h.b16 %v210
    %v875 = vunpack.c.l.b16 %v211
    %v876 = vunpack.c.h.b16 %v211
    %v877 = vunpack.c.l.b16 %v212
    %v878 = vunpack.c.h.b16 %v212
    %v879 = vunpack.c.l.b16 %v213
    %v880 = vunpack.c.h.b16 %v213
    %v881 = vunpack.c.l.b16 %v214
    %v882 = vunpack.c.h.b16 %v214
    %v883 = vunpack.c.l.b16 %v215
    %v884 = vunpack.c.h.b16 %v215
    %v885 = vunpack.c.l.b16 %v216
    %v886 = vunpack.c.h.b16 %v216
    %v887 = vunpack.c.l.b16 %v217
    %v888 = vunpack.c.h.b16 %v217
    %v889 = vunpack.c.l.b16 %v218
    %v890 = vunpack.c.h.b16 %v218
    %v891 = vunpack.c.l.b16 %v219
    %v892 = vunpack.c.h.b16 %v219
    %v893 = vunpack.c.l.b16 %v220
    %v894 = vunpack.c.h.b16 %v220
    %v895 = vunpack.c.l.b16 %v221
    %v896 = vunpack.c.h.b16 %v221
    %v897 = vunpack.c.l.b16 %v222
    %v898 = vunpack.c.h.b16 %v222
    %v899 = vunpack.c.l.b16 %v223
    %v900 = vunpack.c.h.b16 %v223
    %v901 = vunpack.c.l.b16 %v224
    %v902 = vunpack.c.h.b16 %v224
    %v903 = vunpack.c.l.b16 %v225
    %v904 = vunpack.c.h.b16 %v225
    %v905 = vunpack.c.l.b16 %v226
    %v906 = vunpack.c.h.b16 %v226
    %v907 = vunpack.c.l.b16 %v227
    %v908 = vunpack.c.h.b16 %v227
    %v909 = vunpack.c.l.b16 %v228
    %v910 = vunpack.c.h.b16 %v228
    %v911 = vunpack.c.l.b16 %v229
    %v912 = vunpack.c.h.b16 %v229
    %v913 = vunpack.c.l.b16 %v230
    %v914 = vunpack.c.h.b16 %v230
    %v915 = vunpack.c.l.b16 %v231
    %v916 = vunpack.c.h.b16 %v231
    %v917 = vunpack.c.l.b16 %v232
    %v918 = vunpack.c.h.b16 %v232
    %v919 = vunpack.c.l.b16 %v233
    %v920 = vunpack.c.h.b16 %v233
    %v921 = vunpack.c.l.b16 %v234
    %v922 = vunpack.c.h.b16 %v234
    %v923 = vunpack.c.l.b16 %v235
    %v924 = vunpack.c.h.b16 %v235
    %v925 = vunpack.c.l.b16 %v236
    %v926 = vunpack.c.h.b16 %v236
    %v927 = vunpack.c.l.b16 %v237
    %v928 = vunpack.c.h.b16 %v237
    %v929 = vunpack.c.l.b16 %v238
    %v930 = vunpack.c.h.b16 %v238
    %v931 = vunpack.c.l.b16 %v239
    %v932 = vunpack.c.h.b16 %v239
    %v933 = vunpack.c.l.b16 %v240
    %v934 = vunpack.c.h.b16 %v240
    %v935 = vunpack.c.l.b16 %v241
    %v936 = vunpack.c.h.b16 %v241
    %v937 = vunpack.c.l.b16 %v242
    %v938 = vunpack.c.h.b16 %v242
    %v939 = vunpack.c.l.b16 %v243
    %v940 = vunpack.c.h.b16 %v243
    %v941 = vunpack.c.l.b16 %v244
    %v942 = vunpack.c.h.b16 %v244
    %v943 = vunpack.c.l.b16 %v245
    %v944 = vunpack.c.h.b16 %v245
    %v945 = vunpack.c.l.b16 %v246
    %v946 = vunpack.c.h.b16 %v246
    %v947 = vunpack.c.l.b16 %v247
    %v948 = vunpack.c.h.b16 %v247
    %v949 = vunpack.c.l.b16 %v248
    %v950 = vunpack.c.h.b16 %v248
    %v951 = vunpack.c.l.b16 %v249
    %v952 = vunpack.c.h.b16 %v249
    %v953 = vunpack.c.l.b16 %v250
    %v954 = vunpack.c.h.b16 %v250
    %v955 = vunpack.c.l.b16 %v251
    %v956 = vunpack.c.h.b16 %v251
    %v957 = vunpack.c.l.b16 %v252
    %v958 = vunpack.c.h.b16 %v252
    %v959 = vunpack.c.l.b16 %v253
    %v960 = vunpack.c.h.b16 %v253
    %v961 = vunpack.c.l.b16 %v254
    %v962 = vunpack.c.h.b16 %v254
    %v963 = vunpack.c.l.b16 %v255
    %v964 = vunpack.c.h.b16 %v255
    %v965 = vunpack.c.l.b16 %v256
    %v966 = vunpack.c.h.b16 %v256
    %v967 = vunpack.c.l.b16 %v257
    %v968 = vunpack.c.h.b16 %v257
    %v969 = vunpack.c.l.b16 %v258
    %v970 = vunpack.c.h.b16 %v258
    %v971 = vunpack.c.l.b16 %v259
    %v972 = vunpack.c.h.b16 %v259
    %v973 = vunpack.c.l.b16 %v260
    %v974 = vunpack.c.h.b16 %v260
    %v975 = vunpack.c.l.b16 %v261
    %v976 = vunpack.c.h.b16 %v261
    %v977 = vunpack.c.l.b16 %v262
    %v978 = vunpack.c.h.b16 %v262
    %v979 = vunpack.c.l.b16 %v263
    %v980 = vunpack.c.h.b16 %v263
    %v981 = vunpack.c.l.b16 %v264
    %v982 = vunpack.c.h.b16 %v264
    %v983 = vunpack.c.l.b16 %v265
    %v984 = vunpack.c.h.b16 %v265
    %v985 = vunpack.c.l.b16 %v266
    %v986 = vunpack.c.h.b16 %v266
    %v987 = vunpack.c.l.b16 %v267
    %v988 = vunpack.c.h.b16 %v267
    %v989 = vunpack.c.l.b16 %v268
    %v990 = vunpack.c.h.b16 %v268
    %v991 = vunpack.c.l.b16 %v269
    %v992 = vunpack.c.h.b16 %v269
    %v993 = vunpack.c.l.b16 %v270
    %v994 = vunpack.c.h.b16 %v270
    %v995 = vunpack.c.l.b16 %v271
    %v996 = vunpack.c.h.b16 %v271
    %v997 = vunpack.c.l.b16 %v272
    %v998 = vunpack.c.h.b16 %v272
    %v999 = vunpack.c.l.b16 %v273
    %v1000 = vunpack.c.h.b16 %v273
    %v1001 = vunpack.c.l.b16 %v274
    %v1002 = vunpack.c.h.b16 %v274
    %v1003 = vunpack.c.l.b16 %v275
    %v1004 = vunpack.c.h.b16 %v275
    %v1005 = vunpack.c.l.b16 %v276
    %v1006 = vunpack.c.h.b16 %v276
    %v1007 = vunpack.c.l.b16 %v277
    %v1008 = vunpack.c.h.b16 %v277
    %v1009 = vunpack.c.l.b16 %v278
    %v1010 = vunpack.c.h.b16 %v278
    %v1011 = vunpack.c.l.b16 %v279
    %v1012 = vunpack.c.h.b16 %v279
    %v1013 = vunpack.c.l.b16 %v280
    %v1014 = vunpack.c.h.b16 %v280
    %v1015 = vunpack.c.l.b16 %v281
    %v1016 = vunpack.c.h.b16 %v281
    %v1017 = vunpack.c.l.b16 %v282
    %v1018 = vunpack.c.h.b16 %v282
    %v1019 = vunpack.c.l.b16 %v283
    %v1020 = vunpack.c.h.b16 %v283
    %v1021 = vunpack.c.l.b16 %v284
    %v1022 = vunpack.c.h.b16 %v284
    %v1023 = vunpack.c.l.b16 %v285
    %v1024 = vunpack.c.h.b16 %v285
    %v1025 = vunpack.c.l.b16 %v286
    %v1026 = vunpack.c.h.b16 %v286
    %v1027 = vunpack.c.l.b16 %v287
    %v1028 = vunpack.c.h.b16 %v287
    %v1029 = vunpack.c.l.b16 %v288
    %v1030 = vunpack.c.h.b16 %v288
    %v1031 = vunpack.c.l.b16 %v289
    %v1032 = vunpack.c.h.b16 %v289
    %v1033 = vunpack.c.l.b16 %v290
    %v1034 = vunpack.c.h.b16 %v290
    %v1035 = vunpack.c.l.b16 %v291
    %v1036 = vunpack.c.h.b16 %v291
    %v1037 = vunpack.c.l.b16 %v292
    %v1038 = vunpack.c.h.b16 %v292
    %v1039 = vunpack.c.l.b16 %v293
    %v1040 = vunpack.c.h.b16 %v293
    %v1041 = vunpack.c.l.b16 %v294
    %v1042 = vunpack.c.h.b16 %v294
    %v1043 = vunpack.c.l.b16 %v295
    %v1044 = vunpack.c.h.b16 %v295
    %v1045 = vunpack.c.l.b16 %v296
    %v1046 = vunpack.c.h.b16 %v296
    %v1047 = vunpack.c.l.b16 %v297
    %v1048 = vunpack.c.h.b16 %v297
    %v1049 = vunpack.c.l.b16 %v298
    %v1050 = vunpack.c.h.b16 %v298
    %v1051 = vunpack.c.l.b16 %v299
    %v1052 = vunpack.c.h.b16 %v299
    %v1053 = vunpack.c.l.b16 %v300
    %v1054 = vunpack.c.h.b16 %v300
    %v1055 = vunpack.c.l.b16 %v301
    %v1056 = vunpack.c.h.b16 %v301
    %v1057 = vunpack.c.l.b16 %v302
    %v1058 = vunpack.c.h.b16 %v302
    %v1059 = vunpack.c.l.b16 %v303
    %v1060 = vunpack.c.h.b16 %v303
    %v1061 = vunpack.c.l.b16 %v304
    %v1062 = vunpack.c.h.b16 %v304
    %v1063 = vunpack.c.l.b16 %v305
    %v1064 = vunpack.c.h.b16 %v305
    %v1065 = vunpack.c.l.b16 %v306
    %v1066 = vunpack.c.h.b16 %v306
    %v1067 = vunpack.c.l.b16 %v307
    %v1068 = vunpack.c.h.b16 %v307
    %v1069 = vunpack.c.l.b16 %v308
    %v1070 = vunpack.c.h.b16 %v308
    %v1071 = vunpack.c.l.b16 %v309
    %v1072 = vunpack.c.h.b16 %v309
    %v1073 = vunpack.c.l.b16 %v310
    %v1074 = vunpack.c.h.b16 %v310
    %v1075 = vunpack.c.l.b16 %v311
    %v1076 = vunpack.c.h.b16 %v311
    %v1077 = vunpack.c.l.b16 %v312
    %v1078 = vunpack.c.h.b16 %v312
    %v1079 = vunpack.c.l.b16 %v313
    %v1080 = vunpack.c.h.b16 %v313
    %v1081 = vunpack.c.l.b16 %v314
    %v1082 = vunpack.c.h.b16 %v314
    %v1083 = vunpack.c.l.b16 %v315
    %v1084 = vunpack.c.h.b16 %v315
    %v1085 = vunpack.c.l.b16 %v316
    %v1086 = vunpack.c.h.b16 %v316
    %v1087 = vunpack.c.l.b16 %v317
    %v1088 = vunpack.c.h.b16 %v317
    %v1089 = vunpack.c.l.b16 %v318
    %v1090 = vunpack.c.h.b16 %v318
    %v1091 = vunpack.c.l.b16 %v319
    %v1092 = vunpack.c.h.b16 %v319
    %v1093 = vunpack.c.l.b16 %v320
    %v1094 = vunpack.c.h.b16 %v320
    %v1095 = vunpack.c.l.b16 %v321
    %v1096 = vunpack.c.h.b16 %v321
    %v1097 = vunpack.c.l.b16 %v322
    %v1098 = vunpack.c.h.b16 %v322
    %v1099 = vunpack.c.l.b16 %v323
    %v1100 = vunpack.c.h.b16 %v323
    %v1101 = vunpack.c.l.b16 %v324
    %v1102 = vunpack.c.h.b16 %v324
    %v1103 = vunpack.c.l.b16 %v325
    %v1104 = vunpack.c.h.b16 %v325
    %v1105 = vunpack.c.l.b16 %v326
    %v1106 = vunpack.c.h.b16 %v326
    %v1107 = vunpack.c.l.b16 %v327
    %v1108 = vunpack.c.h.b16 %v327
    %v1109 = vunpack.c.l.b16 %v328
    %v1110 = vunpack.c.h.b16 %v328
    %v1111 = vunpack.c.l.b16 %v329
    %v1112 = vunpack.c.h.b16 %v329
    %v1113 = vunpack.c.l.b16 %v330
    %v1114 = vunpack.c.h.b16 %v330
    %v1115 = vunpack.c.l.b16 %v331
    %v1116 = vunpack.c.h.b16 %v331
    %v1117 = vunpack.c.l.b16 %v332
    %v1118 = vunpack.c.h.b16 %v332
    %v1119 = vunpack.c.l.b16 %v333
    %v1120 = vunpack.c.h.b16 %v333
    %v1121 = vunpack.c.l.b16 %v334
    %v1122 = vunpack.c.h.b16 %v334
    %v1123 = vunpack.c.l.b16 %v335
    %v1124 = vunpack.c.h.b16 %v335
    %v1125 = vunpack.c.l.b16 %v336
    %v1126 = vunpack.c.h.b16 %v336
    %v1127 = vpack.c.b16 %v619, %v615
    %v1128 = vpack.c.b16 %v620, %v616
    %v1129 = vpack.c.b16 %v621, %v617
    %v1130 = vpack.c.b16 %v622, %v618
    %v1131 = vpack.c.b16 %v627, %v623
    %v1132 = vpack.c.b16 %v628, %v624
    %v1133 = vpack.c.b16 %v629, %v625
    %v1134 = vpack.c.b16 %v630, %v626
    %v1135 = vpack.c.b16 %v635, %v631
    %v1136 = vpack.c.b16 %v636, %v632
    %v1137 = vpack.c.b16 %v637, %v633
    %v1138 = vpack.c.b16 %v638, %v634
    %v1139 = vpack.c.b16 %v643, %v639
    %v1140 = vpack.c.b16 %v644, %v640
    %v1141 = vpack.c.b16 %v645, %v641
    %v1142 = vpack.c.b16 %v646, %v642
    %v1143 = vpack.c.b16 %v651, %v647
    %v1144 = vpack.c.b16 %v652, %v648
    %v1145 = vpack.c.b16 %v653, %v649
    %v1146 = vpack.c.b16 %v654, %v650
    %v1147 = vpack.c.b16 %v659, %v655
    %v1148 = vpack.c.b16 %v660, %v656
    %v1149 = vpack.c.b16 %v661, %v657
    %v1150 = vpack.c.b16 %v662, %v658
    %v1151 = vpack.c.b16 %v667, %v663
    %v1152 = vpack.c.b16 %v668, %v664
    %v1153 = vpack.c.b16 %v669, %v665
    %v1154 = vpack.c.b16 %v670, %v666
    %v1155 = vpack.c.b16 %v675, %v671
    %v1156 = vpack.c.b16 %v676, %v672
    %v1157 = vpack.c.b16 %v677, %v673
    %v1158 = vpack.c.b16 %v678, %v674
    %v1159 = vpack.c.b16 %v683, %v679
    %v1160 = vpack.c.b16 %v684, %v680
    %v1161 = vpack.c.b16 %v685, %v681
    %v1162 = vpack.c.b16 %v686, %v682
    %v1163 = vpack.c.b16 %v691, %v687
    %v1164 = vpack.c.b16 %v692, %v688
    %v1165 = vpack.c.b16 %v693, %v689
    %v1166 = vpack.c.b16 %v694, %v690
    %v1167 = vpack.c.b16 %v699, %v695
    %v1168 = vpack.c.b16 %v700, %v696
    %v1169 = vpack.c.b16 %v701, %v697
    %v1170 = vpack.c.b16 %v702, %v698
    %v1171 = vpack.c.b16 %v707, %v703
    %v1172 = vpack.c.b16 %v708, %v704
    %v1173 = vpack.c.b16 %v709, %v705
    %v1174 = vpack.c.b16 %v710, %v706
    %v1175 = vpack.c.b16 %v715, %v711
    %v1176 = vpack.c.b16 %v716, %v712
    %v1177 = vpack.c.b16 %v717, %v713
    %v1178 = vpack.c.b16 %v718, %v714
    %v1179 = vpack.c.b16 %v723, %v719
    %v1180 = vpack.c.b16 %v724, %v720
    %v1181 = vpack.c.b16 %v725, %v721
    %v1182 = vpack.c.b16 %v726, %v722
    %v1183 = vpack.c.b16 %v731, %v727
    %v1184 = vpack.c.b16 %v732, %v728
    %v1185 = vpack.c.b16 %v733, %v729
    %v1186 = vpack.c.b16 %v734, %v730
    %v1187 = vpack.c.b16 %v739, %v735
    %v1188 = vpack.c.b16 %v740, %v736
    %v1189 = vpack.c.b16 %v741, %v737
    %v1190 = vpack.c.b16 %v742, %v738
    %v1191 = vpack.c.b16 %v747, %v743
    %v1192 = vpack.c.b16 %v748, %v744
    %v1193 = vpack.c.b16 %v749, %v745
    %v1194 = vpack.c.b16 %v750, %v746
    %v1195 = vpack.c.b16 %v755, %v751
    %v1196 = vpack.c.b16 %v756, %v752
    %v1197 = vpack.c.b16 %v757, %v753
    %v1198 = vpack.c.b16 %v758, %v754
    %v1199 = vpack.c.b16 %v763, %v759
    %v1200 = vpack.c.b16 %v764, %v760
    %v1201 = vpack.c.b16 %v765, %v761
    %v1202 = vpack.c.b16 %v766, %v762
    %v1203 = vpack.c.b16 %v771, %v767
    %v1204 = vpack.c.b16 %v772, %v768
    %v1205 = vpack.c.b16 %v773, %v769
    %v1206 = vpack.c.b16 %v774, %v770
    %v1207 = vpack.c.b16 %v779, %v775
    %v1208 = vpack.c.b16 %v780, %v776
    %v1209 = vpack.c.b16 %v781, %v777
    %v1210 = vpack.c.b16 %v782, %v778
    %v1211 = vpack.c.b16 %v787, %v783
    %v1212 = vpack.c.b16 %v788, %v784
    %v1213 = vpack.c.b16 %v789, %v785
    %v1214 = vpack.c.b16 %v790, %v786
    %v1215 = vpack.c.b16 %v795, %v791
    %v1216 = vpack.c.b16 %v796, %v792
    %v1217 = vpack.c.b16 %v797, %v793
    %v1218 = vpack.c.b16 %v798, %v794
    %v1219 = vpack.c.b16 %v803, %v799
    %v1220 = vpack.c.b16 %v804, %v800
    %v1221 = vpack.c.b16 %v805, %v801
    %v1222 = vpack.c.b16 %v806, %v802
    %v1223 = vpack.c.b16 %v811, %v807
    %v1224 = vpack.c.b16 %v812, %v808
    %v1225 = vpack.c.b16 %v813, %v809
    %v1226 = vpack.c.b16 %v814, %v810
    %v1227 = vpack.c.b16 %v819, %v815
    %v1228 = vpack.c.b16 %v820, %v816
    %v1229 = vpack.c.b16 %v821, %v817
    %v1230 = vpack.c.b16 %v822, %v818
    %v1231 = vpack.c.b16 %v827, %v823
    %v1232 = vpack.c.b16 %v828, %v824
    %v1233 = vpack.c.b16 %v829, %v825
    %v1234 = vpack.c.b16 %v830, %v826
    %v1235 = vpack.c.b16 %v835, %v831
    %v1236 = vpack.c.b16 %v836, %v832
    %v1237 = vpack.c.b16 %v837, %v833
    %v1238 = vpack.c.b16 %v838, %v834
    %v1239 = vpack.c.b16 %v843, %v839
    %v1240 = vpack.c.b16 %v844, %v840
    %v1241 = vpack.c.b16 %v845, %v841
    %v1242 = vpack.c.b16 %v846, %v842
    %v1243 = vpack.c.b16 %v851, %v847
    %v1244 = vpack.c.b16 %v852, %v848
    %v1245 = vpack.c.b16 %v853, %v849
    %v1246 = vpack.c.b16 %v854, %v850
    %v1247 = vpack.c.b16 %v859, %v855
    %v1248 = vpack.c.b16 %v860, %v856
    %v1249 = vpack.c.b16 %v861, %v857
    %v1250 = vpack.c.b16 %v862, %v858
    %v1251 = vpack.c.b16 %v867, %v863
    %v1252 = vpack.c.b16 %v868, %v864
    %v1253 = vpack.c.b16 %v869, %v865
    %v1254 = vpack.c.b16 %v870, %v866
    %v1255 = vpack.c.b16 %v875, %v871
    %v1256 = vpack.c.b16 %v876, %v872
    %v1257 = vpack.c.b16 %v877, %v873
    %v1258 = vpack.c.b16 %v878, %v874
    %v1259 = vpack.c.b16 %v883, %v879
    %v1260 = vpack.c.b16 %v884, %v880
    %v1261 = vpack.c.b16 %v885, %v881
    %v1262 = vpack.c.b16 %v886, %v882
    %v1263 = vpack.c.b16 %v891, %v887
    %v1264 = vpack.c.b16 %v892, %v888
    %v1265 = vpack.c.b16 %v893, %v889
    %v1266 = vpack.c.b16 %v894, %v890
    %v1267 = vpack.c.b16 %v899, %v895
    %v1268 = vpack.c.b16 %v900, %v896
    %v1269 = vpack.c.b16 %v901, %v897
    %v1270 = vpack.c.b16 %v902, %v898
    %v1271 = vpack.c.b16 %v907, %v903
    %v1272 = vpack.c.b16 %v908, %v904
    %v1273 = vpack.c.b16 %v909, %v905
    %v1274 = vpack.c.b16 %v910, %v906
    %v1275 = vpack.c.b16 %v915, %v911
    %v1276 = vpack.c.b16 %v916, %v912
    %v1277 = vpack.c.b16 %v917, %v913
    %v1278 = vpack.c.b16 %v918, %v914
    %v1279 = vpack.c.b16 %v923, %v919
    %v1280 = vpack.c.b16 %v924, %v920
    %v1281 = vpack.c.b16 %v925, %v921
    %v1282 = vpack.c.b16 %v926, %v922
    %v1283 = vpack.c.b16 %v931, %v927
    %v1284 = vpack.c.b16 %v932, %v928
    %v1285 = vpack.c.b16 %v933, %v929
    %v1286 = vpack.c.b16 %v934, %v930
    %v1287 = vpack.c.b16 %v939, %v935
    %v1288 = vpack.c.b16 %v940, %v936
    %v1289 = vpack.c.b16 %v941, %v937
    %v1290 = vpack.c.b16 %v942, %v938
    %v1291 = vpack.c.b16 %v947, %v943
    %v1292 = vpack.c.b16 %v948, %v944
    %v1293 = vpack.c.b16 %v949, %v945
    %v1294 = vpack.c.b16 %v950, %v946
    %v1295 = vpack.c.b16 %v955, %v951
    %v1296 = vpack.c.b16 %v956, %v952
    %v1297 = vpack.c.b16 %v957, %v953
    %v1298 = vpack.c.b16 %v958, %v954
    %v1299 = vpack.c.b16 %v963, %v959
    %v1300 = vpack.c.b16 %v964, %v960
    %v1301 = vpack.c.b16 %v965, %v961
    %v1302 = vpack.c.b16 %v966, %v962
    %v1303 = vpack.c.b16 %v971, %v967
    %v1304 = vpack.c.b16 %v972, %v968
    %v1305 = vpack.c.b16 %v973, %v969
    %v1306 = vpack.c.b16 %v974, %v970
    %v1307 = vpack.c.b16 %v979, %v975
    %v1308 = vpack.c.b16 %v980, %v976
    %v1309 = vpack.c.b16 %v981, %v977
    %v1310 = vpack.c.b16 %v982, %v978
    %v1311 = vpack.c.b16 %v987, %v983
    %v1312 = vpack.c.b16 %v988, %v984
    %v1313 = vpack.c.b16 %v989, %v985
    %v1314 = vpack.c.b16 %v990, %v986
    %v1315 = vpack.c.b16 %v995, %v991
    %v1316 = vpack.c.b16 %v996, %v992
    %v1317 = vpack.c.b16 %v997, %v993
    %v1318 = vpack.c.b16 %v998, %v994
    %v1319 = vpack.c.b16 %v1003, %v999
    %v1320 = vpack.c.b16 %v1004, %v1000
    %v1321 = vpack.c.b16 %v1005, %v1001
    %v1322 = vpack.c.b16 %v1006, %v1002
    %v1323 = vpack.c.b16 %v1011, %v1007
    %v1324 = vpack.c.b16 %v1012, %v1008
    %v1325 = vpack.c.b16 %v1013, %v1009
    %v1326 = vpack.c.b16 %v1014, %v1010
    %v1327 = vpack.c.b16 %v1019, %v1015
    %v1328 = vpack.c.b16 %v1020, %v1016
    %v1329 = vpack.c.b16 %v1021, %v1017
    %v1330 = vpack.c.b16 %v1022, %v1018
    %v1331 = vpack.c.b16 %v1027, %v1023
    %v1332 = vpack.c.b16 %v1028, %v1024
    %v1333 = vpack.c.b16 %v1029, %v1025
    %v1334 = vpack.c.b16 %v1030, %v1026
    %v1335 = vpack.c.b16 %v1035, %v1031
    %v1336 = vpack.c.b16 %v1036, %v1032
    %v1337 = vpack.c.b16 %v1037, %v1033
    %v1338 = vpack.c.b16 %v1038, %v1034
    %v1339 = vpack.c.b16 %v1043, %v1039
    %v1340 = vpack.c.b16 %v1044, %v1040
    %v1341 = vpack.c.b16 %v1045, %v1041
    %v1342 = vpack.c.b16 %v1046, %v1042
    %v1343 = vpack.c.b16 %v1051, %v1047
    %v1344 = vpack.c.b16 %v1052, %v1048
    %v1345 = vpack.c.b16 %v1053, %v1049
    %v1346 = vpack.c.b16 %v1054, %v1050
    %v1347 = vpack.c.b16 %v1059, %v1055
    %v1348 = vpack.c.b16 %v1060, %v1056
    %v1349 = vpack.c.b16 %v1061, %v1057
    %v1350 = vpack.c.b16 %v1062, %v1058
    %v1351 = vpack.c.b16 %v1067, %v1063
    %v1352 = vpack.c.b16 %v1068, %v1064
    %v1353 = vpack.c.b16 %v1069, %v1065
    %v1354 = vpack.c.b16 %v1070, %v1066
    %v1355 = vpack.c.b16 %v1075, %v1071
    %v1356 = vpack.c.b16 %v1076, %v1072
    %v1357 = vpack.c.b16 %v1077, %v1073
    %v1358 = vpack.c.b16 %v1078, %v1074
    %v1359 = vpack.c.b16 %v1083, %v1079
    %v1360 = vpack.c.b16 %v1084, %v1080
    %v1361 = vpack.c.b16 %v1085, %v1081
    %v1362 = vpack.c.b16 %v1086, %v1082
    %v1363 = vpack.c.b16 %v1091, %v1087
    %v1364 = vpack.c.b16 %v1092, %v1088
    %v1365 = vpack.c.b16 %v1093, %v1089
    %v1366 = vpack.c.b16 %v1094, %v1090
    %v1367 = vpack.c.b16 %v1099, %v1095
    %v1368 = vpack.c.b16 %v1100, %v1096
    %v1369 = vpack.c.b16 %v1101, %v1097
    %v1370 = vpack.c.b16 %v1102, %v1098
    %v1371 = vpack.c.b16 %v1107, %v1103
    %v1372 = vpack.c.b16 %v1108, %v1104
    %v1373 = vpack.c.b16 %v1109, %v1105
    %v1374 = vpack.c.b16 %v1110, %v1106
    %v1375 = vpack.c.b16 %v1115, %v1111
    %v1376 = vpack.c.b16 %v1116, %v1112
    %v1377 = vpack.c.b16 %v1117, %v1113
    %v1378 = vpack.c.b16 %v1118, %v1114
    %v1379 = vpack.c.b16 %v1123, %v1119
    %v1380 = vpack.c.b16 %v1124, %v1120
    %v1381 = vpack.c.b16 %v1125, %v1121
    %v1382 = vpack.c.b16 %v1126, %v1122
    %1639 = vmatprep.subr.bf16.mxu0 %v1128
    %1640 = vmatpush1.bf16.msra.mxu0 %v1127
    %1641 = vmatprep.subr.bf16.mxu0 %v1132
    %1642 = vmatpush1.bf16.msra.mxu0 %v1131
    %1643 = vmatprep.subr.bf16.mxu0 %v1136
    %1644 = vmatpush1.bf16.msra.mxu0 %v1135
    %1645 = vmatprep.subr.bf16.mxu0 %v1140
    %1646 = vmatpush1.bf16.msra.mxu0 %v1139
    %1647 = vmatprep.subr.bf16.mxu0 %v1144
    %1648 = vmatpush1.bf16.msra.mxu0 %v1143
    %1649 = vmatprep.subr.bf16.mxu0 %v1148
    %1650 = vmatpush1.bf16.msra.mxu0 %v1147
    %1651 = vmatprep.subr.bf16.mxu0 %v1152
    %1652 = vmatpush1.bf16.msra.mxu0 %v1151
    %1653 = vmatprep.subr.bf16.mxu0 %v1156
    %1654 = vmatpush1.bf16.msra.mxu0 %v1155
    %1655 = vmatprep.subr.bf16.mxu0 %v1160
    %1656 = vmatpush1.bf16.msra.mxu0 %v1159
    %1657 = vmatprep.subr.bf16.mxu0 %v1164
    %1658 = vmatpush1.bf16.msra.mxu0 %v1163
    %1659 = vmatprep.subr.bf16.mxu0 %v1168
    %1660 = vmatpush1.bf16.msra.mxu0 %v1167
    %1661 = vmatprep.subr.bf16.mxu0 %v1172
    %1662 = vmatpush1.bf16.msra.mxu0 %v1171
    %1663 = vmatprep.subr.bf16.mxu0 %v1176
    %1664 = vmatpush1.bf16.msra.mxu0 %v1175
    %1665 = vmatprep.subr.bf16.mxu0 %v1180
    %1666 = vmatpush1.bf16.msra.mxu0 %v1179
    %1667 = vmatprep.subr.bf16.mxu0 %v1184
    %1668 = vmatpush1.bf16.msra.mxu0 %v1183
    %1669 = vmatprep.subr.bf16.mxu0 %v1188
    %1670 = vmatpush1.bf16.msra.mxu0 %v1187
    %1671 = vmatprep.mubr.bf16.mxu0 %v74
    %1672 = vmatmul.mubr.bf16.gmra.mrb[0].mxu0 %v73
    %v1673 = vpop.f32.mrb[0].mxu0
    %v1674 = vadd.f32 %v342, %v1673
    %v1675 = vpop.f32.mrb[0].mxu0
    %v1676 = vadd.f32 %v346, %v1675
    %v1677 = vpop.f32.mrb[0].mxu0
    %v1678 = vpop.f32.mrb[0].mxu0
    %1679 = vdwg.mxu0
    %1680 = vmatprep.subr.bf16.mxu0 %v1192
    %1681 = vmatpush1.bf16.msra.mxu0 %v1191
    %1682 = vmatprep.subr.bf16.mxu0 %v1196
    %1683 = vmatpush1.bf16.msra.mxu0 %v1195
    %1684 = vmatprep.subr.bf16.mxu0 %v1200
    %1685 = vmatpush1.bf16.msra.mxu0 %v1199
    %1686 = vmatprep.subr.bf16.mxu0 %v1204
    %1687 = vmatpush1.bf16.msra.mxu0 %v1203
    %1688 = vmatprep.subr.bf16.mxu0 %v1208
    %1689 = vmatpush1.bf16.msra.mxu0 %v1207
    %1690 = vmatprep.subr.bf16.mxu0 %v1212
    %1691 = vmatpush1.bf16.msra.mxu0 %v1211
    %1692 = vmatprep.subr.bf16.mxu0 %v1216
    %1693 = vmatpush1.bf16.msra.mxu0 %v1215
    %1694 = vmatprep.subr.bf16.mxu0 %v1220
    %1695 = vmatpush1.bf16.msra.mxu0 %v1219
    %1696 = vmatprep.subr.bf16.mxu0 %v1224
    %1697 = vmatpush1.bf16.msra.mxu0 %v1223
    %1698 = vmatprep.subr.bf16.mxu0 %v1228
    %1699 = vmatpush1.bf16.msra.mxu0 %v1227
    %1700 = vmatprep.subr.bf16.mxu0 %v1232
    %1701 = vmatpush1.bf16.msra.mxu0 %v1231
    %1702 = vmatprep.subr.bf16.mxu0 %v1236
    %1703 = vmatpush1.bf16.msra.mxu0 %v1235
    %1704 = vmatprep.subr.bf16.mxu0 %v1240
    %1705 = vmatpush1.bf16.msra.mxu0 %v1239
    %1706 = vmatprep.subr.bf16.mxu0 %v1244
    %1707 = vmatpush1.bf16.msra.mxu0 %v1243
    %1708 = vmatprep.subr.bf16.mxu0 %v1248
    %1709 = vmatpush1.bf16.msra.mxu0 %v1247
    %1710 = vmatprep.subr.bf16.mxu0 %v1252
    %1711 = vmatpush1.bf16.msra.mxu0 %v1251
    %1712 = vmatprep.mubr.bf16.mxu0 %v76
    %1713 = vmatmul.mubr.bf16.gmra.mrb[0].mxu0 %v75
    %v1714 = vpop.f32.mrb[0].mxu0
    %v1715 = vadd.f32 %v1674, %v1714
    %v1716 = vpop.f32.mrb[0].mxu0
    %v1717 = vadd.f32 %v1676, %v1716
    %v1718 = vpop.f32.mrb[0].mxu0
    %v1719 = vpop.f32.mrb[0].mxu0
    %1720 = vdwg.mxu0
    %1721 = vmatprep.subr.bf16.mxu0 %v1256
    %1722 = vmatpush1.bf16.msra.mxu0 %v1255
    %1723 = vmatprep.subr.bf16.mxu0 %v1260
    %1724 = vmatpush1.bf16.msra.mxu0 %v1259
    %1725 = vmatprep.subr.bf16.mxu0 %v1264
    %1726 = vmatpush1.bf16.msra.mxu0 %v1263
    %1727 = vmatprep.subr.bf16.mxu0 %v1268
    %1728 = vmatpush1.bf16.msra.mxu0 %v1267
    %1729 = vmatprep.subr.bf16.mxu0 %v1272
    %1730 = vmatpush1.bf16.msra.mxu0 %v1271
    %1731 = vmatprep.subr.bf16.mxu0 %v1276
    %1732 = vmatpush1.bf16.msra.mxu0 %v1275
    %1733 = vmatprep.subr.bf16.mxu0 %v1280
    %1734 = vmatpush1.bf16.msra.mxu0 %v1279
    %1735 = vmatprep.subr.bf16.mxu0 %v1284
    %1736 = vmatpush1.bf16.msra.mxu0 %v1283
    %1737 = vmatprep.subr.bf16.mxu0 %v1288
    %1738 = vmatpush1.bf16.msra.mxu0 %v1287
    %1739 = vmatprep.subr.bf16.mxu0 %v1292
    %1740 = vmatpush1.bf16.msra.mxu0 %v1291
    %1741 = vmatprep.subr.bf16.mxu0 %v1296
    %1742 = vmatpush1.bf16.msra.mxu0 %v1295
    %1743 = vmatprep.subr.bf16.mxu0 %v1300
    %1744 = vmatpush1.bf16.msra.mxu0 %v1299
    %1745 = vmatprep.subr.bf16.mxu0 %v1304
    %1746 = vmatpush1.bf16.msra.mxu0 %v1303
    %1747 = vmatprep.subr.bf16.mxu0 %v1308
    %1748 = vmatpush1.bf16.msra.mxu0 %v1307
    %1749 = vmatprep.subr.bf16.mxu0 %v1312
    %1750 = vmatpush1.bf16.msra.mxu0 %v1311
    %1751 = vmatprep.subr.bf16.mxu0 %v1316
    %1752 = vmatpush1.bf16.msra.mxu0 %v1315
    %1753 = vmatprep.mubr.bf16.mxu0 %v78
    %1754 = vmatmul.mubr.bf16.gmra.mrb[0].mxu0 %v77
    %v1755 = vpop.f32.mrb[0].mxu0
    %v1756 = vadd.f32 %v1715, %v1755
    %v1757 = vpop.f32.mrb[0].mxu0
    %v1758 = vadd.f32 %v1717, %v1757
    %v1759 = vpop.f32.mrb[0].mxu0
    %v1760 = vpop.f32.mrb[0].mxu0
    %1761 = vdwg.mxu0
    %1762 = vmatprep.subr.bf16.mxu0 %v1320
    %1763 = vmatpush1.bf16.msra.mxu0 %v1319
    %1764 = vmatprep.subr.bf16.mxu0 %v1324
    %1765 = vmatpush1.bf16.msra.mxu0 %v1323
    %1766 = vmatprep.subr.bf16.mxu0 %v1328
    %1767 = vmatpush1.bf16.msra.mxu0 %v1327
    %1768 = vmatprep.subr.bf16.mxu0 %v1332
    %1769 = vmatpush1.bf16.msra.mxu0 %v1331
    %1770 = vmatprep.subr.bf16.mxu0 %v1336
    %1771 = vmatpush1.bf16.msra.mxu0 %v1335
    %1772 = vmatprep.subr.bf16.mxu0 %v1340
    %1773 = vmatpush1.bf16.msra.mxu0 %v1339
    %1774 = vmatprep.subr.bf16.mxu0 %v1344
    %1775 = vmatpush1.bf16.msra.mxu0 %v1343
    %1776 = vmatprep.subr.bf16.mxu0 %v1348
    %1777 = vmatpush1.bf16.msra.mxu0 %v1347
    %1778 = vmatprep.subr.bf16.mxu0 %v1352
    %1779 = vmatpush1.bf16.msra.mxu0 %v1351
    %1780 = vmatprep.subr.bf16.mxu0 %v1356
    %1781 = vmatpush1.bf16.msra.mxu0 %v1355
    %1782 = vmatprep.subr.bf16.mxu0 %v1360
    %1783 = vmatpush1.bf16.msra.mxu0 %v1359
    %1784 = vmatprep.subr.bf16.mxu0 %v1364
    %1785 = vmatpush1.bf16.msra.mxu0 %v1363
    %1786 = vmatprep.subr.bf16.mxu0 %v1368
    %1787 = vmatpush1.bf16.msra.mxu0 %v1367
    %1788 = vmatprep.subr.bf16.mxu0 %v1372
    %1789 = vmatpush1.bf16.msra.mxu0 %v1371
    %1790 = vmatprep.subr.bf16.mxu0 %v1376
    %1791 = vmatpush1.bf16.msra.mxu0 %v1375
    %1792 = vmatprep.subr.bf16.mxu0 %v1380
    %1793 = vmatpush1.bf16.msra.mxu0 %v1379
    %1794 = vmatprep.mubr.bf16.mxu0 %v80
    %1795 = vmatmul.mubr.bf16.gmra.mrb[0].mxu0 %v79
    %v1796 = vpop.f32.mrb[0].mxu0
    %v1797 = vadd.f32 %v1756, %v1796
    %v1798 = vpop.f32.mrb[0].mxu0
    %v1799 = vadd.f32 %v1758, %v1798
    %v1800 = vpop.f32.mrb[0].mxu0
    %v1801 = vpop.f32.mrb[0].mxu0
    %1802 = vdwg.mxu0
    %1803 = vmatprep.subr.bf16.mxu0 %v1130
    %1804 = vmatpush1.bf16.msra.mxu0 %v1129
    %1805 = vmatprep.subr.bf16.mxu0 %v1134
    %1806 = vmatpush1.bf16.msra.mxu0 %v1133
    %1807 = vmatprep.subr.bf16.mxu0 %v1138
    %1808 = vmatpush1.bf16.msra.mxu0 %v1137
    %1809 = vmatprep.subr.bf16.mxu0 %v1142
    %1810 = vmatpush1.bf16.msra.mxu0 %v1141
    %1811 = vmatprep.subr.bf16.mxu0 %v1146
    %1812 = vmatpush1.bf16.msra.mxu0 %v1145
    %1813 = vmatprep.subr.bf16.mxu0 %v1150
    %1814 = vmatpush1.bf16.msra.mxu0 %v1149
    %1815 = vmatprep.subr.bf16.mxu0 %v1154
    %1816 = vmatpush1.bf16.msra.mxu0 %v1153
    %1817 = vmatprep.subr.bf16.mxu0 %v1158
    %1818 = vmatpush1.bf16.msra.mxu0 %v1157
    %1819 = vmatprep.subr.bf16.mxu0 %v1162
    %1820 = vmatpush1.bf16.msra.mxu0 %v1161
    %1821 = vmatprep.subr.bf16.mxu0 %v1166
    %1822 = vmatpush1.bf16.msra.mxu0 %v1165
    %1823 = vmatprep.subr.bf16.mxu0 %v1170
    %1824 = vmatpush1.bf16.msra.mxu0 %v1169
    %1825 = vmatprep.subr.bf16.mxu0 %v1174
    %1826 = vmatpush1.bf16.msra.mxu0 %v1173
    %1827 = vmatprep.subr.bf16.mxu0 %v1178
    %1828 = vmatpush1.bf16.msra.mxu0 %v1177
    %1829 = vmatprep.subr.bf16.mxu0 %v1182
    %1830 = vmatpush1.bf16.msra.mxu0 %v1181
    %1831 = vmatprep.subr.bf16.mxu0 %v1186
    %1832 = vmatpush1.bf16.msra.mxu0 %v1185
    %1833 = vmatprep.subr.bf16.mxu0 %v1190
    %1834 = vmatpush1.bf16.msra.mxu0 %v1189
    %1835 = vmatprep.mubr.bf16.mxu0 %v74
    %1836 = vmatmul.mubr.bf16.gmra.mrb[0].mxu0 %v73
    %v1837 = vpop.f32.mrb[0].mxu0
    %v1838 = vadd.f32 %v350, %v1837
    %v1839 = vpop.f32.mrb[0].mxu0
    %v1840 = vadd.f32 %v354, %v1839
    %v1841 = vpop.f32.mrb[0].mxu0
    %v1842 = vpop.f32.mrb[0].mxu0
    %1843 = vdwg.mxu0
    %1844 = vmatprep.subr.bf16.mxu0 %v1194
    %1845 = vmatpush1.bf16.msra.mxu0 %v1193
    %1846 = vmatprep.subr.bf16.mxu0 %v1198
    %1847 = vmatpush1.bf16.msra.mxu0 %v1197
    %1848 = vmatprep.subr.bf16.mxu0 %v1202
    %1849 = vmatpush1.bf16.msra.mxu0 %v1201
    %1850 = vmatprep.subr.bf16.mxu0 %v1206
    %1851 = vmatpush1.bf16.msra.mxu0 %v1205
    %1852 = vmatprep.subr.bf16.mxu0 %v1210
    %1853 = vmatpush1.bf16.msra.mxu0 %v1209
    %1854 = vmatprep.subr.bf16.mxu0 %v1214
    %1855 = vmatpush1.bf16.msra.mxu0 %v1213
    %1856 = vmatprep.subr.bf16.mxu0 %v1218
    %1857 = vmatpush1.bf16.msra.mxu0 %v1217
    %1858 = vmatprep.subr.bf16.mxu0 %v1222
    %1859 = vmatpush1.bf16.msra.mxu0 %v1221
    %1860 = vmatprep.subr.bf16.mxu0 %v1226
    %1861 = vmatpush1.bf16.msra.mxu0 %v1225
    %1862 = vmatprep.subr.bf16.mxu0 %v1230
    %1863 = vmatpush1.bf16.msra.mxu0 %v1229
    %1864 = vmatprep.subr.bf16.mxu0 %v1234
    %1865 = vmatpush1.bf16.msra.mxu0 %v1233
    %1866 = vmatprep.subr.bf16.mxu0 %v1238
    %1867 = vmatpush1.bf16.msra.mxu0 %v1237
    %1868 = vmatprep.subr.bf16.mxu0 %v1242
    %1869 = vmatpush1.bf16.msra.mxu0 %v1241
    %1870 = vmatprep.subr.bf16.mxu0 %v1246
    %1871 = vmatpush1.bf16.msra.mxu0 %v1245
    %1872 = vmatprep.subr.bf16.mxu0 %v1250
    %1873 = vmatpush1.bf16.msra.mxu0 %v1249
    %1874 = vmatprep.subr.bf16.mxu0 %v1254
    %1875 = vmatpush1.bf16.msra.mxu0 %v1253
    %1876 = vmatprep.mubr.bf16.mxu0 %v76
    %1877 = vmatmul.mubr.bf16.gmra.mrb[0].mxu0 %v75
    %v1878 = vpop.f32.mrb[0].mxu0
    %v1879 = vadd.f32 %v1838, %v1878
    %v1880 = vpop.f32.mrb[0].mxu0
    %v1881 = vadd.f32 %v1840, %v1880
    %v1882 = vpop.f32.mrb[0].mxu0
    %v1883 = vpop.f32.mrb[0].mxu0
    %1884 = vdwg.mxu0
    %1885 = vmatprep.subr.bf16.mxu0 %v1258
    %1886 = vmatpush1.bf16.msra.mxu0 %v1257
    %1887 = vmatprep.subr.bf16.mxu0 %v1262
    %1888 = vmatpush1.bf16.msra.mxu0 %v1261
    %1889 = vmatprep.subr.bf16.mxu0 %v1266
    %1890 = vmatpush1.bf16.msra.mxu0 %v1265
    %1891 = vmatprep.subr.bf16.mxu0 %v1270
    %1892 = vmatpush1.bf16.msra.mxu0 %v1269
    %1893 = vmatprep.subr.bf16.mxu0 %v1274
    %1894 = vmatpush1.bf16.msra.mxu0 %v1273
    %1895 = vmatprep.subr.bf16.mxu0 %v1278
    %1896 = vmatpush1.bf16.msra.mxu0 %v1277
    %1897 = vmatprep.subr.bf16.mxu0 %v1282
    %1898 = vmatpush1.bf16.msra.mxu0 %v1281
    %1899 = vmatprep.subr.bf16.mxu0 %v1286
    %1900 = vmatpush1.bf16.msra.mxu0 %v1285
    %1901 = vmatprep.subr.bf16.mxu0 %v1290
    %1902 = vmatpush1.bf16.msra.mxu0 %v1289
    %1903 = vmatprep.subr.bf16.mxu0 %v1294
    %1904 = vmatpush1.bf16.msra.mxu0 %v1293
    %1905 = vmatprep.subr.bf16.mxu0 %v1298
    %1906 = vmatpush1.bf16.msra.mxu0 %v1297
    %1907 = vmatprep.subr.bf16.mxu0 %v1302
    %1908 = vmatpush1.bf16.msra.mxu0 %v1301
    %1909 = vmatprep.subr.bf16.mxu0 %v1306
    %1910 = vmatpush1.bf16.msra.mxu0 %v1305
    %1911 = vmatprep.subr.bf16.mxu0 %v1310
    %1912 = vmatpush1.bf16.msra.mxu0 %v1309
    %1913 = vmatprep.subr.bf16.mxu0 %v1314
    %1914 = vmatpush1.bf16.msra.mxu0 %v1313
    %1915 = vmatprep.subr.bf16.mxu0 %v1318
    %1916 = vmatpush1.bf16.msra.mxu0 %v1317
    %1917 = vmatprep.mubr.bf16.mxu0 %v78
    %1918 = vmatmul.mubr.bf16.gmra.mrb[0].mxu0 %v77
    %v1919 = vpop.f32.mrb[0].mxu0
    %v1920 = vadd.f32 %v1879, %v1919
    %v1921 = vpop.f32.mrb[0].mxu0
    %v1922 = vadd.f32 %v1881, %v1921
    %v1923 = vpop.f32.mrb[0].mxu0
    %v1924 = vpop.f32.mrb[0].mxu0
    %1925 = vdwg.mxu0
    %1926 = vmatprep.subr.bf16.mxu0 %v1322
    %1927 = vmatpush1.bf16.msra.mxu0 %v1321
    %1928 = vmatprep.subr.bf16.mxu0 %v1326
    %1929 = vmatpush1.bf16.msra.mxu0 %v1325
    %1930 = vmatprep.subr.bf16.mxu0 %v1330
    %1931 = vmatpush1.bf16.msra.mxu0 %v1329
    %1932 = vmatprep.subr.bf16.mxu0 %v1334
    %1933 = vmatpush1.bf16.msra.mxu0 %v1333
    %1934 = vmatprep.subr.bf16.mxu0 %v1338
    %1935 = vmatpush1.bf16.msra.mxu0 %v1337
    %1936 = vmatprep.subr.bf16.mxu0 %v1342
    %1937 = vmatpush1.bf16.msra.mxu0 %v1341
    %1938 = vmatprep.subr.bf16.mxu0 %v1346
    %1939 = vmatpush1.bf16.msra.mxu0 %v1345
    %1940 = vmatprep.subr.bf16.mxu0 %v1350
    %1941 = vmatpush1.bf16.msra.mxu0 %v1349
    %1942 = vmatprep.subr.bf16.mxu0 %v1354
    %1943 = vmatpush1.bf16.msra.mxu0 %v1353
    %1944 = vmatprep.subr.bf16.mxu0 %v1358
    %1945 = vmatpush1.bf16.msra.mxu0 %v1357
    %1946 = vmatprep.subr.bf16.mxu0 %v1362
    %1947 = vmatpush1.bf16.msra.mxu0 %v1361
    %1948 = vmatprep.subr.bf16.mxu0 %v1366
    %1949 = vmatpush1.bf16.msra.mxu0 %v1365
    %1950 = vmatprep.subr.bf16.mxu0 %v1370
    %1951 = vmatpush1.bf16.msra.mxu0 %v1369
    %1952 = vmatprep.subr.bf16.mxu0 %v1374
    %1953 = vmatpush1.bf16.msra.mxu0 %v1373
    %1954 = vmatprep.subr.bf16.mxu0 %v1378
    %1955 = vmatpush1.bf16.msra.mxu0 %v1377
    %1956 = vmatprep.subr.bf16.mxu0 %v1382
    %1957 = vmatpush1.bf16.msra.mxu0 %v1381
    %1958 = vmatprep.mubr.bf16.mxu0 %v80
    %1959 = vmatmul.mubr.bf16.gmra.mrb[0].mxu0 %v79
    %v1960 = vpop.f32.mrb[0].mxu0
    %v1961 = vadd.f32 %v1920, %v1960
    %v1962 = vpop.f32.mrb[0].mxu0
    %v1963 = vadd.f32 %v1922, %v1962
    %v1964 = vpop.f32.mrb[0].mxu0
    %v1965 = vpop.f32.mrb[0].mxu0
    %1966 = vdwg.mxu0
    %v1967 = vld [vmem:[%s3] sm:$0xf]
    %v1969 = vlaneseq
    %v1970 = vshrl.u32 %v1969, 7
    %v1971 = vsub.s32 0, %v1970
    %v1972 = vrot.slane %v1967, %v1971
    %v1973 = vlaneseq
    %v1974 = vshrl.u32 %v1973, 7
    %v1975 = vsub.s32 1, %v1974
    %v1976 = vrot.slane %v1967, %v1975
    %v1977 = vlaneseq
    %v1978 = vshrl.u32 %v1977, 7
    %v1979 = vsub.s32 2, %v1978
    %v1980 = vrot.slane %v1967, %v1979
    %v1981 = vlaneseq
    %v1982 = vshrl.u32 %v1981, 7
    %v1983 = vsub.s32 3, %v1982
    %v1984 = vrot.slane %v1967, %v1983
    %v1989 = vmul.f32 %v1797, %v1972
    %v1990 = vmul.f32 %v1799, %v1976
    %v1991 = vmul.f32 %v1961, %v1980
    %v1992 = vmul.f32 %v1963, %v1984
    %v1993 = vld [vmem:[%s4] sm:$0xf]
    %v1995 = vlaneseq
    %v1996 = vshrl.u32 %v1995, 7
    %v1997 = vsub.s32 0, %v1996
    %v1998 = vrot.slane %v1993, %v1997
    %v1999 = vlaneseq
    %v2000 = vshrl.u32 %v1999, 7
    %v2001 = vsub.s32 1, %v2000
    %v2002 = vrot.slane %v1993, %v2001
    %v2003 = vlaneseq
    %v2004 = vshrl.u32 %v2003, 7
    %v2005 = vsub.s32 2, %v2004
    %v2006 = vrot.slane %v1993, %v2005
    %v2007 = vlaneseq
    %v2008 = vshrl.u32 %v2007, 7
    %v2009 = vsub.s32 3, %v2008
    %v2010 = vrot.slane %v1993, %v2009
    %v2015 = vadd.f32 %v1989, %v1998
    %v2016 = vadd.f32 %v1990, %v2002
    %v2017 = vadd.f32 %v1991, %v2006
    %v2018 = vadd.f32 %v1992, %v2010
    %vm2019 = vcmp.gt.f32.partialorder %v2015, 0.0
    %vm2020 = vcmp.gt.f32.partialorder %v2016, 0.0
    %vm2021 = vcmp.gt.f32.partialorder %v2017, 0.0
    %vm2022 = vcmp.gt.f32.partialorder %v2018, 0.0
    %v2023 = vmul.f32 %v2015, 0.2
    %v2024 = vmul.f32 %v2016, 0.2
    %v2025 = vmul.f32 %v2017, 0.2
    %v2026 = vmul.f32 %v2018, 0.2
    %v2027 = vsel %vm2019, %v2015, %v2023
    %v2028 = vsel %vm2020, %v2016, %v2024
    %v2029 = vsel %vm2021, %v2017, %v2025
    %v2030 = vsel %vm2022, %v2018, %v2026
    %v2031 = vpack.c.bf16 %v2027, %v2027
    %v2032 = vpack.c.bf16 %v2028, %v2028
    %v2033 = vpack.c.bf16 %v2029, %v2029
    %v2034 = vpack.c.bf16 %v2030, %v2030
    %v2035 = vld [vmem:[%s5] sm:$0xff]
    %v2036 = vld [vmem:[%s5 + $0x8] sm:$0xff]
    %v2037 = vld [vmem:[%s5 + $0x10] sm:$0xff]
    %v2038 = vld [vmem:[%s5 + $0x18] sm:$0xff]
    %v2039 = vld [vmem:[%s5 + $0x20] sm:$0xff]
    %v2040 = vld [vmem:[%s5 + $0x28] sm:$0xff]
    %v2041 = vld [vmem:[%s5 + $0x30] sm:$0xff]
    %v2042 = vld [vmem:[%s5 + $0x38] sm:$0xff]
    %v2043 = vld [vmem:[%s5 + $0x40] sm:$0xff]
    %v2044 = vld [vmem:[%s5 + $0x48] sm:$0xff]
    %v2045 = vld [vmem:[%s5 + $0x50] sm:$0xff]
    %v2046 = vld [vmem:[%s5 + $0x58] sm:$0xff]
    %v2047 = vld [vmem:[%s5 + $0x60] sm:$0xff]
    %v2048 = vld [vmem:[%s5 + $0x68] sm:$0xff]
    %v2049 = vld [vmem:[%s5 + $0x70] sm:$0xff]
    %v2050 = vld [vmem:[%s5 + $0x78] sm:$0xff]
    %v2051 = vld [vmem:[%s5 + $0x80] sm:$0xff]
    %v2052 = vld [vmem:[%s5 + $0x88] sm:$0xff]
    %v2053 = vld [vmem:[%s5 + $0x90] sm:$0xff]
    %v2054 = vld [vmem:[%s5 + $0x98] sm:$0xff]
    %v2055 = vld [vmem:[%s5 + $0xa0] sm:$0xff]
    %v2056 = vld [vmem:[%s5 + $0xa8] sm:$0xff]
    %v2057 = vld [vmem:[%s5 + $0xb0] sm:$0xff]
    %v2058 = vld [vmem:[%s5 + $0xb8] sm:$0xff]
    %v2059 = vld [vmem:[%s5 + $0xc0] sm:$0xff]
    %v2060 = vld [vmem:[%s5 + $0xc8] sm:$0xff]
    %v2061 = vld [vmem:[%s5 + $0xd0] sm:$0xff]
    %v2062 = vld [vmem:[%s5 + $0xd8] sm:$0xff]
    %v2063 = vld [vmem:[%s5 + $0xe0] sm:$0xff]
    %v2064 = vld [vmem:[%s5 + $0xe8] sm:$0xff]
    %v2065 = vld [vmem:[%s5 + $0xf0] sm:$0xff]
    %v2066 = vld [vmem:[%s5 + $0xf8] sm:$0xff]
    %v2067 = vld [vmem:[%s5 + $0x100] sm:$0xff]
    %v2068 = vld [vmem:[%s5 + $0x108] sm:$0xff]
    %v2069 = vld [vmem:[%s5 + $0x110] sm:$0xff]
    %v2070 = vld [vmem:[%s5 + $0x118] sm:$0xff]
    %v2071 = vld [vmem:[%s5 + $0x120] sm:$0xff]
    %v2072 = vld [vmem:[%s5 + $0x128] sm:$0xff]
    %v2073 = vld [vmem:[%s5 + $0x130] sm:$0xff]
    %v2074 = vld [vmem:[%s5 + $0x138] sm:$0xff]
    %v2075 = vld [vmem:[%s5 + $0x140] sm:$0xff]
    %v2076 = vld [vmem:[%s5 + $0x148] sm:$0xff]
    %v2077 = vld [vmem:[%s5 + $0x150] sm:$0xff]
    %v2078 = vld [vmem:[%s5 + $0x158] sm:$0xff]
    %v2079 = vld [vmem:[%s5 + $0x160] sm:$0xff]
    %v2080 = vld [vmem:[%s5 + $0x168] sm:$0xff]
    %v2081 = vld [vmem:[%s5 + $0x170] sm:$0xff]
    %v2082 = vld [vmem:[%s5 + $0x178] sm:$0xff]
    %v2083 = vld [vmem:[%s5 + $0x180] sm:$0xff]
    %v2084 = vld [vmem:[%s5 + $0x188] sm:$0xff]
    %v2085 = vld [vmem:[%s5 + $0x190] sm:$0xff]
    %v2086 = vld [vmem:[%s5 + $0x198] sm:$0xff]
    %v2087 = vld [vmem:[%s5 + $0x1a0] sm:$0xff]
    %v2088 = vld [vmem:[%s5 + $0x1a8] sm:$0xff]
    %v2089 = vld [vmem:[%s5 + $0x1b0] sm:$0xff]
    %v2090 = vld [vmem:[%s5 + $0x1b8] sm:$0xff]
    %v2091 = vld [vmem:[%s5 + $0x1c0] sm:$0xff]
    %v2092 = vld [vmem:[%s5 + $0x1c8] sm:$0xff]
    %v2093 = vld [vmem:[%s5 + $0x1d0] sm:$0xff]
    %v2094 = vld [vmem:[%s5 + $0x1d8] sm:$0xff]
    %v2095 = vld [vmem:[%s5 + $0x1e0] sm:$0xff]
    %v2096 = vld [vmem:[%s5 + $0x1e8] sm:$0xff]
    %v2097 = vld [vmem:[%s5 + $0x1f0] sm:$0xff]
    %v2098 = vld [vmem:[%s5 + $0x1f8] sm:$0xff]
    %v2099 = vld [vmem:[%s6] sm:$0x3]
    %v2101 = vlaneseq
    %v2102 = vshrl.u32 %v2101, 7
    %v2103 = vsub.s32 0, %v2102
    %v2104 = vrot.slane %v2099, %v2103
    %v2105 = vlaneseq
    %v2106 = vshrl.u32 %v2105, 7
    %v2107 = vsub.s32 1, %v2106
    %v2108 = vrot.slane %v2099, %v2107
    %v2175 = vunpack.c.l.b16 %v2035
    %v2176 = vunpack.c.h.b16 %v2035
    %v2177 = vunpack.c.l.b16 %v2036
    %v2178 = vunpack.c.h.b16 %v2036
    %v2179 = vunpack.c.l.b16 %v2037
    %v2180 = vunpack.c.h.b16 %v2037
    %v2181 = vunpack.c.l.b16 %v2038
    %v2182 = vunpack.c.h.b16 %v2038
    %v2183 = vunpack.c.l.b16 %v2039
    %v2184 = vunpack.c.h.b16 %v2039
    %v2185 = vunpack.c.l.b16 %v2040
    %v2186 = vunpack.c.h.b16 %v2040
    %v2187 = vunpack.c.l.b16 %v2041
    %v2188 = vunpack.c.h.b16 %v2041
    %v2189 = vunpack.c.l.b16 %v2042
    %v2190 = vunpack.c.h.b16 %v2042
    %v2191 = vunpack.c.l.b16 %v2043
    %v2192 = vunpack.c.h.b16 %v2043
    %v2193 = vunpack.c.l.b16 %v2044
    %v2194 = vunpack.c.h.b16 %v2044
    %v2195 = vunpack.c.l.b16 %v2045
    %v2196 = vunpack.c.h.b16 %v2045
    %v2197 = vunpack.c.l.b16 %v2046
    %v2198 = vunpack.c.h.b16 %v2046
    %v2199 = vunpack.c.l.b16 %v2047
    %v2200 = vunpack.c.h.b16 %v2047
    %v2201 = vunpack.c.l.b16 %v2048
    %v2202 = vunpack.c.h.b16 %v2048
    %v2203 = vunpack.c.l.b16 %v2049
    %v2204 = vunpack.c.h.b16 %v2049
    %v2205 = vunpack.c.l.b16 %v2050
    %v2206 = vunpack.c.h.b16 %v2050
    %v2207 = vunpack.c.l.b16 %v2051
    %v2208 = vunpack.c.h.b16 %v2051
    %v2209 = vunpack.c.l.b16 %v2052
    %v2210 = vunpack.c.h.b16 %v2052
    %v2211 = vunpack.c.l.b16 %v2053
    %v2212 = vunpack.c.h.b16 %v2053
    %v2213 = vunpack.c.l.b16 %v2054
    %v2214 = vunpack.c.h.b16 %v2054
    %v2215 = vunpack.c.l.b16 %v2055
    %v2216 = vunpack.c.h.b16 %v2055
    %v2217 = vunpack.c.l.b16 %v2056
    %v2218 = vunpack.c.h.b16 %v2056
    %v2219 = vunpack.c.l.b16 %v2057
    %v2220 = vunpack.c.h.b16 %v2057
    %v2221 = vunpack.c.l.b16 %v2058
    %v2222 = vunpack.c.h.b16 %v2058
    %v2223 = vunpack.c.l.b16 %v2059
    %v2224 = vunpack.c.h.b16 %v2059
    %v2225 = vunpack.c.l.b16 %v2060
    %v2226 = vunpack.c.h.b16 %v2060
    %v2227 = vunpack.c.l.b16 %v2061
    %v2228 = vunpack.c.h.b16 %v2061
    %v2229 = vunpack.c.l.b16 %v2062
    %v2230 = vunpack.c.h.b16 %v2062
    %v2231 = vunpack.c.l.b16 %v2063
    %v2232 = vunpack.c.h.b16 %v2063
    %v2233 = vunpack.c.l.b16 %v2064
    %v2234 = vunpack.c.h.b16 %v2064
    %v2235 = vunpack.c.l.b16 %v2065
    %v2236 = vunpack.c.h.b16 %v2065
    %v2237 = vunpack.c.l.b16 %v2066
    %v2238 = vunpack.c.h.b16 %v2066
    %v2239 = vunpack.c.l.b16 %v2067
    %v2240 = vunpack.c.h.b16 %v2067
    %v2241 = vunpack.c.l.b16 %v2068
    %v2242 = vunpack.c.h.b16 %v2068
    %v2243 = vunpack.c.l.b16 %v2069
    %v2244 = vunpack.c.h.b16 %v2069
    %v2245 = vunpack.c.l.b16 %v2070
    %v2246 = vunpack.c.h.b16 %v2070
    %v2247 = vunpack.c.l.b16 %v2071
    %v2248 = vunpack.c.h.b16 %v2071
    %v2249 = vunpack.c.l.b16 %v2072
    %v2250 = vunpack.c.h.b16 %v2072
    %v2251 = vunpack.c.l.b16 %v2073
    %v2252 = vunpack.c.h.b16 %v2073
    %v2253 = vunpack.c.l.b16 %v2074
    %v2254 = vunpack.c.h.b16 %v2074
    %v2255 = vunpack.c.l.b16 %v2075
    %v2256 = vunpack.c.h.b16 %v2075
    %v2257 = vunpack.c.l.b16 %v2076
    %v2258 = vunpack.c.h.b16 %v2076
    %v2259 = vunpack.c.l.b16 %v2077
    %v2260 = vunpack.c.h.b16 %v2077
    %v2261 = vunpack.c.l.b16 %v2078
    %v2262 = vunpack.c.h.b16 %v2078
    %v2263 = vunpack.c.l.b16 %v2079
    %v2264 = vunpack.c.h.b16 %v2079
    %v2265 = vunpack.c.l.b16 %v2080
    %v2266 = vunpack.c.h.b16 %v2080
    %v2267 = vunpack.c.l.b16 %v2081
    %v2268 = vunpack.c.h.b16 %v2081
    %v2269 = vunpack.c.l.b16 %v2082
    %v2270 = vunpack.c.h.b16 %v2082
    %v2271 = vunpack.c.l.b16 %v2083
    %v2272 = vunpack.c.h.b16 %v2083
    %v2273 = vunpack.c.l.b16 %v2084
    %v2274 = vunpack.c.h.b16 %v2084
    %v2275 = vunpack.c.l.b16 %v2085
    %v2276 = vunpack.c.h.b16 %v2085
    %v2277 = vunpack.c.l.b16 %v2086
    %v2278 = vunpack.c.h.b16 %v2086
    %v2279 = vunpack.c.l.b16 %v2087
    %v2280 = vunpack.c.h.b16 %v2087
    %v2281 = vunpack.c.l.b16 %v2088
    %v2282 = vunpack.c.h.b16 %v2088
    %v2283 = vunpack.c.l.b16 %v2089
    %v2284 = vunpack.c.h.b16 %v2089
    %v2285 = vunpack.c.l.b16 %v2090
    %v2286 = vunpack.c.h.b16 %v2090
    %v2287 = vunpack.c.l.b16 %v2091
    %v2288 = vunpack.c.h.b16 %v2091
    %v2289 = vunpack.c.l.b16 %v2092
    %v2290 = vunpack.c.h.b16 %v2092
    %v2291 = vunpack.c.l.b16 %v2093
    %v2292 = vunpack.c.h.b16 %v2093
    %v2293 = vunpack.c.l.b16 %v2094
    %v2294 = vunpack.c.h.b16 %v2094
    %v2295 = vunpack.c.l.b16 %v2095
    %v2296 = vunpack.c.h.b16 %v2095
    %v2297 = vunpack.c.l.b16 %v2096
    %v2298 = vunpack.c.h.b16 %v2096
    %v2299 = vunpack.c.l.b16 %v2097
    %v2300 = vunpack.c.h.b16 %v2097
    %v2301 = vunpack.c.l.b16 %v2098
    %v2302 = vunpack.c.h.b16 %v2098
    %v2303 = vpack.c.b16 %v2177, %v2175
    %v2304 = vpack.c.b16 %v2178, %v2176
    %v2305 = vpack.c.b16 %v2181, %v2179
    %v2306 = vpack.c.b16 %v2182, %v2180
    %v2307 = vpack.c.b16 %v2185, %v2183
    %v2308 = vpack.c.b16 %v2186, %v2184
    %v2309 = vpack.c.b16 %v2189, %v2187
    %v2310 = vpack.c.b16 %v2190, %v2188
    %v2311 = vpack.c.b16 %v2193, %v2191
    %v2312 = vpack.c.b16 %v2194, %v2192
    %v2313 = vpack.c.b16 %v2197, %v2195
    %v2314 = vpack.c.b16 %v2198, %v2196
    %v2315 = vpack.c.b16 %v2201, %v2199
    %v2316 = vpack.c.b16 %v2202, %v2200
    %v2317 = vpack.c.b16 %v2205, %v2203
    %v2318 = vpack.c.b16 %v2206, %v2204
    %v2319 = vpack.c.b16 %v2209, %v2207
    %v2320 = vpack.c.b16 %v2210, %v2208
    %v2321 = vpack.c.b16 %v2213, %v2211
    %v2322 = vpack.c.b16 %v2214, %v2212
    %v2323 = vpack.c.b16 %v2217, %v2215
    %v2324 = vpack.c.b16 %v2218, %v2216
    %v2325 = vpack.c.b16 %v2221, %v2219
    %v2326 = vpack.c.b16 %v2222, %v2220
    %v2327 = vpack.c.b16 %v2225, %v2223
    %v2328 = vpack.c.b16 %v2226, %v2224
    %v2329 = vpack.c.b16 %v2229, %v2227
    %v2330 = vpack.c.b16 %v2230, %v2228
    %v2331 = vpack.c.b16 %v2233, %v2231
    %v2332 = vpack.c.b16 %v2234, %v2232
    %v2333 = vpack.c.b16 %v2237, %v2235
    %v2334 = vpack.c.b16 %v2238, %v2236
    %v2335 = vpack.c.b16 %v2241, %v2239
    %v2336 = vpack.c.b16 %v2242, %v2240
    %v2337 = vpack.c.b16 %v2245, %v2243
    %v2338 = vpack.c.b16 %v2246, %v2244
    %v2339 = vpack.c.b16 %v2249, %v2247
    %v2340 = vpack.c.b16 %v2250, %v2248
    %v2341 = vpack.c.b16 %v2253, %v2251
    %v2342 = vpack.c.b16 %v2254, %v2252
    %v2343 = vpack.c.b16 %v2257, %v2255
    %v2344 = vpack.c.b16 %v2258, %v2256
    %v2345 = vpack.c.b16 %v2261, %v2259
    %v2346 = vpack.c.b16 %v2262, %v2260
    %v2347 = vpack.c.b16 %v2265, %v2263
    %v2348 = vpack.c.b16 %v2266, %v2264
    %v2349 = vpack.c.b16 %v2269, %v2267
    %v2350 = vpack.c.b16 %v2270, %v2268
    %v2351 = vpack.c.b16 %v2273, %v2271
    %v2352 = vpack.c.b16 %v2274, %v2272
    %v2353 = vpack.c.b16 %v2277, %v2275
    %v2354 = vpack.c.b16 %v2278, %v2276
    %v2355 = vpack.c.b16 %v2281, %v2279
    %v2356 = vpack.c.b16 %v2282, %v2280
    %v2357 = vpack.c.b16 %v2285, %v2283
    %v2358 = vpack.c.b16 %v2286, %v2284
    %v2359 = vpack.c.b16 %v2289, %v2287
    %v2360 = vpack.c.b16 %v2290, %v2288
    %v2361 = vpack.c.b16 %v2293, %v2291
    %v2362 = vpack.c.b16 %v2294, %v2292
    %v2363 = vpack.c.b16 %v2297, %v2295
    %v2364 = vpack.c.b16 %v2298, %v2296
    %v2365 = vpack.c.b16 %v2301, %v2299
    %v2366 = vpack.c.b16 %v2302, %v2300
    %2431 = vmatprep.subr.bf16.mxu0 %v2304
    %2432 = vmatpush1.bf16.msra.mxu0 %v2303
    %2433 = vmatprep.subr.bf16.mxu0 %v2306
    %2434 = vmatpush1.bf16.msra.mxu0 %v2305
    %2435 = vmatprep.subr.bf16.mxu0 %v2308
    %2436 = vmatpush1.bf16.msra.mxu0 %v2307
    %2437 = vmatprep.subr.bf16.mxu0 %v2310
    %2438 = vmatpush1.bf16.msra.mxu0 %v2309
    %2439 = vmatprep.subr.bf16.mxu0 %v2312
    %2440 = vmatpush1.bf16.msra.mxu0 %v2311
    %2441 = vmatprep.subr.bf16.mxu0 %v2314
    %2442 = vmatpush1.bf16.msra.mxu0 %v2313
    %2443 = vmatprep.subr.bf16.mxu0 %v2316
    %2444 = vmatpush1.bf16.msra.mxu0 %v2315
    %2445 = vmatprep.subr.bf16.mxu0 %v2318
    %2446 = vmatpush1.bf16.msra.mxu0 %v2317
    %2447 = vmatprep.subr.bf16.mxu0 %v2320
    %2448 = vmatpush1.bf16.msra.mxu0 %v2319
    %2449 = vmatprep.subr.bf16.mxu0 %v2322
    %2450 = vmatpush1.bf16.msra.mxu0 %v2321
    %2451 = vmatprep.subr.bf16.mxu0 %v2324
    %2452 = vmatpush1.bf16.msra.mxu0 %v2323
    %2453 = vmatprep.subr.bf16.mxu0 %v2326
    %2454 = vmatpush1.bf16.msra.mxu0 %v2325
    %2455 = vmatprep.subr.bf16.mxu0 %v2328
    %2456 = vmatpush1.bf16.msra.mxu0 %v2327
    %2457 = vmatprep.subr.bf16.mxu0 %v2330
    %2458 = vmatpush1.bf16.msra.mxu0 %v2329
    %2459 = vmatprep.subr.bf16.mxu0 %v2332
    %2460 = vmatpush1.bf16.msra.mxu0 %v2331
    %2461 = vmatprep.subr.bf16.mxu0 %v2334
    %2462 = vmatpush1.bf16.msra.mxu0 %v2333
    %2463 = vmatprep.mubr.bf16.mxu0 %v2032
    %2464 = vmatmul.mubr.bf16.gmra.mrb[0].mxu0 %v2031
    %v2465 = vpop.f32.mrb[0].mxu0
    %v2466 = vadd.f32 %v2104, %v2465
    %v2467 = vpop.f32.mrb[0].mxu0
    %v2468 = vadd.f32 %v2108, %v2467
    %v2469 = vpop.f32.mrb[0].mxu0
    %v2470 = vpop.f32.mrb[0].mxu0
    %2471 = vdwg.mxu0
    %2472 = vmatprep.subr.bf16.mxu0 %v2336
    %2473 = vmatpush1.bf16.msra.mxu0 %v2335
    %2474 = vmatprep.subr.bf16.mxu0 %v2338
    %2475 = vmatpush1.bf16.msra.mxu0 %v2337
    %2476 = vmatprep.subr.bf16.mxu0 %v2340
    %2477 = vmatpush1.bf16.msra.mxu0 %v2339
    %2478 = vmatprep.subr.bf16.mxu0 %v2342
    %2479 = vmatpush1.bf16.msra.mxu0 %v2341
    %2480 = vmatprep.subr.bf16.mxu0 %v2344
    %2481 = vmatpush1.bf16.msra.mxu0 %v2343
    %2482 = vmatprep.subr.bf16.mxu0 %v2346
    %2483 = vmatpush1.bf16.msra.mxu0 %v2345
    %2484 = vmatprep.subr.bf16.mxu0 %v2348
    %2485 = vmatpush1.bf16.msra.mxu0 %v2347
    %2486 = vmatprep.subr.bf16.mxu0 %v2350
    %2487 = vmatpush1.bf16.msra.mxu0 %v2349
    %2488 = vmatprep.subr.bf16.mxu0 %v2352
    %2489 = vmatpush1.bf16.msra.mxu0 %v2351
    %2490 = vmatprep.subr.bf16.mxu0 %v2354
    %2491 = vmatpush1.bf16.msra.mxu0 %v2353
    %2492 = vmatprep.subr.bf16.mxu0 %v2356
    %2493 = vmatpush1.bf16.msra.mxu0 %v2355
    %2494 = vmatprep.subr.bf16.mxu0 %v2358
    %2495 = vmatpush1.bf16.msra.mxu0 %v2357
    %2496 = vmatprep.subr.bf16.mxu0 %v2360
    %2497 = vmatpush1.bf16.msra.mxu0 %v2359
    %2498 = vmatprep.subr.bf16.mxu0 %v2362
    %2499 = vmatpush1.bf16.msra.mxu0 %v2361
    %2500 = vmatprep.subr.bf16.mxu0 %v2364
    %2501 = vmatpush1.bf16.msra.mxu0 %v2363
    %2502 = vmatprep.subr.bf16.mxu0 %v2366
    %2503 = vmatpush1.bf16.msra.mxu0 %v2365
    %2504 = vmatprep.mubr.bf16.mxu0 %v2034
    %2505 = vmatmul.mubr.bf16.gmra.mrb[0].mxu0 %v2033
    %v2506 = vpop.f32.mrb[0].mxu0
    %v2507 = vadd.f32 %v2466, %v2506
    %v2508 = vpop.f32.mrb[0].mxu0
    %v2509 = vadd.f32 %v2468, %v2508
    %v2510 = vpop.f32.mrb[0].mxu0
    %v2511 = vpop.f32.mrb[0].mxu0
    %2512 = vdwg.mxu0
    %v2515 = vcombine.low %v2507, %v2509
    %v2517 = vunpack.c.l.s4 1983009808
    %v2518 = vunpack.c.0.s8 %v2517
    %v2519 = vlaneseq
    %v2520 = vshrl.u32 %v2519, 7
    %v2521 = vsub.s32 %v2518, %v2520
    %v2522 = vrot.slane %v2515, %v2521
    %2524 = vst [vmem:[#allocation2] sm:$0xf] %v2522
    // Predicated region
    $region30: #{dgcnn_forward.15} parent=1 // pred_check
      _
    $region31: #{dgcnn_forward.15} parent=1 // pred_check_branch
      %2526 = sbr.rel (0) target = $region33
    $region32: #{dgcnn_forward.15} parent=1 // pred_region
      %s2528 = ssub.s32 64, 64
      %2529 = vsyncadd [#allocation3], %s2528
      %s2531 = sshll.u32 [#allocation2], 4
      %s2532 = int_to_ptr.vmem [resolvable:$true] %s2531
      %2534 = dma.vmem_to_hbm [thread:$0]  %s2532, 64, %s7, [#allocation3]
    $region33: #{dgcnn_forward.15} parent=1 // pred_fallthru
      _
    // Predicated region
    $region34: #{dgcnn_forward.15} parent=1 // pred_check
      _
    $region35: #{dgcnn_forward.15} parent=1 // pred_check_branch
      %2536 = sbr.rel (0) target = $region37
    $region36: #{dgcnn_forward.15} parent=1 // pred_region
      %2537 = dma.done [#allocation3], 64
    $region37: #{dgcnn_forward.15} parent=1 // pred_fallthru
      _
    %2538 = vsyncpa [#allocation3], 1

</llo_original>
